<compile_context>
chip_gen: v7x
topology: tpu7x:2x2x1
jax: 0.10.0
libtpu: 0.0.40
codegen_flags: <defaults>
</compile_context>

<pallas_src>
import jax
import jax.numpy as jnp
from jax.experimental import pallas as pl
from jax.experimental.pallas import tpu as pltpu


def lstm_model3_kernel(x_ref, wih0_ref, b0_ref, wext_ref, b1ext_ref,
                       w11_hbm, b11_ref, w12_hbm, b12_ref, w13_ref, b13_ref,
                       w21_hbm, b21_ref, w22_hbm, b22_ref, w23_ref, b23_ref,
                       out_ref,
                       w11_buf, w12_buf, w21_buf, w22_buf, dma_sems):
    f32 = jnp.float32
    bf16 = jnp.bfloat16
    G = b0_ref.shape[1]            # 4H
    H = G // 4
    n = out_ref.shape[1]           # num_stocks
    B = n                          # batch == num_stocks
    T = x_ref.shape[0] // B        # forecast window

    # ---- kick off the big head-weight DMAs so they overlap the recurrence ----
    cp11 = pltpu.make_async_copy(w11_hbm, w11_buf, dma_sems.at[0]); cp11.start()
    cp12 = pltpu.make_async_copy(w12_hbm, w12_buf, dma_sems.at[1]); cp12.start()
    cp21 = pltpu.make_async_copy(w21_hbm, w21_buf, dma_sems.at[2]); cp21.start()
    cp22 = pltpu.make_async_copy(w22_hbm, w22_buf, dma_sems.at[3]); cp22.start()

    wext = wext_ref[...]           # (2H, 8H) = [[wih1, whh0], [whh1, 0]]
    b1ext = b1ext_ref[...]         # (1, 8H)  = [b1 | 0]

    # Hoisted layer-0 input projection + bias: one (T*B, A)@(A, 4H) matmul, independent
    # of the recurrence, so the scheduler can issue it early.
    g_in_all = jnp.dot(x_ref[...], wih0_ref[...], preferred_element_type=f32) + b0_ref[...]

    # Full-tile gate activation: scale the g-gate lanes by 2, one sigmoid over the whole
    # (B, 4H) tile, then tanh(x) = 2*sigmoid(2x) - 1 for the g gate.  (Hoisted constants.)
    lane = jax.lax.broadcasted_iota(jnp.int32, (B, G), 1)
    is_g = jnp.logical_and(lane >= 2 * H, lane < 3 * H)
    gscale = jnp.where(is_g, jnp.float32(2.0), jnp.float32(1.0))

    def gates(g):
        s = jax.nn.sigmoid(g * gscale)          # single EUP pass over the full tile
        i = s[:, 0 * H:1 * H]
        f = s[:, 1 * H:2 * H]
        gg = 2.0 * s[:, 2 * H:3 * H] - 1.0      # == tanh(g_slice)
        o = s[:, 3 * H:4 * H]
        return i, f, gg, o

    h1 = jnp.zeros((B, H), f32); c1 = jnp.zeros((B, H), f32)
    h2 = jnp.zeros((B, H), f32); c2 = jnp.zeros((B, H), f32)
    rec0 = None                    # cached h1(t-1) @ whh0, produced by previous fused matmul
    h2_chunks = []                 # lstm_out chunks kept in vregs (no VMEM staging)

    for t in range(T):             # static unroll over the short sequence
        # ---- layer 0: input projection precomputed; recurrent term comes from the
        #      previous step's fused matmul (zero at t=0 since h1 starts at zero) ----
        g0 = g_in_all[t * B:(t + 1) * B, :]
        if rec0 is not None:
            g0 = g0 + rec0
        i0, f0, gg0, o0 = gates(g0)
        c1 = f0 * c1 + i0 * gg0
        h1 = o0 * jnp.tanh(c1)

        # ---- fused layer-1 matmul + next-step layer-0 recurrence:
        #      [h1 | h2] @ [[wih1, whh0],[whh1, 0]] = [g1_matmul | h1 @ whh0] ----
        fused = jnp.dot(jnp.concatenate([h1, h2], axis=1), wext,
                        preferred_element_type=f32) + b1ext
        g1 = fused[:, 0:G]
        rec0 = fused[:, G:2 * G]
        i1, f1, gg1, o1 = gates(g1)
        c2 = f1 * c2 + i1 * gg1
        h2 = o1 * jnp.tanh(c2)
        h2_chunks.append(h2)

    # lstm_out.flatten(start_dim=1) built entirely in-register (lane concat of T chunks)
    lstm_flat = jnp.concatenate(h2_chunks, axis=1)           # (B, T*H)

    # ---- MLP head 1: bf16 weights (DMA'd during the recurrence), f32 accumulation ----
    cp11.wait()
    y = jax.nn.relu(jnp.dot(lstm_flat.astype(bf16), w11_buf[...],
                            preferred_element_type=f32) + b11_ref[...])
    cp12.wait()
    y = jax.nn.relu(jnp.dot(y.astype(bf16), w12_buf[...],
                            preferred_element_type=f32) + b12_ref[...])
    scores = jax.nn.relu(jnp.dot(y, w13_ref[...], preferred_element_type=f32)
                         + b13_ref[...])                      # (n, 1)

    # ---- NeuralSort relaxed permutation matrix (compute_permu_matrix, tau=5) ----
    # s_row[0, j] = s_j via an XLU sublane reduction of the masked diagonal
    eye = (jax.lax.broadcasted_iota(jnp.int32, (n, n), 0)
           == jax.lax.broadcasted_iota(jnp.int32, (n, n), 1)).astype(f32)
    s_row = jnp.sum(eye * scores, axis=0, keepdims=True)      # (1, n)
    a_abs = jnp.abs(scores - s_row)                           # (n, n), symmetric
    rsum_row = jnp.sum(a_abs, axis=0, keepdims=True)          # (1, n) == rowsum^T by symmetry
    scaling = (jnp.float32(n - 1)
               - 2.0 * jax.lax.broadcasted_iota(jnp.int32, (n, 1), 0).astype(f32))
    p_max = scaling * s_row - rsum_row                        # (n+1-2(i+1))*s_j - sum_k|s_j-s_k|
    p_hat = jax.nn.softmax(p_max / 5.0, axis=-1)              # (n, n)

    # ---- in-register flatten of p_hat into a (1, n*n) lane row (no VMEM round trip):
    #      tile p_hat along lanes, mask the block-diagonal, reduce over sublanes (XLU) ----
    p_tiled = jnp.concatenate([p_hat] * n, axis=1)            # (n, n*n): [r, i*n+j] = p_hat[r, j]
    col = jax.lax.broadcasted_iota(jnp.int32, (n, n * n), 1)
    row = jax.lax.broadcasted_iota(jnp.int32, (n, n * n), 0)
    blk = jnp.logical_and(col >= row * n, col < (row + 1) * n)   # col // n == row
    p_flat = jnp.sum(jnp.where(blk, p_tiled, jnp.float32(0.0)),
                     axis=0, keepdims=True)                   # (1, n*n)

    # ---- MLP head 2 ----
    cp21.wait()
    z = jax.nn.relu(jnp.dot(p_flat.astype(bf16), w21_buf[...],
                            preferred_element_type=f32) + b21_ref[...])
    cp22.wait()
    z = jax.nn.relu(jnp.dot(z.astype(bf16), w22_buf[...],
                            preferred_element_type=f32) + b22_ref[...])
    z = jnp.dot(z, w23_ref[...], preferred_element_type=f32) + b23_ref[...]   # (1, n)
    out_ref[...] = jax.nn.softmax(z, axis=-1)                 # F.softmax default dim=1 for 2D


def lstm_model3_forward(x, params):
    # x: (batch=num_stocks, seq, attrs) -- PyTorch batch_first convention
    B, T, A = x.shape
    H = params["whh0"].shape[0]
    f32 = jnp.float32
    bf16 = jnp.bfloat16

    # time-major then flattened so the layer-0 projection is one matmul in the kernel
    x2d = jnp.transpose(x, (1, 0, 2)).reshape(T * B, A).astype(f32)

    # Fused recurrent weight: [h1 | h2] @ [[wih1, whh0],[whh1, 0]] = [g1_matmul | h1 @ whh0]
    wext = jnp.concatenate(
        [jnp.concatenate([params["wih1"], params["whh0"]], axis=1),
         jnp.concatenate([params["whh1"], jnp.zeros((H, 4 * H), f32)], axis=1)],
        axis=0)                                                       # (2H, 8H)
    b1ext = jnp.concatenate([params["b1"], jnp.zeros((1, 4 * H), f32)], axis=1)  # (1, 8H)

    # Large head weights in bf16 (halves HBM traffic; kernel accumulates in f32)
    w11 = params["w11"].astype(bf16)
    w12 = params["w12"].astype(bf16)
    w21 = params["w21"].astype(bf16)
    w22 = params["w22"].astype(bf16)

    args = (x2d, params["wih0"], params["b0"], wext, b1ext,
            w11, params["b11"], w12, params["b12"], params["w13"], params["b13"],
            w21, params["b21"], w22, params["b22"], params["w23"], params["b23"])

    vmem = lambda: pl.BlockSpec(memory_space=pltpu.MemorySpace.VMEM)
    hbm = lambda: pl.BlockSpec(memory_space=pl.ANY)   # stays in HBM; kernel DMAs behind the loop
    in_specs = [vmem(), vmem(), vmem(), vmem(), vmem(),
                hbm(), vmem(), hbm(), vmem(), vmem(), vmem(),
                hbm(), vmem(), hbm(), vmem(), vmem(), vmem()]

    return pl.pallas_call(
        lstm_model3_kernel,
        out_shape=jax.ShapeDtypeStruct((1, B), jnp.float32),
        in_specs=in_specs,
        out_specs=vmem(),
        scratch_shapes=[pltpu.VMEM((T * H, 512), bf16),     # w11 landing buffer
                        pltpu.VMEM((512, 64), bf16),        # w12
                        pltpu.VMEM((B * B, 512), bf16),     # w21
                        pltpu.VMEM((512, 64), bf16),        # w22
                        pltpu.SemaphoreType.DMA((4,))],
    )(*args)


def init_params(key, A, H, T, n):
    ks = jax.random.split(key, 20)

    def u(k, shape, fan_in):
        bound = 1.0 / (fan_in ** 0.5)
        return jax.random.uniform(k, shape, jnp.float32, -bound, bound)

    p = {}
    # LSTM layer 0 (weights stored transposed: (in, 4H), gate order i|f|g|o)
    p["wih0"] = u(ks[0], (A, 4 * H), H)
    p["whh0"] = u(ks[1], (H, 4 * H), H)
    p["b0"] = u(ks[2], (1, 4 * H), H) + u(ks[3], (1, 4 * H), H)   # b_ih + b_hh
    # LSTM layer 1
    p["wih1"] = u(ks[4], (H, 4 * H), H)
    p["whh1"] = u(ks[5], (H, 4 * H), H)
    p["b1"] = u(ks[6], (1, 4 * H), H) + u(ks[7], (1, 4 * H), H)
    # MLP head 1  (effective weight (in, out) == PyTorch weight.T)
    p["w11"] = u(ks[8], (T * H, 512), T * H)
    p["b11"] = u(ks[9], (1, 512), T * H)
    p["w12"] = u(ks[10], (512, 64), 512)
    p["b12"] = u(ks[11], (1, 64), 512)
    p["w13"] = u(ks[12], (64, 1), 64)
    p["b13"] = u(ks[13], (1, 1), 64)
    # MLP head 2 on flattened permutation matrix (n*n inputs)
    p["w21"] = u(ks[14], (n * n, 512), n * n)
    p["b21"] = u(ks[15], (1, 512), n * n)
    p["w22"] = u(ks[16], (512, 64), 512)
    p["b22"] = u(ks[17], (1, 64), 512)
    p["w23"] = u(ks[18], (64, n), 64)
    p["b23"] = u(ks[19], (1, n), 64)
    return p


def ref_forward(x, p):
    """Pure-JAX reference replicating the PyTorch forward semantics."""
    f32 = jnp.float32
    B, T, A = x.shape
    H = p["whh0"].shape[0]
    n = B

    def cell(x_t, h, c, wih, whh, b):
        g = x_t @ wih + h @ whh + b
        i = jax.nn.sigmoid(g[:, :H]); f = jax.nn.sigmoid(g[:, H:2 * H])
        gg = jnp.tanh(g[:, 2 * H:3 * H]); o = jax.nn.sigmoid(g[:, 3 * H:])
        c = f * c + i * gg
        return o * jnp.tanh(c), c

    h1 = jnp.zeros((B, H), f32); c1 = jnp.zeros((B, H), f32)
    h2 = jnp.zeros((B, H), f32); c2 = jnp.zeros((B, H), f32)
    outs = []
    for t in range(T):
        h1, c1 = cell(x[:, t, :], h1, c1, p["wih0"], p["whh0"], p["b0"])
        h2, c2 = cell(h1, h2, c2, p["wih1"], p["whh1"], p["b1"])
        outs.append(h2)
    yflat = jnp.concatenate(outs, axis=-1)                     # lstm_out.flatten(start_dim=1)
    y = jax.nn.relu(yflat @ p["w11"] + p["b11"])
    y = jax.nn.relu(y @ p["w12"] + p["b12"])
    s = jax.nn.relu(y @ p["w13"] + p["b13"])                   # (n, 1)

    a_abs = jnp.abs(s - s.T)
    rsum = jnp.sum(a_abs, axis=1, keepdims=True)
    scaling = (n - 1) - 2.0 * jnp.arange(n, dtype=f32)[:, None]
    p_max = scaling * s.T - rsum.T
    p_hat = jax.nn.softmax(p_max / 5.0, axis=-1)

    z = p_hat.reshape(1, n * n) @ p["w21"] + p["b21"]
    z = jax.nn.relu(z)
    z = jax.nn.relu(z @ p["w22"] + p["b22"])
    z = z @ p["w23"] + p["b23"]
    return jax.nn.softmax(z, axis=-1)


if __name__ == "__main__":
    num_stocks = 8        # == batch size (so x.shape[0] // num_stocks == 1)
    forecast_window = 8   # sequence length
    num_attributes = 4
    hidden_size = 32

    key = jax.random.PRNGKey(0)
    kx, kp = jax.random.split(key)
    x = jax.random.normal(kx, (num_stocks, forecast_window, num_attributes), jnp.float32)
    params = init_params(kp, num_attributes, hidden_size, forecast_window, num_stocks)

    out = jax.jit(lstm_model3_forward)(x, params)
    out = jax.block_until_ready(out)

    ref = ref_forward(x, params)
    assert out.shape == (1, num_stocks)
    assert bool(jnp.all(jnp.isfinite(out)))
    assert float(jnp.max(jnp.abs(out - ref))) < 1e-2
    print("KERNEL_OK")
</pallas_src>

<mosaic_0001>
module attributes {stable_mosaic.version = 11 : i64} {
  func.func @lstm_model3_kernel(%arg0: memref<64x4xf32, #tpu.memory_space<vmem>>, %arg1: memref<4x128xf32, #tpu.memory_space<vmem>>, %arg2: memref<1x128xf32, #tpu.memory_space<vmem>>, %arg3: memref<64x256xf32, #tpu.memory_space<vmem>>, %arg4: memref<1x256xf32, #tpu.memory_space<vmem>>, %arg5: memref<256x512xbf16, #tpu.memory_space<any>>, %arg6: memref<1x512xf32, #tpu.memory_space<vmem>>, %arg7: memref<512x64xbf16, #tpu.memory_space<any>>, %arg8: memref<1x64xf32, #tpu.memory_space<vmem>>, %arg9: memref<64x1xf32, #tpu.memory_space<vmem>>, %arg10: memref<1x1xf32, #tpu.memory_space<vmem>>, %arg11: memref<64x512xbf16, #tpu.memory_space<any>>, %arg12: memref<1x512xf32, #tpu.memory_space<vmem>>, %arg13: memref<512x64xbf16, #tpu.memory_space<any>>, %arg14: memref<1x64xf32, #tpu.memory_space<vmem>>, %arg15: memref<64x8xf32, #tpu.memory_space<vmem>>, %arg16: memref<1x8xf32, #tpu.memory_space<vmem>>, %arg17: memref<1x8xf32, #tpu.memory_space<vmem>>, %arg18: memref<256x512xbf16, #tpu.memory_space<vmem>>, %arg19: memref<512x64xbf16, #tpu.memory_space<vmem>>, %arg20: memref<64x512xbf16, #tpu.memory_space<vmem>>, %arg21: memref<512x64xbf16, #tpu.memory_space<vmem>>, %arg22: memref<4x!tpu.dma_semaphore, #tpu.memory_space<semaphore_mem>>) attributes {dimension_semantics = [], scalar_prefetch = 0 : i64, scratch_operands = 5 : i64, tpu.core_type = #tpu.core_type<tc>} {
    %c0_i32 = arith.constant 0 : i32
    %0 = tpu.memref_slice %arg22[%c0_i32] : memref<4x!tpu.dma_semaphore, #tpu.memory_space<semaphore_mem>> -> memref<1x!tpu.dma_semaphore, #tpu.memory_space<semaphore_mem>>
    %1 = tpu.memref_squeeze %0 : memref<1x!tpu.dma_semaphore, #tpu.memory_space<semaphore_mem>> -> memref<!tpu.dma_semaphore, #tpu.memory_space<semaphore_mem>>
    tpu.enqueue_dma source(%arg5 : memref<256x512xbf16, #tpu.memory_space<any>>) target(%arg18 : memref<256x512xbf16, #tpu.memory_space<vmem>>) target_semaphore(%1 : memref<!tpu.dma_semaphore, #tpu.memory_space<semaphore_mem>>)
    %c1_i32 = arith.constant 1 : i32
    %2 = tpu.memref_slice %arg22[%c1_i32] : memref<4x!tpu.dma_semaphore, #tpu.memory_space<semaphore_mem>> -> memref<1x!tpu.dma_semaphore, #tpu.memory_space<semaphore_mem>>
    %3 = tpu.memref_squeeze %2 : memref<1x!tpu.dma_semaphore, #tpu.memory_space<semaphore_mem>> -> memref<!tpu.dma_semaphore, #tpu.memory_space<semaphore_mem>>
    tpu.enqueue_dma source(%arg7 : memref<512x64xbf16, #tpu.memory_space<any>>) target(%arg19 : memref<512x64xbf16, #tpu.memory_space<vmem>>) target_semaphore(%3 : memref<!tpu.dma_semaphore, #tpu.memory_space<semaphore_mem>>)
    %c2_i32 = arith.constant 2 : i32
    %4 = tpu.memref_slice %arg22[%c2_i32] : memref<4x!tpu.dma_semaphore, #tpu.memory_space<semaphore_mem>> -> memref<1x!tpu.dma_semaphore, #tpu.memory_space<semaphore_mem>>
    %5 = tpu.memref_squeeze %4 : memref<1x!tpu.dma_semaphore, #tpu.memory_space<semaphore_mem>> -> memref<!tpu.dma_semaphore, #tpu.memory_space<semaphore_mem>>
    tpu.enqueue_dma source(%arg11 : memref<64x512xbf16, #tpu.memory_space<any>>) target(%arg20 : memref<64x512xbf16, #tpu.memory_space<vmem>>) target_semaphore(%5 : memref<!tpu.dma_semaphore, #tpu.memory_space<semaphore_mem>>)
    %c3_i32 = arith.constant 3 : i32
    %6 = tpu.memref_slice %arg22[%c3_i32] : memref<4x!tpu.dma_semaphore, #tpu.memory_space<semaphore_mem>> -> memref<1x!tpu.dma_semaphore, #tpu.memory_space<semaphore_mem>>
    %7 = tpu.memref_squeeze %6 : memref<1x!tpu.dma_semaphore, #tpu.memory_space<semaphore_mem>> -> memref<!tpu.dma_semaphore, #tpu.memory_space<semaphore_mem>>
    tpu.enqueue_dma source(%arg13 : memref<512x64xbf16, #tpu.memory_space<any>>) target(%arg21 : memref<512x64xbf16, #tpu.memory_space<vmem>>) target_semaphore(%7 : memref<!tpu.dma_semaphore, #tpu.memory_space<semaphore_mem>>)
    %c0 = arith.constant 0 : index
    %c0_0 = arith.constant 0 : index
    %8 = vector.load %arg3[%c0, %c0_0] : memref<64x256xf32, #tpu.memory_space<vmem>>, vector<64x256xf32>
    %c0_1 = arith.constant 0 : index
    %c0_2 = arith.constant 0 : index
    %9 = vector.load %arg4[%c0_1, %c0_2] : memref<1x256xf32, #tpu.memory_space<vmem>>, vector<1x256xf32>
    %c0_3 = arith.constant 0 : index
    %c0_4 = arith.constant 0 : index
    %10 = vector.load %arg0[%c0_3, %c0_4] : memref<64x4xf32, #tpu.memory_space<vmem>>, vector<64x4xf32>
    %c0_5 = arith.constant 0 : index
    %c0_6 = arith.constant 0 : index
    %11 = vector.load %arg1[%c0_5, %c0_6] : memref<4x128xf32, #tpu.memory_space<vmem>>, vector<4x128xf32>
    %cst = arith.constant dense<0.000000e+00> : vector<64x128xf32>
    %12 = tpu.matmul %10, %11, %cst {dimension_numbers = #tpu.dot_dimension_numbers<[1], [0], [0], [1], [0, 0, 1, 1], [], []>} : vector<64x4xf32>, vector<4x128xf32>, vector<64x128xf32> -> vector<64x128xf32>
    %c0_7 = arith.constant 0 : index
    %c0_8 = arith.constant 0 : index
    %13 = vector.load %arg2[%c0_7, %c0_8] : memref<1x128xf32, #tpu.memory_space<vmem>>, vector<1x128xf32>
    %14 = vector.broadcast %13 : vector<1x128xf32> to vector<64x128xf32>
    %15 = arith.addf %12, %14 : vector<64x128xf32>
    %16 = tpu.iota {dimensions = array<i32: 1>} : vector<8x128xi32>
    %c64_i32 = arith.constant 64 : i32
    %17 = vector.broadcast %c64_i32 : i32 to vector<8x128xi32>
    %18 = arith.cmpi sge, %16, %17 : vector<8x128xi32>
    %c96_i32 = arith.constant 96 : i32
    %19 = vector.broadcast %c96_i32 : i32 to vector<8x128xi32>
    %20 = arith.cmpi slt, %16, %19 : vector<8x128xi32>
    %21 = arith.andi %18, %20 : vector<8x128xi1>
    %cst_9 = arith.constant 2.000000e+00 : f32
    %cst_10 = arith.constant 1.000000e+00 : f32
    %22 = vector.broadcast %cst_9 : f32 to vector<8x128xf32>
    %23 = vector.broadcast %cst_10 : f32 to vector<8x128xf32>
    %24 = arith.select %21, %22, %23 : vector<8x128xi1>, vector<8x128xf32>
    %cst_11 = arith.constant 0.000000e+00 : f32
    %25 = vector.broadcast %cst_11 : f32 to vector<8x32xf32>
    %cst_12 = arith.constant 0.000000e+00 : f32
    %26 = vector.broadcast %cst_12 : f32 to vector<8x32xf32>
    %cst_13 = arith.constant 0.000000e+00 : f32
    %27 = vector.broadcast %cst_13 : f32 to vector<8x32xf32>
    %28 = vector.extract_strided_slice %15 {offsets = [0, 0], sizes = [8, 128], strides = [1, 1]} : vector<64x128xf32> to vector<8x128xf32>
    %29 = arith.mulf %28, %24 : vector<8x128xf32>
    %30 = arith.negf %29 : vector<8x128xf32>
    %31 = math.exp %30 : vector<8x128xf32>
    %cst_14 = arith.constant 1.000000e+00 : f32
    %32 = vector.broadcast %cst_14 : f32 to vector<8x128xf32>
    %33 = arith.addf %32, %31 : vector<8x128xf32>
    %34 = arith.divf %32, %33 : vector<8x128xf32>
    %35 = vector.extract_strided_slice %34 {offsets = [0, 0], sizes = [8, 32], strides = [1, 1]} : vector<8x128xf32> to vector<8x32xf32>
    %36 = vector.extract_strided_slice %34 {offsets = [0, 32], sizes = [8, 32], strides = [1, 1]} : vector<8x128xf32> to vector<8x32xf32>
    %37 = vector.extract_strided_slice %34 {offsets = [0, 64], sizes = [8, 32], strides = [1, 1]} : vector<8x128xf32> to vector<8x32xf32>
    %cst_15 = arith.constant 2.000000e+00 : f32
    %38 = vector.broadcast %cst_15 : f32 to vector<8x32xf32>
    %39 = arith.mulf %38, %37 : vector<8x32xf32>
    %cst_16 = arith.constant 1.000000e+00 : f32
    %40 = vector.broadcast %cst_16 : f32 to vector<8x32xf32>
    %41 = arith.subf %39, %40 : vector<8x32xf32>
    %42 = vector.extract_strided_slice %34 {offsets = [0, 96], sizes = [8, 32], strides = [1, 1]} : vector<8x128xf32> to vector<8x32xf32>
    %43 = arith.mulf %36, %25 : vector<8x32xf32>
    %44 = arith.mulf %35, %41 : vector<8x32xf32>
    %45 = arith.addf %43, %44 : vector<8x32xf32>
    %46 = math.tanh %45 : vector<8x32xf32>
    %47 = arith.mulf %42, %46 : vector<8x32xf32>
    %48 = tpu.concatenate %47, %26 in 1 : vector<8x32xf32>, vector<8x32xf32> -> vector<8x64xf32>
    %cst_17 = arith.constant dense<0.000000e+00> : vector<8x256xf32>
    %49 = tpu.matmul %48, %8, %cst_17 {dimension_numbers = #tpu.dot_dimension_numbers<[1], [0], [0], [1], [0, 0, 1, 1], [], []>} : vector<8x64xf32>, vector<64x256xf32>, vector<8x256xf32> -> vector<8x256xf32>
    %50 = vector.broadcast %9 : vector<1x256xf32> to vector<8x256xf32>
    %51 = arith.addf %49, %50 : vector<8x256xf32>
    %52 = vector.extract_strided_slice %51 {offsets = [0, 0], sizes = [8, 128], strides = [1, 1]} : vector<8x256xf32> to vector<8x128xf32>
    %53 = vector.extract_strided_slice %51 {offsets = [0, 128], sizes = [8, 128], strides = [1, 1]} : vector<8x256xf32> to vector<8x128xf32>
    %54 = arith.mulf %52, %24 : vector<8x128xf32>
    %55 = arith.negf %54 : vector<8x128xf32>
    %56 = math.exp %55 : vector<8x128xf32>
    %cst_18 = arith.constant 1.000000e+00 : f32
    %57 = vector.broadcast %cst_18 : f32 to vector<8x128xf32>
    %58 = arith.addf %57, %56 : vector<8x128xf32>
    %59 = arith.divf %57, %58 : vector<8x128xf32>
    %60 = vector.extract_strided_slice %59 {offsets = [0, 0], sizes = [8, 32], strides = [1, 1]} : vector<8x128xf32> to vector<8x32xf32>
    %61 = vector.extract_strided_slice %59 {offsets = [0, 32], sizes = [8, 32], strides = [1, 1]} : vector<8x128xf32> to vector<8x32xf32>
    %62 = vector.extract_strided_slice %59 {offsets = [0, 64], sizes = [8, 32], strides = [1, 1]} : vector<8x128xf32> to vector<8x32xf32>
    %cst_19 = arith.constant 2.000000e+00 : f32
    %63 = vector.broadcast %cst_19 : f32 to vector<8x32xf32>
    %64 = arith.mulf %63, %62 : vector<8x32xf32>
    %cst_20 = arith.constant 1.000000e+00 : f32
    %65 = vector.broadcast %cst_20 : f32 to vector<8x32xf32>
    %66 = arith.subf %64, %65 : vector<8x32xf32>
    %67 = vector.extract_strided_slice %59 {offsets = [0, 96], sizes = [8, 32], strides = [1, 1]} : vector<8x128xf32> to vector<8x32xf32>
    %68 = arith.mulf %61, %27 : vector<8x32xf32>
    %69 = arith.mulf %60, %66 : vector<8x32xf32>
    %70 = arith.addf %68, %69 : vector<8x32xf32>
    %71 = math.tanh %70 : vector<8x32xf32>
    %72 = arith.mulf %67, %71 : vector<8x32xf32>
    %73 = vector.extract_strided_slice %15 {offsets = [8, 0], sizes = [8, 128], strides = [1, 1]} : vector<64x128xf32> to vector<8x128xf32>
    %74 = arith.addf %73, %53 : vector<8x128xf32>
    %75 = arith.mulf %74, %24 : vector<8x128xf32>
    %76 = arith.negf %75 : vector<8x128xf32>
    %77 = math.exp %76 : vector<8x128xf32>
    %cst_21 = arith.constant 1.000000e+00 : f32
    %78 = vector.broadcast %cst_21 : f32 to vector<8x128xf32>
    %79 = arith.addf %78, %77 : vector<8x128xf32>
    %80 = arith.divf %78, %79 : vector<8x128xf32>
    %81 = vector.extract_strided_slice %80 {offsets = [0, 0], sizes = [8, 32], strides = [1, 1]} : vector<8x128xf32> to vector<8x32xf32>
    %82 = vector.extract_strided_slice %80 {offsets = [0, 32], sizes = [8, 32], strides = [1, 1]} : vector<8x128xf32> to vector<8x32xf32>
    %83 = vector.extract_strided_slice %80 {offsets = [0, 64], sizes = [8, 32], strides = [1, 1]} : vector<8x128xf32> to vector<8x32xf32>
    %cst_22 = arith.constant 2.000000e+00 : f32
    %84 = vector.broadcast %cst_22 : f32 to vector<8x32xf32>
    %85 = arith.mulf %84, %83 : vector<8x32xf32>
    %cst_23 = arith.constant 1.000000e+00 : f32
    %86 = vector.broadcast %cst_23 : f32 to vector<8x32xf32>
    %87 = arith.subf %85, %86 : vector<8x32xf32>
    %88 = vector.extract_strided_slice %80 {offsets = [0, 96], sizes = [8, 32], strides = [1, 1]} : vector<8x128xf32> to vector<8x32xf32>
    %89 = arith.mulf %82, %45 : vector<8x32xf32>
    %90 = arith.mulf %81, %87 : vector<8x32xf32>
    %91 = arith.addf %89, %90 : vector<8x32xf32>
    %92 = math.tanh %91 : vector<8x32xf32>
    %93 = arith.mulf %88, %92 : vector<8x32xf32>
    %94 = tpu.concatenate %93, %72 in 1 : vector<8x32xf32>, vector<8x32xf32> -> vector<8x64xf32>
    %cst_24 = arith.constant dense<0.000000e+00> : vector<8x256xf32>
    %95 = tpu.matmul %94, %8, %cst_24 {dimension_numbers = #tpu.dot_dimension_numbers<[1], [0], [0], [1], [0, 0, 1, 1], [], []>} : vector<8x64xf32>, vector<64x256xf32>, vector<8x256xf32> -> vector<8x256xf32>
    %96 = vector.broadcast %9 : vector<1x256xf32> to vector<8x256xf32>
    %97 = arith.addf %95, %96 : vector<8x256xf32>
    %98 = vector.extract_strided_slice %97 {offsets = [0, 0], sizes = [8, 128], strides = [1, 1]} : vector<8x256xf32> to vector<8x128xf32>
    %99 = vector.extract_strided_slice %97 {offsets = [0, 128], sizes = [8, 128], strides = [1, 1]} : vector<8x256xf32> to vector<8x128xf32>
    %100 = arith.mulf %98, %24 : vector<8x128xf32>
    %101 = arith.negf %100 : vector<8x128xf32>
    %102 = math.exp %101 : vector<8x128xf32>
    %cst_25 = arith.constant 1.000000e+00 : f32
    %103 = vector.broadcast %cst_25 : f32 to vector<8x128xf32>
    %104 = arith.addf %103, %102 : vector<8x128xf32>
    %105 = arith.divf %103, %104 : vector<8x128xf32>
    %106 = vector.extract_strided_slice %105 {offsets = [0, 0], sizes = [8, 32], strides = [1, 1]} : vector<8x128xf32> to vector<8x32xf32>
    %107 = vector.extract_strided_slice %105 {offsets = [0, 32], sizes = [8, 32], strides = [1, 1]} : vector<8x128xf32> to vector<8x32xf32>
    %108 = vector.extract_strided_slice %105 {offsets = [0, 64], sizes = [8, 32], strides = [1, 1]} : vector<8x128xf32> to vector<8x32xf32>
    %cst_26 = arith.constant 2.000000e+00 : f32
    %109 = vector.broadcast %cst_26 : f32 to vector<8x32xf32>
    %110 = arith.mulf %109, %108 : vector<8x32xf32>
    %cst_27 = arith.constant 1.000000e+00 : f32
    %111 = vector.broadcast %cst_27 : f32 to vector<8x32xf32>
    %112 = arith.subf %110, %111 : vector<8x32xf32>
    %113 = vector.extract_strided_slice %105 {offsets = [0, 96], sizes = [8, 32], strides = [1, 1]} : vector<8x128xf32> to vector<8x32xf32>
    %114 = arith.mulf %107, %70 : vector<8x32xf32>
    %115 = arith.mulf %106, %112 : vector<8x32xf32>
    %116 = arith.addf %114, %115 : vector<8x32xf32>
    %117 = math.tanh %116 : vector<8x32xf32>
    %118 = arith.mulf %113, %117 : vector<8x32xf32>
    %119 = vector.extract_strided_slice %15 {offsets = [16, 0], sizes = [8, 128], strides = [1, 1]} : vector<64x128xf32> to vector<8x128xf32>
    %120 = arith.addf %119, %99 : vector<8x128xf32>
    %121 = arith.mulf %120, %24 : vector<8x128xf32>
    %122 = arith.negf %121 : vector<8x128xf32>
    %123 = math.exp %122 : vector<8x128xf32>
    %cst_28 = arith.constant 1.000000e+00 : f32
    %124 = vector.broadcast %cst_28 : f32 to vector<8x128xf32>
    %125 = arith.addf %124, %123 : vector<8x128xf32>
    %126 = arith.divf %124, %125 : vector<8x128xf32>
    %127 = vector.extract_strided_slice %126 {offsets = [0, 0], sizes = [8, 32], strides = [1, 1]} : vector<8x128xf32> to vector<8x32xf32>
    %128 = vector.extract_strided_slice %126 {offsets = [0, 32], sizes = [8, 32], strides = [1, 1]} : vector<8x128xf32> to vector<8x32xf32>
    %129 = vector.extract_strided_slice %126 {offsets = [0, 64], sizes = [8, 32], strides = [1, 1]} : vector<8x128xf32> to vector<8x32xf32>
    %cst_29 = arith.constant 2.000000e+00 : f32
    %130 = vector.broadcast %cst_29 : f32 to vector<8x32xf32>
    %131 = arith.mulf %130, %129 : vector<8x32xf32>
    %cst_30 = arith.constant 1.000000e+00 : f32
    %132 = vector.broadcast %cst_30 : f32 to vector<8x32xf32>
    %133 = arith.subf %131, %132 : vector<8x32xf32>
    %134 = vector.extract_strided_slice %126 {offsets = [0, 96], sizes = [8, 32], strides = [1, 1]} : vector<8x128xf32> to vector<8x32xf32>
    %135 = arith.mulf %128, %91 : vector<8x32xf32>
    %136 = arith.mulf %127, %133 : vector<8x32xf32>
    %137 = arith.addf %135, %136 : vector<8x32xf32>
    %138 = math.tanh %137 : vector<8x32xf32>
    %139 = arith.mulf %134, %138 : vector<8x32xf32>
    %140 = tpu.concatenate %139, %118 in 1 : vector<8x32xf32>, vector<8x32xf32> -> vector<8x64xf32>
    %cst_31 = arith.constant dense<0.000000e+00> : vector<8x256xf32>
    %141 = tpu.matmul %140, %8, %cst_31 {dimension_numbers = #tpu.dot_dimension_numbers<[1], [0], [0], [1], [0, 0, 1, 1], [], []>} : vector<8x64xf32>, vector<64x256xf32>, vector<8x256xf32> -> vector<8x256xf32>
    %142 = vector.broadcast %9 : vector<1x256xf32> to vector<8x256xf32>
    %143 = arith.addf %141, %142 : vector<8x256xf32>
    %144 = vector.extract_strided_slice %143 {offsets = [0, 0], sizes = [8, 128], strides = [1, 1]} : vector<8x256xf32> to vector<8x128xf32>
    %145 = vector.extract_strided_slice %143 {offsets = [0, 128], sizes = [8, 128], strides = [1, 1]} : vector<8x256xf32> to vector<8x128xf32>
    %146 = arith.mulf %144, %24 : vector<8x128xf32>
    %147 = arith.negf %146 : vector<8x128xf32>
    %148 = math.exp %147 : vector<8x128xf32>
    %cst_32 = arith.constant 1.000000e+00 : f32
    %149 = vector.broadcast %cst_32 : f32 to vector<8x128xf32>
    %150 = arith.addf %149, %148 : vector<8x128xf32>
    %151 = arith.divf %149, %150 : vector<8x128xf32>
    %152 = vector.extract_strided_slice %151 {offsets = [0, 0], sizes = [8, 32], strides = [1, 1]} : vector<8x128xf32> to vector<8x32xf32>
    %153 = vector.extract_strided_slice %151 {offsets = [0, 32], sizes = [8, 32], strides = [1, 1]} : vector<8x128xf32> to vector<8x32xf32>
    %154 = vector.extract_strided_slice %151 {offsets = [0, 64], sizes = [8, 32], strides = [1, 1]} : vector<8x128xf32> to vector<8x32xf32>
    %cst_33 = arith.constant 2.000000e+00 : f32
    %155 = vector.broadcast %cst_33 : f32 to vector<8x32xf32>
    %156 = arith.mulf %155, %154 : vector<8x32xf32>
    %cst_34 = arith.constant 1.000000e+00 : f32
    %157 = vector.broadcast %cst_34 : f32 to vector<8x32xf32>
    %158 = arith.subf %156, %157 : vector<8x32xf32>
    %159 = vector.extract_strided_slice %151 {offsets = [0, 96], sizes = [8, 32], strides = [1, 1]} : vector<8x128xf32> to vector<8x32xf32>
    %160 = arith.mulf %153, %116 : vector<8x32xf32>
    %161 = arith.mulf %152, %158 : vector<8x32xf32>
    %162 = arith.addf %160, %161 : vector<8x32xf32>
    %163 = math.tanh %162 : vector<8x32xf32>
    %164 = arith.mulf %159, %163 : vector<8x32xf32>
    %165 = vector.extract_strided_slice %15 {offsets = [24, 0], sizes = [8, 128], strides = [1, 1]} : vector<64x128xf32> to vector<8x128xf32>
    %166 = arith.addf %165, %145 : vector<8x128xf32>
    %167 = arith.mulf %166, %24 : vector<8x128xf32>
    %168 = arith.negf %167 : vector<8x128xf32>
    %169 = math.exp %168 : vector<8x128xf32>
    %cst_35 = arith.constant 1.000000e+00 : f32
    %170 = vector.broadcast %cst_35 : f32 to vector<8x128xf32>
    %171 = arith.addf %170, %169 : vector<8x128xf32>
    %172 = arith.divf %170, %171 : vector<8x128xf32>
    %173 = vector.extract_strided_slice %172 {offsets = [0, 0], sizes = [8, 32], strides = [1, 1]} : vector<8x128xf32> to vector<8x32xf32>
    %174 = vector.extract_strided_slice %172 {offsets = [0, 32], sizes = [8, 32], strides = [1, 1]} : vector<8x128xf32> to vector<8x32xf32>
    %175 = vector.extract_strided_slice %172 {offsets = [0, 64], sizes = [8, 32], strides = [1, 1]} : vector<8x128xf32> to vector<8x32xf32>
    %cst_36 = arith.constant 2.000000e+00 : f32
    %176 = vector.broadcast %cst_36 : f32 to vector<8x32xf32>
    %177 = arith.mulf %176, %175 : vector<8x32xf32>
    %cst_37 = arith.constant 1.000000e+00 : f32
    %178 = vector.broadcast %cst_37 : f32 to vector<8x32xf32>
    %179 = arith.subf %177, %178 : vector<8x32xf32>
    %180 = vector.extract_strided_slice %172 {offsets = [0, 96], sizes = [8, 32], strides = [1, 1]} : vector<8x128xf32> to vector<8x32xf32>
    %181 = arith.mulf %174, %137 : vector<8x32xf32>
    %182 = arith.mulf %173, %179 : vector<8x32xf32>
    %183 = arith.addf %181, %182 : vector<8x32xf32>
    %184 = math.tanh %183 : vector<8x32xf32>
    %185 = arith.mulf %180, %184 : vector<8x32xf32>
    %186 = tpu.concatenate %185, %164 in 1 : vector<8x32xf32>, vector<8x32xf32> -> vector<8x64xf32>
    %cst_38 = arith.constant dense<0.000000e+00> : vector<8x256xf32>
    %187 = tpu.matmul %186, %8, %cst_38 {dimension_numbers = #tpu.dot_dimension_numbers<[1], [0], [0], [1], [0, 0, 1, 1], [], []>} : vector<8x64xf32>, vector<64x256xf32>, vector<8x256xf32> -> vector<8x256xf32>
    %188 = vector.broadcast %9 : vector<1x256xf32> to vector<8x256xf32>
    %189 = arith.addf %187, %188 : vector<8x256xf32>
    %190 = vector.extract_strided_slice %189 {offsets = [0, 0], sizes = [8, 128], strides = [1, 1]} : vector<8x256xf32> to vector<8x128xf32>
    %191 = vector.extract_strided_slice %189 {offsets = [0, 128], sizes = [8, 128], strides = [1, 1]} : vector<8x256xf32> to vector<8x128xf32>
    %192 = arith.mulf %190, %24 : vector<8x128xf32>
    %193 = arith.negf %192 : vector<8x128xf32>
    %194 = math.exp %193 : vector<8x128xf32>
    %cst_39 = arith.constant 1.000000e+00 : f32
    %195 = vector.broadcast %cst_39 : f32 to vector<8x128xf32>
    %196 = arith.addf %195, %194 : vector<8x128xf32>
    %197 = arith.divf %195, %196 : vector<8x128xf32>
    %198 = vector.extract_strided_slice %197 {offsets = [0, 0], sizes = [8, 32], strides = [1, 1]} : vector<8x128xf32> to vector<8x32xf32>
    %199 = vector.extract_strided_slice %197 {offsets = [0, 32], sizes = [8, 32], strides = [1, 1]} : vector<8x128xf32> to vector<8x32xf32>
    %200 = vector.extract_strided_slice %197 {offsets = [0, 64], sizes = [8, 32], strides = [1, 1]} : vector<8x128xf32> to vector<8x32xf32>
    %cst_40 = arith.constant 2.000000e+00 : f32
    %201 = vector.broadcast %cst_40 : f32 to vector<8x32xf32>
    %202 = arith.mulf %201, %200 : vector<8x32xf32>
    %cst_41 = arith.constant 1.000000e+00 : f32
    %203 = vector.broadcast %cst_41 : f32 to vector<8x32xf32>
    %204 = arith.subf %202, %203 : vector<8x32xf32>
    %205 = vector.extract_strided_slice %197 {offsets = [0, 96], sizes = [8, 32], strides = [1, 1]} : vector<8x128xf32> to vector<8x32xf32>
    %206 = arith.mulf %199, %162 : vector<8x32xf32>
    %207 = arith.mulf %198, %204 : vector<8x32xf32>
    %208 = arith.addf %206, %207 : vector<8x32xf32>
    %209 = math.tanh %208 : vector<8x32xf32>
    %210 = arith.mulf %205, %209 : vector<8x32xf32>
    %211 = vector.extract_strided_slice %15 {offsets = [32, 0], sizes = [8, 128], strides = [1, 1]} : vector<64x128xf32> to vector<8x128xf32>
    %212 = arith.addf %211, %191 : vector<8x128xf32>
    %213 = arith.mulf %212, %24 : vector<8x128xf32>
    %214 = arith.negf %213 : vector<8x128xf32>
    %215 = math.exp %214 : vector<8x128xf32>
    %cst_42 = arith.constant 1.000000e+00 : f32
    %216 = vector.broadcast %cst_42 : f32 to vector<8x128xf32>
    %217 = arith.addf %216, %215 : vector<8x128xf32>
    %218 = arith.divf %216, %217 : vector<8x128xf32>
    %219 = vector.extract_strided_slice %218 {offsets = [0, 0], sizes = [8, 32], strides = [1, 1]} : vector<8x128xf32> to vector<8x32xf32>
    %220 = vector.extract_strided_slice %218 {offsets = [0, 32], sizes = [8, 32], strides = [1, 1]} : vector<8x128xf32> to vector<8x32xf32>
    %221 = vector.extract_strided_slice %218 {offsets = [0, 64], sizes = [8, 32], strides = [1, 1]} : vector<8x128xf32> to vector<8x32xf32>
    %cst_43 = arith.constant 2.000000e+00 : f32
    %222 = vector.broadcast %cst_43 : f32 to vector<8x32xf32>
    %223 = arith.mulf %222, %221 : vector<8x32xf32>
    %cst_44 = arith.constant 1.000000e+00 : f32
    %224 = vector.broadcast %cst_44 : f32 to vector<8x32xf32>
    %225 = arith.subf %223, %224 : vector<8x32xf32>
    %226 = vector.extract_strided_slice %218 {offsets = [0, 96], sizes = [8, 32], strides = [1, 1]} : vector<8x128xf32> to vector<8x32xf32>
    %227 = arith.mulf %220, %183 : vector<8x32xf32>
    %228 = arith.mulf %219, %225 : vector<8x32xf32>
    %229 = arith.addf %227, %228 : vector<8x32xf32>
    %230 = math.tanh %229 : vector<8x32xf32>
    %231 = arith.mulf %226, %230 : vector<8x32xf32>
    %232 = tpu.concatenate %231, %210 in 1 : vector<8x32xf32>, vector<8x32xf32> -> vector<8x64xf32>
    %cst_45 = arith.constant dense<0.000000e+00> : vector<8x256xf32>
    %233 = tpu.matmul %232, %8, %cst_45 {dimension_numbers = #tpu.dot_dimension_numbers<[1], [0], [0], [1], [0, 0, 1, 1], [], []>} : vector<8x64xf32>, vector<64x256xf32>, vector<8x256xf32> -> vector<8x256xf32>
    %234 = vector.broadcast %9 : vector<1x256xf32> to vector<8x256xf32>
    %235 = arith.addf %233, %234 : vector<8x256xf32>
    %236 = vector.extract_strided_slice %235 {offsets = [0, 0], sizes = [8, 128], strides = [1, 1]} : vector<8x256xf32> to vector<8x128xf32>
    %237 = vector.extract_strided_slice %235 {offsets = [0, 128], sizes = [8, 128], strides = [1, 1]} : vector<8x256xf32> to vector<8x128xf32>
    %238 = arith.mulf %236, %24 : vector<8x128xf32>
    %239 = arith.negf %238 : vector<8x128xf32>
    %240 = math.exp %239 : vector<8x128xf32>
    %cst_46 = arith.constant 1.000000e+00 : f32
    %241 = vector.broadcast %cst_46 : f32 to vector<8x128xf32>
    %242 = arith.addf %241, %240 : vector<8x128xf32>
    %243 = arith.divf %241, %242 : vector<8x128xf32>
    %244 = vector.extract_strided_slice %243 {offsets = [0, 0], sizes = [8, 32], strides = [1, 1]} : vector<8x128xf32> to vector<8x32xf32>
    %245 = vector.extract_strided_slice %243 {offsets = [0, 32], sizes = [8, 32], strides = [1, 1]} : vector<8x128xf32> to vector<8x32xf32>
    %246 = vector.extract_strided_slice %243 {offsets = [0, 64], sizes = [8, 32], strides = [1, 1]} : vector<8x128xf32> to vector<8x32xf32>
    %cst_47 = arith.constant 2.000000e+00 : f32
    %247 = vector.broadcast %cst_47 : f32 to vector<8x32xf32>
    %248 = arith.mulf %247, %246 : vector<8x32xf32>
    %cst_48 = arith.constant 1.000000e+00 : f32
    %249 = vector.broadcast %cst_48 : f32 to vector<8x32xf32>
    %250 = arith.subf %248, %249 : vector<8x32xf32>
    %251 = vector.extract_strided_slice %243 {offsets = [0, 96], sizes = [8, 32], strides = [1, 1]} : vector<8x128xf32> to vector<8x32xf32>
    %252 = arith.mulf %245, %208 : vector<8x32xf32>
    %253 = arith.mulf %244, %250 : vector<8x32xf32>
    %254 = arith.addf %252, %253 : vector<8x32xf32>
    %255 = math.tanh %254 : vector<8x32xf32>
    %256 = arith.mulf %251, %255 : vector<8x32xf32>
    %257 = vector.extract_strided_slice %15 {offsets = [40, 0], sizes = [8, 128], strides = [1, 1]} : vector<64x128xf32> to vector<8x128xf32>
    %258 = arith.addf %257, %237 : vector<8x128xf32>
    %259 = arith.mulf %258, %24 : vector<8x128xf32>
    %260 = arith.negf %259 : vector<8x128xf32>
    %261 = math.exp %260 : vector<8x128xf32>
    %cst_49 = arith.constant 1.000000e+00 : f32
    %262 = vector.broadcast %cst_49 : f32 to vector<8x128xf32>
    %263 = arith.addf %262, %261 : vector<8x128xf32>
    %264 = arith.divf %262, %263 : vector<8x128xf32>
    %265 = vector.extract_strided_slice %264 {offsets = [0, 0], sizes = [8, 32], strides = [1, 1]} : vector<8x128xf32> to vector<8x32xf32>
    %266 = vector.extract_strided_slice %264 {offsets = [0, 32], sizes = [8, 32], strides = [1, 1]} : vector<8x128xf32> to vector<8x32xf32>
    %267 = vector.extract_strided_slice %264 {offsets = [0, 64], sizes = [8, 32], strides = [1, 1]} : vector<8x128xf32> to vector<8x32xf32>
    %cst_50 = arith.constant 2.000000e+00 : f32
    %268 = vector.broadcast %cst_50 : f32 to vector<8x32xf32>
    %269 = arith.mulf %268, %267 : vector<8x32xf32>
    %cst_51 = arith.constant 1.000000e+00 : f32
    %270 = vector.broadcast %cst_51 : f32 to vector<8x32xf32>
    %271 = arith.subf %269, %270 : vector<8x32xf32>
    %272 = vector.extract_strided_slice %264 {offsets = [0, 96], sizes = [8, 32], strides = [1, 1]} : vector<8x128xf32> to vector<8x32xf32>
    %273 = arith.mulf %266, %229 : vector<8x32xf32>
    %274 = arith.mulf %265, %271 : vector<8x32xf32>
    %275 = arith.addf %273, %274 : vector<8x32xf32>
    %276 = math.tanh %275 : vector<8x32xf32>
    %277 = arith.mulf %272, %276 : vector<8x32xf32>
    %278 = tpu.concatenate %277, %256 in 1 : vector<8x32xf32>, vector<8x32xf32> -> vector<8x64xf32>
    %cst_52 = arith.constant dense<0.000000e+00> : vector<8x256xf32>
    %279 = tpu.matmul %278, %8, %cst_52 {dimension_numbers = #tpu.dot_dimension_numbers<[1], [0], [0], [1], [0, 0, 1, 1], [], []>} : vector<8x64xf32>, vector<64x256xf32>, vector<8x256xf32> -> vector<8x256xf32>
    %280 = vector.broadcast %9 : vector<1x256xf32> to vector<8x256xf32>
    %281 = arith.addf %279, %280 : vector<8x256xf32>
    %282 = vector.extract_strided_slice %281 {offsets = [0, 0], sizes = [8, 128], strides = [1, 1]} : vector<8x256xf32> to vector<8x128xf32>
    %283 = vector.extract_strided_slice %281 {offsets = [0, 128], sizes = [8, 128], strides = [1, 1]} : vector<8x256xf32> to vector<8x128xf32>
    %284 = arith.mulf %282, %24 : vector<8x128xf32>
    %285 = arith.negf %284 : vector<8x128xf32>
    %286 = math.exp %285 : vector<8x128xf32>
    %cst_53 = arith.constant 1.000000e+00 : f32
    %287 = vector.broadcast %cst_53 : f32 to vector<8x128xf32>
    %288 = arith.addf %287, %286 : vector<8x128xf32>
    %289 = arith.divf %287, %288 : vector<8x128xf32>
    %290 = vector.extract_strided_slice %289 {offsets = [0, 0], sizes = [8, 32], strides = [1, 1]} : vector<8x128xf32> to vector<8x32xf32>
    %291 = vector.extract_strided_slice %289 {offsets = [0, 32], sizes = [8, 32], strides = [1, 1]} : vector<8x128xf32> to vector<8x32xf32>
    %292 = vector.extract_strided_slice %289 {offsets = [0, 64], sizes = [8, 32], strides = [1, 1]} : vector<8x128xf32> to vector<8x32xf32>
    %cst_54 = arith.constant 2.000000e+00 : f32
    %293 = vector.broadcast %cst_54 : f32 to vector<8x32xf32>
    %294 = arith.mulf %293, %292 : vector<8x32xf32>
    %cst_55 = arith.constant 1.000000e+00 : f32
    %295 = vector.broadcast %cst_55 : f32 to vector<8x32xf32>
    %296 = arith.subf %294, %295 : vector<8x32xf32>
    %297 = vector.extract_strided_slice %289 {offsets = [0, 96], sizes = [8, 32], strides = [1, 1]} : vector<8x128xf32> to vector<8x32xf32>
    %298 = arith.mulf %291, %254 : vector<8x32xf32>
    %299 = arith.mulf %290, %296 : vector<8x32xf32>
    %300 = arith.addf %298, %299 : vector<8x32xf32>
    %301 = math.tanh %300 : vector<8x32xf32>
    %302 = arith.mulf %297, %301 : vector<8x32xf32>
    %303 = vector.extract_strided_slice %15 {offsets = [48, 0], sizes = [8, 128], strides = [1, 1]} : vector<64x128xf32> to vector<8x128xf32>
    %304 = arith.addf %303, %283 : vector<8x128xf32>
    %305 = arith.mulf %304, %24 : vector<8x128xf32>
    %306 = arith.negf %305 : vector<8x128xf32>
    %307 = math.exp %306 : vector<8x128xf32>
    %cst_56 = arith.constant 1.000000e+00 : f32
    %308 = vector.broadcast %cst_56 : f32 to vector<8x128xf32>
    %309 = arith.addf %308, %307 : vector<8x128xf32>
    %310 = arith.divf %308, %309 : vector<8x128xf32>
    %311 = vector.extract_strided_slice %310 {offsets = [0, 0], sizes = [8, 32], strides = [1, 1]} : vector<8x128xf32> to vector<8x32xf32>
    %312 = vector.extract_strided_slice %310 {offsets = [0, 32], sizes = [8, 32], strides = [1, 1]} : vector<8x128xf32> to vector<8x32xf32>
    %313 = vector.extract_strided_slice %310 {offsets = [0, 64], sizes = [8, 32], strides = [1, 1]} : vector<8x128xf32> to vector<8x32xf32>
    %cst_57 = arith.constant 2.000000e+00 : f32
    %314 = vector.broadcast %cst_57 : f32 to vector<8x32xf32>
    %315 = arith.mulf %314, %313 : vector<8x32xf32>
    %cst_58 = arith.constant 1.000000e+00 : f32
    %316 = vector.broadcast %cst_58 : f32 to vector<8x32xf32>
    %317 = arith.subf %315, %316 : vector<8x32xf32>
    %318 = vector.extract_strided_slice %310 {offsets = [0, 96], sizes = [8, 32], strides = [1, 1]} : vector<8x128xf32> to vector<8x32xf32>
    %319 = arith.mulf %312, %275 : vector<8x32xf32>
    %320 = arith.mulf %311, %317 : vector<8x32xf32>
    %321 = arith.addf %319, %320 : vector<8x32xf32>
    %322 = math.tanh %321 : vector<8x32xf32>
    %323 = arith.mulf %318, %322 : vector<8x32xf32>
    %324 = tpu.concatenate %323, %302 in 1 : vector<8x32xf32>, vector<8x32xf32> -> vector<8x64xf32>
    %cst_59 = arith.constant dense<0.000000e+00> : vector<8x256xf32>
    %325 = tpu.matmul %324, %8, %cst_59 {dimension_numbers = #tpu.dot_dimension_numbers<[1], [0], [0], [1], [0, 0, 1, 1], [], []>} : vector<8x64xf32>, vector<64x256xf32>, vector<8x256xf32> -> vector<8x256xf32>
    %326 = vector.broadcast %9 : vector<1x256xf32> to vector<8x256xf32>
    %327 = arith.addf %325, %326 : vector<8x256xf32>
    %328 = vector.extract_strided_slice %327 {offsets = [0, 0], sizes = [8, 128], strides = [1, 1]} : vector<8x256xf32> to vector<8x128xf32>
    %329 = vector.extract_strided_slice %327 {offsets = [0, 128], sizes = [8, 128], strides = [1, 1]} : vector<8x256xf32> to vector<8x128xf32>
    %330 = arith.mulf %328, %24 : vector<8x128xf32>
    %331 = arith.negf %330 : vector<8x128xf32>
    %332 = math.exp %331 : vector<8x128xf32>
    %cst_60 = arith.constant 1.000000e+00 : f32
    %333 = vector.broadcast %cst_60 : f32 to vector<8x128xf32>
    %334 = arith.addf %333, %332 : vector<8x128xf32>
    %335 = arith.divf %333, %334 : vector<8x128xf32>
    %336 = vector.extract_strided_slice %335 {offsets = [0, 0], sizes = [8, 32], strides = [1, 1]} : vector<8x128xf32> to vector<8x32xf32>
    %337 = vector.extract_strided_slice %335 {offsets = [0, 32], sizes = [8, 32], strides = [1, 1]} : vector<8x128xf32> to vector<8x32xf32>
    %338 = vector.extract_strided_slice %335 {offsets = [0, 64], sizes = [8, 32], strides = [1, 1]} : vector<8x128xf32> to vector<8x32xf32>
    %cst_61 = arith.constant 2.000000e+00 : f32
    %339 = vector.broadcast %cst_61 : f32 to vector<8x32xf32>
    %340 = arith.mulf %339, %338 : vector<8x32xf32>
    %cst_62 = arith.constant 1.000000e+00 : f32
    %341 = vector.broadcast %cst_62 : f32 to vector<8x32xf32>
    %342 = arith.subf %340, %341 : vector<8x32xf32>
    %343 = vector.extract_strided_slice %335 {offsets = [0, 96], sizes = [8, 32], strides = [1, 1]} : vector<8x128xf32> to vector<8x32xf32>
    %344 = arith.mulf %337, %300 : vector<8x32xf32>
    %345 = arith.mulf %336, %342 : vector<8x32xf32>
    %346 = arith.addf %344, %345 : vector<8x32xf32>
    %347 = math.tanh %346 : vector<8x32xf32>
    %348 = arith.mulf %343, %347 : vector<8x32xf32>
    %349 = vector.extract_strided_slice %15 {offsets = [56, 0], sizes = [8, 128], strides = [1, 1]} : vector<64x128xf32> to vector<8x128xf32>
    %350 = arith.addf %349, %329 : vector<8x128xf32>
    %351 = arith.mulf %350, %24 : vector<8x128xf32>
    %352 = arith.negf %351 : vector<8x128xf32>
    %353 = math.exp %352 : vector<8x128xf32>
    %cst_63 = arith.constant 1.000000e+00 : f32
    %354 = vector.broadcast %cst_63 : f32 to vector<8x128xf32>
    %355 = arith.addf %354, %353 : vector<8x128xf32>
    %356 = arith.divf %354, %355 : vector<8x128xf32>
    %357 = vector.extract_strided_slice %356 {offsets = [0, 0], sizes = [8, 32], strides = [1, 1]} : vector<8x128xf32> to vector<8x32xf32>
    %358 = vector.extract_strided_slice %356 {offsets = [0, 32], sizes = [8, 32], strides = [1, 1]} : vector<8x128xf32> to vector<8x32xf32>
    %359 = vector.extract_strided_slice %356 {offsets = [0, 64], sizes = [8, 32], strides = [1, 1]} : vector<8x128xf32> to vector<8x32xf32>
    %cst_64 = arith.constant 2.000000e+00 : f32
    %360 = vector.broadcast %cst_64 : f32 to vector<8x32xf32>
    %361 = arith.mulf %360, %359 : vector<8x32xf32>
    %cst_65 = arith.constant 1.000000e+00 : f32
    %362 = vector.broadcast %cst_65 : f32 to vector<8x32xf32>
    %363 = arith.subf %361, %362 : vector<8x32xf32>
    %364 = vector.extract_strided_slice %356 {offsets = [0, 96], sizes = [8, 32], strides = [1, 1]} : vector<8x128xf32> to vector<8x32xf32>
    %365 = arith.mulf %358, %321 : vector<8x32xf32>
    %366 = arith.mulf %357, %363 : vector<8x32xf32>
    %367 = arith.addf %365, %366 : vector<8x32xf32>
    %368 = math.tanh %367 : vector<8x32xf32>
    %369 = arith.mulf %364, %368 : vector<8x32xf32>
    %370 = tpu.concatenate %369, %348 in 1 : vector<8x32xf32>, vector<8x32xf32> -> vector<8x64xf32>
    %cst_66 = arith.constant dense<0.000000e+00> : vector<8x256xf32>
    %371 = tpu.matmul %370, %8, %cst_66 {dimension_numbers = #tpu.dot_dimension_numbers<[1], [0], [0], [1], [0, 0, 1, 1], [], []>} : vector<8x64xf32>, vector<64x256xf32>, vector<8x256xf32> -> vector<8x256xf32>
    %372 = vector.broadcast %9 : vector<1x256xf32> to vector<8x256xf32>
    %373 = arith.addf %371, %372 : vector<8x256xf32>
    %374 = vector.extract_strided_slice %373 {offsets = [0, 0], sizes = [8, 128], strides = [1, 1]} : vector<8x256xf32> to vector<8x128xf32>
    %375 = arith.mulf %374, %24 : vector<8x128xf32>
    %376 = arith.negf %375 : vector<8x128xf32>
    %377 = math.exp %376 : vector<8x128xf32>
    %cst_67 = arith.constant 1.000000e+00 : f32
    %378 = vector.broadcast %cst_67 : f32 to vector<8x128xf32>
    %379 = arith.addf %378, %377 : vector<8x128xf32>
    %380 = arith.divf %378, %379 : vector<8x128xf32>
    %381 = vector.extract_strided_slice %380 {offsets = [0, 0], sizes = [8, 32], strides = [1, 1]} : vector<8x128xf32> to vector<8x32xf32>
    %382 = vector.extract_strided_slice %380 {offsets = [0, 32], sizes = [8, 32], strides = [1, 1]} : vector<8x128xf32> to vector<8x32xf32>
    %383 = vector.extract_strided_slice %380 {offsets = [0, 64], sizes = [8, 32], strides = [1, 1]} : vector<8x128xf32> to vector<8x32xf32>
    %cst_68 = arith.constant 2.000000e+00 : f32
    %384 = vector.broadcast %cst_68 : f32 to vector<8x32xf32>
    %385 = arith.mulf %384, %383 : vector<8x32xf32>
    %cst_69 = arith.constant 1.000000e+00 : f32
    %386 = vector.broadcast %cst_69 : f32 to vector<8x32xf32>
    %387 = arith.subf %385, %386 : vector<8x32xf32>
    %388 = vector.extract_strided_slice %380 {offsets = [0, 96], sizes = [8, 32], strides = [1, 1]} : vector<8x128xf32> to vector<8x32xf32>
    %389 = arith.mulf %382, %346 : vector<8x32xf32>
    %390 = arith.mulf %381, %387 : vector<8x32xf32>
    %391 = arith.addf %389, %390 : vector<8x32xf32>
    %392 = math.tanh %391 : vector<8x32xf32>
    %393 = arith.mulf %388, %392 : vector<8x32xf32>
    %394 = tpu.concatenate %72, %118, %164, %210, %256, %302, %348, %393 in 1 : vector<8x32xf32>, vector<8x32xf32>, vector<8x32xf32>, vector<8x32xf32>, vector<8x32xf32>, vector<8x32xf32>, vector<8x32xf32>, vector<8x32xf32> -> vector<8x256xf32>
    %c0_i32_70 = arith.constant 0 : i32
    %395 = tpu.memref_slice %arg22[%c0_i32_70] : memref<4x!tpu.dma_semaphore, #tpu.memory_space<semaphore_mem>> -> memref<1x!tpu.dma_semaphore, #tpu.memory_space<semaphore_mem>>
    %396 = tpu.memref_squeeze %395 : memref<1x!tpu.dma_semaphore, #tpu.memory_space<semaphore_mem>> -> memref<!tpu.dma_semaphore, #tpu.memory_space<semaphore_mem>>
    tpu.wait_dma2 semaphore(%396 : memref<!tpu.dma_semaphore, #tpu.memory_space<semaphore_mem>>) src(%arg5 : memref<256x512xbf16, #tpu.memory_space<any>>) dst(%arg18 : memref<256x512xbf16, #tpu.memory_space<vmem>>)
    %397 = arith.truncf %394 : vector<8x256xf32> to vector<8x256xbf16>
    %c0_71 = arith.constant 0 : index
    %c0_72 = arith.constant 0 : index
    %398 = vector.load %arg18[%c0_71, %c0_72] : memref<256x512xbf16, #tpu.memory_space<vmem>>, vector<256x512xbf16>
    %cst_73 = arith.constant dense<0.000000e+00> : vector<8x512xf32>
    %399 = tpu.matmul %397, %398, %cst_73 {dimension_numbers = #tpu.dot_dimension_numbers<[1], [0], [0], [1], [0, 0, 1, 1], [], []>} : vector<8x256xbf16>, vector<256x512xbf16>, vector<8x512xf32> -> vector<8x512xf32>
    %c0_74 = arith.constant 0 : index
    %c0_75 = arith.constant 0 : index
    %400 = vector.load %arg6[%c0_74, %c0_75] : memref<1x512xf32, #tpu.memory_space<vmem>>, vector<1x512xf32>
    %401 = vector.broadcast %400 : vector<1x512xf32> to vector<8x512xf32>
    %402 = arith.addf %399, %401 : vector<8x512xf32>
    %cst_76 = arith.constant 0.000000e+00 : f32
    %403 = vector.broadcast %cst_76 : f32 to vector<8x512xf32>
    %404 = arith.maximumf %402, %403 : vector<8x512xf32>
    %c1_i32_77 = arith.constant 1 : i32
    %405 = tpu.memref_slice %arg22[%c1_i32_77] : memref<4x!tpu.dma_semaphore, #tpu.memory_space<semaphore_mem>> -> memref<1x!tpu.dma_semaphore, #tpu.memory_space<semaphore_mem>>
    %406 = tpu.memref_squeeze %405 : memref<1x!tpu.dma_semaphore, #tpu.memory_space<semaphore_mem>> -> memref<!tpu.dma_semaphore, #tpu.memory_space<semaphore_mem>>
    tpu.wait_dma2 semaphore(%406 : memref<!tpu.dma_semaphore, #tpu.memory_space<semaphore_mem>>) src(%arg7 : memref<512x64xbf16, #tpu.memory_space<any>>) dst(%arg19 : memref<512x64xbf16, #tpu.memory_space<vmem>>)
    %407 = arith.truncf %404 : vector<8x512xf32> to vector<8x512xbf16>
    %c0_78 = arith.constant 0 : index
    %c0_79 = arith.constant 0 : index
    %408 = vector.load %arg19[%c0_78, %c0_79] : memref<512x64xbf16, #tpu.memory_space<vmem>>, vector<512x64xbf16>
    %cst_80 = arith.constant dense<0.000000e+00> : vector<8x64xf32>
    %409 = tpu.matmul %407, %408, %cst_80 {dimension_numbers = #tpu.dot_dimension_numbers<[1], [0], [0], [1], [0, 0, 1, 1], [], []>} : vector<8x512xbf16>, vector<512x64xbf16>, vector<8x64xf32> -> vector<8x64xf32>
    %c0_81 = arith.constant 0 : index
    %c0_82 = arith.constant 0 : index
    %410 = vector.load %arg8[%c0_81, %c0_82] : memref<1x64xf32, #tpu.memory_space<vmem>>, vector<1x64xf32>
    %411 = vector.broadcast %410 : vector<1x64xf32> to vector<8x64xf32>
    %412 = arith.addf %409, %411 : vector<8x64xf32>
    %cst_83 = arith.constant 0.000000e+00 : f32
    %413 = vector.broadcast %cst_83 : f32 to vector<8x64xf32>
    %414 = arith.maximumf %412, %413 : vector<8x64xf32>
    %c0_84 = arith.constant 0 : index
    %c0_85 = arith.constant 0 : index
    %415 = vector.load %arg9[%c0_84, %c0_85] : memref<64x1xf32, #tpu.memory_space<vmem>>, vector<64x1xf32>
    %cst_86 = arith.constant dense<0.000000e+00> : vector<8x1xf32>
    %416 = tpu.matmul %414, %415, %cst_86 {dimension_numbers = #tpu.dot_dimension_numbers<[1], [0], [0], [1], [0, 0, 1, 1], [], []>} : vector<8x64xf32>, vector<64x1xf32>, vector<8x1xf32> -> vector<8x1xf32>
    %c0_87 = arith.constant 0 : index
    %c0_88 = arith.constant 0 : index
    %417 = vector.load %arg10[%c0_87, %c0_88] : memref<1x1xf32, #tpu.memory_space<vmem>>, vector<1x1xf32>
    %418 = vector.broadcast %417 : vector<1x1xf32> to vector<8x1xf32>
    %419 = arith.addf %416, %418 : vector<8x1xf32>
    %cst_89 = arith.constant 0.000000e+00 : f32
    %420 = vector.broadcast %cst_89 : f32 to vector<8x1xf32>
    %421 = arith.maximumf %419, %420 : vector<8x1xf32>
    %422 = tpu.iota {dimensions = array<i32: 0>} : vector<8x8xi32>
    %423 = tpu.iota {dimensions = array<i32: 1>} : vector<8x8xi32>
    %424 = arith.cmpi eq, %422, %423 : vector<8x8xi32>
    %425 = arith.extui %424 : vector<8x8xi1> to vector<8x8xi32>
    %426 = arith.sitofp %425 : vector<8x8xi32> to vector<8x8xf32>
    %427 = vector.broadcast %421 : vector<8x1xf32> to vector<8x8xf32>
    %428 = arith.mulf %426, %427 : vector<8x8xf32>
    %cst_90 = arith.constant dense<0.000000e+00> : vector<8xf32>
    %429 = vector.multi_reduction <add>, %428, %cst_90 [0] : vector<8x8xf32> to vector<8xf32>
    %430 = vector.shape_cast %429 : vector<8xf32> to vector<1x8xf32>
    %431 = vector.broadcast %421 : vector<8x1xf32> to vector<8x8xf32>
    %432 = vector.broadcast %430 : vector<1x8xf32> to vector<8x8xf32>
    %433 = arith.subf %431, %432 : vector<8x8xf32>
    %434 = math.absf %433 : vector<8x8xf32>
    %cst_91 = arith.constant dense<0.000000e+00> : vector<8xf32>
    %435 = vector.multi_reduction <add>, %434, %cst_91 [0] : vector<8x8xf32> to vector<8xf32>
    %436 = vector.shape_cast %435 : vector<8xf32> to vector<1x8xf32>
    %437 = tpu.iota {dimensions = array<i32: 0>} : vector<8x1xi32>
    %438 = arith.sitofp %437 : vector<8x1xi32> to vector<8x1xf32>
    %cst_92 = arith.constant 2.000000e+00 : f32
    %439 = vector.broadcast %cst_92 : f32 to vector<8x1xf32>
    %440 = arith.mulf %439, %438 : vector<8x1xf32>
    %cst_93 = arith.constant 7.000000e+00 : f32
    %441 = vector.broadcast %cst_93 : f32 to vector<8x1xf32>
    %442 = arith.subf %441, %440 : vector<8x1xf32>
    %443 = vector.broadcast %442 : vector<8x1xf32> to vector<8x8xf32>
    %444 = vector.broadcast %430 : vector<1x8xf32> to vector<8x8xf32>
    %445 = arith.mulf %443, %444 : vector<8x8xf32>
    %446 = vector.broadcast %436 : vector<1x8xf32> to vector<8x8xf32>
    %447 = arith.subf %445, %446 : vector<8x8xf32>
    %cst_94 = arith.constant 5.000000e+00 : f32
    %448 = vector.broadcast %cst_94 : f32 to vector<8x8xf32>
    %449 = arith.divf %447, %448 : vector<8x8xf32>
    %cst_95 = arith.constant dense<0xFF800000> : vector<8xf32>
    %450 = vector.multi_reduction <maximumf>, %449, %cst_95 [1] : vector<8x8xf32> to vector<8xf32>
    %cst_96 = arith.constant 0xFF800000 : f32
    %451 = vector.broadcast %cst_96 : f32 to vector<8xf32>
    %452 = arith.maximumf %451, %450 : vector<8xf32>
    %453 = vector.shape_cast %452 : vector<8xf32> to vector<8x1xf32>
    %454 = vector.broadcast %453 : vector<8x1xf32> to vector<8x8xf32>
    %455 = arith.subf %449, %454 : vector<8x8xf32>
    %456 = math.exp %455 : vector<8x8xf32>
    %cst_97 = arith.constant dense<0.000000e+00> : vector<8xf32>
    %457 = vector.multi_reduction <add>, %456, %cst_97 [1] : vector<8x8xf32> to vector<8xf32>
    %458 = vector.shape_cast %457 : vector<8xf32> to vector<8x1xf32>
    %459 = vector.broadcast %458 : vector<8x1xf32> to vector<8x8xf32>
    %460 = arith.divf %456, %459 : vector<8x8xf32>
    %461 = tpu.concatenate %460, %460, %460, %460, %460, %460, %460, %460 in 1 : vector<8x8xf32>, vector<8x8xf32>, vector<8x8xf32>, vector<8x8xf32>, vector<8x8xf32>, vector<8x8xf32>, vector<8x8xf32>, vector<8x8xf32> -> vector<8x64xf32>
    %462 = tpu.iota {dimensions = array<i32: 1>} : vector<8x64xi32>
    %463 = tpu.iota {dimensions = array<i32: 0>} : vector<8x64xi32>
    %c8_i32 = arith.constant 8 : i32
    %464 = vector.broadcast %c8_i32 : i32 to vector<8x64xi32>
    %465 = arith.muli %463, %464 : vector<8x64xi32>
    %466 = arith.cmpi sge, %462, %465 : vector<8x64xi32>
    %c1_i32_98 = arith.constant 1 : i32
    %467 = vector.broadcast %c1_i32_98 : i32 to vector<8x64xi32>
    %468 = arith.addi %463, %467 : vector<8x64xi32>
    %c8_i32_99 = arith.constant 8 : i32
    %469 = vector.broadcast %c8_i32_99 : i32 to vector<8x64xi32>
    %470 = arith.muli %468, %469 : vector<8x64xi32>
    %471 = arith.cmpi slt, %462, %470 : vector<8x64xi32>
    %472 = arith.andi %466, %471 : vector<8x64xi1>
    %cst_100 = arith.constant 0.000000e+00 : f32
    %473 = vector.broadcast %cst_100 : f32 to vector<8x64xf32>
    %474 = arith.select %472, %461, %473 : vector<8x64xi1>, vector<8x64xf32>
    %cst_101 = arith.constant dense<0.000000e+00> : vector<64xf32>
    %475 = vector.multi_reduction <add>, %474, %cst_101 [0] : vector<8x64xf32> to vector<64xf32>
    %476 = vector.shape_cast %475 : vector<64xf32> to vector<1x64xf32>
    %c2_i32_102 = arith.constant 2 : i32
    %477 = tpu.memref_slice %arg22[%c2_i32_102] : memref<4x!tpu.dma_semaphore, #tpu.memory_space<semaphore_mem>> -> memref<1x!tpu.dma_semaphore, #tpu.memory_space<semaphore_mem>>
    %478 = tpu.memref_squeeze %477 : memref<1x!tpu.dma_semaphore, #tpu.memory_space<semaphore_mem>> -> memref<!tpu.dma_semaphore, #tpu.memory_space<semaphore_mem>>
    tpu.wait_dma2 semaphore(%478 : memref<!tpu.dma_semaphore, #tpu.memory_space<semaphore_mem>>) src(%arg11 : memref<64x512xbf16, #tpu.memory_space<any>>) dst(%arg20 : memref<64x512xbf16, #tpu.memory_space<vmem>>)
    %479 = arith.truncf %476 : vector<1x64xf32> to vector<1x64xbf16>
    %c0_103 = arith.constant 0 : index
    %c0_104 = arith.constant 0 : index
    %480 = vector.load %arg20[%c0_103, %c0_104] : memref<64x512xbf16, #tpu.memory_space<vmem>>, vector<64x512xbf16>
    %cst_105 = arith.constant dense<0.000000e+00> : vector<1x512xf32>
    %481 = tpu.matmul %479, %480, %cst_105 {dimension_numbers = #tpu.dot_dimension_numbers<[1], [0], [0], [1], [0, 0, 1, 1], [], []>} : vector<1x64xbf16>, vector<64x512xbf16>, vector<1x512xf32> -> vector<1x512xf32>
    %c0_106 = arith.constant 0 : index
    %c0_107 = arith.constant 0 : index
    %482 = vector.load %arg12[%c0_106, %c0_107] : memref<1x512xf32, #tpu.memory_space<vmem>>, vector<1x512xf32>
    %483 = arith.addf %481, %482 : vector<1x512xf32>
    %cst_108 = arith.constant 0.000000e+00 : f32
    %484 = vector.broadcast %cst_108 : f32 to vector<1x512xf32>
    %485 = arith.maximumf %483, %484 : vector<1x512xf32>
    %c3_i32_109 = arith.constant 3 : i32
    %486 = tpu.memref_slice %arg22[%c3_i32_109] : memref<4x!tpu.dma_semaphore, #tpu.memory_space<semaphore_mem>> -> memref<1x!tpu.dma_semaphore, #tpu.memory_space<semaphore_mem>>
    %487 = tpu.memref_squeeze %486 : memref<1x!tpu.dma_semaphore, #tpu.memory_space<semaphore_mem>> -> memref<!tpu.dma_semaphore, #tpu.memory_space<semaphore_mem>>
    tpu.wait_dma2 semaphore(%487 : memref<!tpu.dma_semaphore, #tpu.memory_space<semaphore_mem>>) src(%arg13 : memref<512x64xbf16, #tpu.memory_space<any>>) dst(%arg21 : memref<512x64xbf16, #tpu.memory_space<vmem>>)
    %488 = arith.truncf %485 : vector<1x512xf32> to vector<1x512xbf16>
    %c0_110 = arith.constant 0 : index
    %c0_111 = arith.constant 0 : index
    %489 = vector.load %arg21[%c0_110, %c0_111] : memref<512x64xbf16, #tpu.memory_space<vmem>>, vector<512x64xbf16>
    %cst_112 = arith.constant dense<0.000000e+00> : vector<1x64xf32>
    %490 = tpu.matmul %488, %489, %cst_112 {dimension_numbers = #tpu.dot_dimension_numbers<[1], [0], [0], [1], [0, 0, 1, 1], [], []>} : vector<1x512xbf16>, vector<512x64xbf16>, vector<1x64xf32> -> vector<1x64xf32>
    %c0_113 = arith.constant 0 : index
    %c0_114 = arith.constant 0 : index
    %491 = vector.load %arg14[%c0_113, %c0_114] : memref<1x64xf32, #tpu.memory_space<vmem>>, vector<1x64xf32>
    %492 = arith.addf %490, %491 : vector<1x64xf32>
    %cst_115 = arith.constant 0.000000e+00 : f32
    %493 = vector.broadcast %cst_115 : f32 to vector<1x64xf32>
    %494 = arith.maximumf %492, %493 : vector<1x64xf32>
    %c0_116 = arith.constant 0 : index
    %c0_117 = arith.constant 0 : index
    %495 = vector.load %arg15[%c0_116, %c0_117] : memref<64x8xf32, #tpu.memory_space<vmem>>, vector<64x8xf32>
    %cst_118 = arith.constant dense<0.000000e+00> : vector<1x8xf32>
    %496 = tpu.matmul %494, %495, %cst_118 {dimension_numbers = #tpu.dot_dimension_numbers<[1], [0], [0], [1], [0, 0, 1, 1], [], []>} : vector<1x64xf32>, vector<64x8xf32>, vector<1x8xf32> -> vector<1x8xf32>
    %c0_119 = arith.constant 0 : index
    %c0_120 = arith.constant 0 : index
    %497 = vector.load %arg16[%c0_119, %c0_120] : memref<1x8xf32, #tpu.memory_space<vmem>>, vector<1x8xf32>
    %498 = arith.addf %496, %497 : vector<1x8xf32>
    %cst_121 = arith.constant dense<0xFF800000> : vector<1xf32>
    %499 = vector.multi_reduction <maximumf>, %498, %cst_121 [1] : vector<1x8xf32> to vector<1xf32>
    %cst_122 = arith.constant 0xFF800000 : f32
    %500 = vector.broadcast %cst_122 : f32 to vector<1xf32>
    %501 = arith.maximumf %500, %499 : vector<1xf32>
    %502 = vector.shape_cast %501 : vector<1xf32> to vector<1x1xf32>
    %503 = vector.broadcast %502 : vector<1x1xf32> to vector<1x8xf32>
    %504 = arith.subf %498, %503 : vector<1x8xf32>
    %505 = math.exp %504 : vector<1x8xf32>
    %cst_123 = arith.constant dense<0.000000e+00> : vector<1xf32>
    %506 = vector.multi_reduction <add>, %505, %cst_123 [1] : vector<1x8xf32> to vector<1xf32>
    %507 = vector.shape_cast %506 : vector<1xf32> to vector<1x1xf32>
    %508 = vector.broadcast %507 : vector<1x1xf32> to vector<1x8xf32>
    %509 = arith.divf %505, %508 : vector<1x8xf32>
    %c0_124 = arith.constant 0 : index
    %c0_125 = arith.constant 0 : index
    %510 = vector.load %arg17[%c0_124, %c0_125] : memref<1x8xf32, #tpu.memory_space<vmem>>, vector<1x8xf32>
    tpu.vector_store %arg17[%c0_124, %c0_125], %509 {strides = array<i32>} : memref<1x8xf32, #tpu.memory_space<vmem>>, vector<1x8xf32>,
    return
  }
}

</mosaic_0001>

<llo_original>
// kernel: lstm_model3_forward.1
$region0: #{lstm_model3_forward.1}
  #allocation0 [shape = 'u32[]', space=smem, size = 0x4, offset = 0x4, fixed_abs, tag = 'smem constant byte address 0x4 - core index']
  #allocation1 [shape = 'u32[144,128]{1,0:T(1,128)}', space=vmem, size = 0x12000, scoped, tag = 'internal scratch']
  #allocation2 [shape = 'bf16[256,512]{1,0:T(16,128)(2,1)}', space=vmem, size = 0x40000, scoped, tag = 'scratch operand']
  #allocation3 [shape = 'bf16[512,64]{1,0:T(16,128)(2,1)}', space=vmem, size = 0x20000, scoped, tag = 'scratch operand']
  #allocation4 [shape = 'bf16[64,512]{1,0:T(16,128)(2,1)}', space=vmem, size = 0x10000, scoped, tag = 'scratch operand']
  #allocation5 [shape = 'bf16[512,64]{1,0:T(16,128)(2,1)}', space=vmem, size = 0x20000, scoped, tag = 'scratch operand']
  #allocation6 [shape = 's32[4]{0}', space=sflag, size = 0x10, scoped, tag = 'scratch operand']
  #allocation7 [shape = 'f32[1,1]{1,0:T(1,128)S(1)}', space=vmem, size = 0x200, scoped, tag = 'scoped memory for lstm_model3_forward.1']
  #allocation10 [shape = 's32[]', space=sflag, size = 0x4, offset = 0, fixed_abs, tag = 'sflag constant byte address 0x0 - dummy sync flag']
  #allocation11 [shape = 's32[]', space=sflag, size = 0x4, offset = 0, fixed_abs, tag = 'sflag constant byte address 0x0 - dummy sync flag']
  #allocation12 [shape = 's32[]', space=sflag, size = 0x4, offset = 0, fixed_abs, tag = 'sflag constant byte address 0x0 - dummy sync flag']
  #allocation13 [shape = 's32[]', space=sflag, size = 0x4, offset = 0, fixed_abs, tag = 'sflag constant byte address 0x0 - dummy sync flag']
  %s0 = inlined_call_operand.vmem [shape: f32[64,4], index: 0, kind: input, shape index: {}]
  %s1 = inlined_call_operand.vmem [shape: f32[4,128], index: 1, kind: input, shape index: {}]
  %s2 = inlined_call_operand.vmem [shape: f32[1,128], index: 2, kind: input, shape index: {}]
  %s3 = inlined_call_operand.vmem [shape: f32[64,256], index: 3, kind: input, shape index: {}]
  %s4 = inlined_call_operand.vmem [shape: f32[1,256], index: 4, kind: input, shape index: {}]
  %s5 = inlined_call_operand.vmem [shape: bf16[256,512], index: 5, kind: input, shape index: {}]
  %s6 = inlined_call_operand.vmem [shape: f32[1,512], index: 6, kind: input, shape index: {}]
  %s7 = inlined_call_operand.vmem [shape: bf16[512,64], index: 7, kind: input, shape index: {}]
  %s8 = inlined_call_operand.vmem [shape: f32[1,64], index: 8, kind: input, shape index: {}]
  %s9 = inlined_call_operand.vmem [shape: f32[64,1], index: 9, kind: input, shape index: {}]
  %s10 = inlined_call_operand.<no memory space> [shape: f32[1,1], index: 10, kind: input, shape index: {}]
  %s11 = inlined_call_operand.vmem [shape: bf16[64,512], index: 11, kind: input, shape index: {}]
  %s12 = inlined_call_operand.vmem [shape: f32[1,512], index: 12, kind: input, shape index: {}]
  %s13 = inlined_call_operand.vmem [shape: bf16[512,64], index: 13, kind: input, shape index: {}]
  %s14 = inlined_call_operand.vmem [shape: f32[1,64], index: 14, kind: input, shape index: {}]
  %s15 = inlined_call_operand.vmem [shape: f32[64,8], index: 15, kind: input, shape index: {}]
  %s16 = inlined_call_operand.vmem [shape: f32[1,8], index: 16, kind: input, shape index: {}]
  %s17 = inlined_call_operand.hbm [shape: f32[1,8], index: 17, kind: output, shape index: {}]
  %s18 = sld [smem:[#allocation0]]
  $region204: #{lstm_model3_forward.1} parent=0
    _
  %s20 = ssub.s32 1, %s18
  %s21 = scalar_select 0, %s20, %s18
  %v22 = vstv %s10
  %23 = vst [vmem:[#allocation7] sm:$0x1] %v22
  $region1: #{lstm_model3_forward.1} parent=0
    #allocation8 [shape = 'u8[512]{0}', space=vmem, size = 0x400, scoped, tag = 'output window, operand 0, single buffered']
    #allocation9 [shape = 's32[1]{0}', space=sflag, size = 0x4, scoped, tag = 'scoped memory for lstm_model3_forward.1']
    %24 = vsyncpa [#allocation9], 0
    // Predicated region
    $region2: #{lstm_model3_forward.1} parent=1 // pred_check
      _
    $region3: #{lstm_model3_forward.1} parent=1 // pred_check_branch
      %26 = sbr.rel (0) target = $region5
    $region4: #{lstm_model3_forward.1} parent=1 // pred_region
      _
    $region5: #{lstm_model3_forward.1} parent=1 // pred_fallthru
      _
    // Predicated region
    $region6: #{lstm_model3_forward.1} parent=1 // pred_check
      _
    $region7: #{lstm_model3_forward.1} parent=1 // pred_check_branch
      %28 = sbr.rel (0) target = $region9
    $region8: #{lstm_model3_forward.1} parent=1 // pred_region
      _
    $region9: #{lstm_model3_forward.1} parent=1 // pred_fallthru
      _
    // Predicated region
    $region10: #{lstm_model3_forward.1} parent=1 // pred_check
      _
    $region11: #{lstm_model3_forward.1} parent=1 // pred_check_branch
      %30 = sbr.rel (0) target = $region13
    $region12: #{lstm_model3_forward.1} parent=1 // pred_region
      _
    $region13: #{lstm_model3_forward.1} parent=1 // pred_fallthru
      _
    // Predicated region
    $region14: #{lstm_model3_forward.1} parent=1 // pred_check
      _
    $region15: #{lstm_model3_forward.1} parent=1 // pred_check_branch
      %32 = sbr.rel (0) target = $region17
    $region16: #{lstm_model3_forward.1} parent=1 // pred_region
      _
    $region17: #{lstm_model3_forward.1} parent=1 // pred_fallthru
      _
    // Predicated region
    $region18: #{lstm_model3_forward.1} parent=1 // pred_check
      _
    $region19: #{lstm_model3_forward.1} parent=1 // pred_check_branch
      %34 = sbr.rel (0) target = $region21
    $region20: #{lstm_model3_forward.1} parent=1 // pred_region
      _
    $region21: #{lstm_model3_forward.1} parent=1 // pred_fallthru
      _
    // Predicated region
    $region22: #{lstm_model3_forward.1} parent=1 // pred_check
      _
    $region23: #{lstm_model3_forward.1} parent=1 // pred_check_branch
      %36 = sbr.rel (0) target = $region25
    $region24: #{lstm_model3_forward.1} parent=1 // pred_region
      _
    $region25: #{lstm_model3_forward.1} parent=1 // pred_fallthru
      _
    // Predicated region
    $region26: #{lstm_model3_forward.1} parent=1 // pred_check
      _
    $region27: #{lstm_model3_forward.1} parent=1 // pred_check_branch
      %38 = sbr.rel (0) target = $region29
    $region28: #{lstm_model3_forward.1} parent=1 // pred_region
      _
    $region29: #{lstm_model3_forward.1} parent=1 // pred_fallthru
      _
    // Predicated region
    $region30: #{lstm_model3_forward.1} parent=1 // pred_check
      _
    $region31: #{lstm_model3_forward.1} parent=1 // pred_check_branch
      %40 = sbr.rel (0) target = $region33
    $region32: #{lstm_model3_forward.1} parent=1 // pred_region
      _
    $region33: #{lstm_model3_forward.1} parent=1 // pred_fallthru
      _
    // Predicated region
    $region34: #{lstm_model3_forward.1} parent=1 // pred_check
      _
    $region35: #{lstm_model3_forward.1} parent=1 // pred_check_branch
      %42 = sbr.rel (0) target = $region37
    $region36: #{lstm_model3_forward.1} parent=1 // pred_region
      _
    $region37: #{lstm_model3_forward.1} parent=1 // pred_fallthru
      _
    // Predicated region
    $region38: #{lstm_model3_forward.1} parent=1 // pred_check
      _
    $region39: #{lstm_model3_forward.1} parent=1 // pred_check_branch
      %44 = sbr.rel (0) target = $region41
    $region40: #{lstm_model3_forward.1} parent=1 // pred_region
      _
    $region41: #{lstm_model3_forward.1} parent=1 // pred_fallthru
      _
    // Predicated region
    $region42: #{lstm_model3_forward.1} parent=1 // pred_check
      _
    $region43: #{lstm_model3_forward.1} parent=1 // pred_check_branch
      %46 = sbr.rel (0) target = $region45
    $region44: #{lstm_model3_forward.1} parent=1 // pred_region
      _
    $region45: #{lstm_model3_forward.1} parent=1 // pred_fallthru
      _
    // Predicated region
    $region46: #{lstm_model3_forward.1} parent=1 // pred_check
      _
    $region47: #{lstm_model3_forward.1} parent=1 // pred_check_branch
      %48 = sbr.rel (0) target = $region49
    $region48: #{lstm_model3_forward.1} parent=1 // pred_region
      _
    $region49: #{lstm_model3_forward.1} parent=1 // pred_fallthru
      _
    // Predicated region
    $region50: #{lstm_model3_forward.1} parent=1 // pred_check
      _
    $region51: #{lstm_model3_forward.1} parent=1 // pred_check_branch
      %50 = sbr.rel (0) target = $region53
    $region52: #{lstm_model3_forward.1} parent=1 // pred_region
      _
    $region53: #{lstm_model3_forward.1} parent=1 // pred_fallthru
      _
    %p53 = scmp.lt.u32.totalorder 4, 8
    %p54 = pneg %p53
    // Predicated region
    $region54: #{lstm_model3_forward.1} parent=1 // pred_check
      _
    $region55: #{lstm_model3_forward.1} parent=1 // pred_check_branch
      %56 = sbr.rel (%p53) target = $region57
    $region56: #{lstm_model3_forward.1} parent=1 // pred_region
      %s325 = sand.u32 4, 7
      %p326 = scmp.eq.s32.totalorder %s325, 0
      %p327 = pneg %p326
      // Predicated region
      $region69: #{lstm_model3_forward.1} parent=56 // pred_check
        _
      $region70: #{lstm_model3_forward.1} parent=56 // pred_check_branch
        %329 = sbr.rel (%p326) target = $region72
      $region71: #{lstm_model3_forward.1} parent=56 // pred_region
        %s330 = sand.u32 4, 7
        %s331 = ssub.s32 4, %s330
        %s332 = scalar_lea.vmem %s5, %s331
        %s333 = ssub.s32 4, %s330
        %s334 = scalar_lea.vmem [#allocation2], %s333
        loop: start=0, step=1, limit=1
        $region73: #{lstm_model3_forward.1} parent=71 // loop_pre_header
          _
        $region74: #{lstm_model3_forward.1} parent=71 // loop_header
          %s336 = sphi 0, %s340
          %p337 = scmp.ge.s32.totalorder %s336, 1
          %s341 = sphi %s5, %s5
          %s342 = sphi [#allocation2], [#allocation2]
        $region75: #{lstm_model3_forward.1} parent=71 // loop_header_branch
          %339 = sbr.rel (%p337) target = $region79
        $region76: #{lstm_model3_forward.1} parent=71 // loop_body
          _
        $region77: #{lstm_model3_forward.1} parent=71 // loop_footer
          %s340 = sadd.s32 1, %s336
        $region78: #{lstm_model3_forward.1} parent=71 // loop_footer_branch
          %335 = sbr.rel target = $region74
        $region79: #{lstm_model3_forward.1} parent=71 // loop_exit
          _
        %s343 = sshllo.u32 0, %s330
        loop: start=0, step=1, limit=1
        $region80: #{lstm_model3_forward.1} parent=71 // loop_pre_header
          _
        $region81: #{lstm_model3_forward.1} parent=71 // loop_header
          %s345 = sphi 0, %s349
          %p346 = scmp.ge.s32.totalorder %s345, 1
          %s350 = sphi %s332, %s332
          %s351 = sphi %s334, %s334
        $region82: #{lstm_model3_forward.1} parent=71 // loop_header_branch
          %348 = sbr.rel (%p346) target = $region86
        $region83: #{lstm_model3_forward.1} parent=71 // loop_body
          %v352 = vld [vmem:[%s350] sm:%s343]
          %353 = vst [vmem:[%s351] sm:%s343] %v352
          %v354 = vld [vmem:[%s350 + $0x10] sm:%s343]
          %355 = vst [vmem:[%s351 + $0x4] sm:%s343] %v354
          %v356 = vld [vmem:[%s350 + $0x4] sm:%s343]
          %357 = vst [vmem:[%s351 + $0x8] sm:%s343] %v356
          %v358 = vld [vmem:[%s350 + $0x14] sm:%s343]
          %359 = vst [vmem:[%s351 + $0xc] sm:%s343] %v358
          %v360 = vld [vmem:[%s350 + $0x8] sm:%s343]
          %361 = vst [vmem:[%s351 + $0x10] sm:%s343] %v360
          %v362 = vld [vmem:[%s350 + $0x18] sm:%s343]
          %363 = vst [vmem:[%s351 + $0x14] sm:%s343] %v362
          %v364 = vld [vmem:[%s350 + $0xc] sm:%s343]
          %365 = vst [vmem:[%s351 + $0x18] sm:%s343] %v364
          %v366 = vld [vmem:[%s350 + $0x1c] sm:%s343]
          %367 = vst [vmem:[%s351 + $0x1c] sm:%s343] %v366
          %v368 = vld [vmem:[%s350 + $0x20] sm:%s343]
          %369 = vst [vmem:[%s351 + $0x20] sm:%s343] %v368
          %v370 = vld [vmem:[%s350 + $0x30] sm:%s343]
          %371 = vst [vmem:[%s351 + $0x24] sm:%s343] %v370
          %v372 = vld [vmem:[%s350 + $0x24] sm:%s343]
          %373 = vst [vmem:[%s351 + $0x28] sm:%s343] %v372
          %v374 = vld [vmem:[%s350 + $0x34] sm:%s343]
          %375 = vst [vmem:[%s351 + $0x2c] sm:%s343] %v374
          %v376 = vld [vmem:[%s350 + $0x28] sm:%s343]
          %377 = vst [vmem:[%s351 + $0x30] sm:%s343] %v376
          %v378 = vld [vmem:[%s350 + $0x38] sm:%s343]
          %379 = vst [vmem:[%s351 + $0x34] sm:%s343] %v378
          %v380 = vld [vmem:[%s350 + $0x2c] sm:%s343]
          %381 = vst [vmem:[%s351 + $0x38] sm:%s343] %v380
          %v382 = vld [vmem:[%s350 + $0x3c] sm:%s343]
          %383 = vst [vmem:[%s351 + $0x3c] sm:%s343] %v382
          %v384 = vld [vmem:[%s350 + $0x40] sm:%s343]
          %385 = vst [vmem:[%s351 + $0x40] sm:%s343] %v384
          %v386 = vld [vmem:[%s350 + $0x50] sm:%s343]
          %387 = vst [vmem:[%s351 + $0x44] sm:%s343] %v386
          %v388 = vld [vmem:[%s350 + $0x44] sm:%s343]
          %389 = vst [vmem:[%s351 + $0x48] sm:%s343] %v388
          %v390 = vld [vmem:[%s350 + $0x54] sm:%s343]
          %391 = vst [vmem:[%s351 + $0x4c] sm:%s343] %v390
          %v392 = vld [vmem:[%s350 + $0x48] sm:%s343]
          %393 = vst [vmem:[%s351 + $0x50] sm:%s343] %v392
          %v394 = vld [vmem:[%s350 + $0x58] sm:%s343]
          %395 = vst [vmem:[%s351 + $0x54] sm:%s343] %v394
          %v396 = vld [vmem:[%s350 + $0x4c] sm:%s343]
          %397 = vst [vmem:[%s351 + $0x58] sm:%s343] %v396
          %v398 = vld [vmem:[%s350 + $0x5c] sm:%s343]
          %399 = vst [vmem:[%s351 + $0x5c] sm:%s343] %v398
          %v400 = vld [vmem:[%s350 + $0x60] sm:%s343]
          %401 = vst [vmem:[%s351 + $0x60] sm:%s343] %v400
          %v402 = vld [vmem:[%s350 + $0x70] sm:%s343]
          %403 = vst [vmem:[%s351 + $0x64] sm:%s343] %v402
          %v404 = vld [vmem:[%s350 + $0x64] sm:%s343]
          %405 = vst [vmem:[%s351 + $0x68] sm:%s343] %v404
          %v406 = vld [vmem:[%s350 + $0x74] sm:%s343]
          %407 = vst [vmem:[%s351 + $0x6c] sm:%s343] %v406
          %v408 = vld [vmem:[%s350 + $0x68] sm:%s343]
          %409 = vst [vmem:[%s351 + $0x70] sm:%s343] %v408
          %v410 = vld [vmem:[%s350 + $0x78] sm:%s343]
          %411 = vst [vmem:[%s351 + $0x74] sm:%s343] %v410
          %v412 = vld [vmem:[%s350 + $0x6c] sm:%s343]
          %413 = vst [vmem:[%s351 + $0x78] sm:%s343] %v412
          %v414 = vld [vmem:[%s350 + $0x7c] sm:%s343]
          %415 = vst [vmem:[%s351 + $0x7c] sm:%s343] %v414
          %v416 = vld [vmem:[%s350 + $0x80] sm:%s343]
          %417 = vst [vmem:[%s351 + $0x80] sm:%s343] %v416
          %v418 = vld [vmem:[%s350 + $0x90] sm:%s343]
          %419 = vst [vmem:[%s351 + $0x84] sm:%s343] %v418
          %v420 = vld [vmem:[%s350 + $0x84] sm:%s343]
          %421 = vst [vmem:[%s351 + $0x88] sm:%s343] %v420
          %v422 = vld [vmem:[%s350 + $0x94] sm:%s343]
          %423 = vst [vmem:[%s351 + $0x8c] sm:%s343] %v422
          %v424 = vld [vmem:[%s350 + $0x88] sm:%s343]
          %425 = vst [vmem:[%s351 + $0x90] sm:%s343] %v424
          %v426 = vld [vmem:[%s350 + $0x98] sm:%s343]
          %427 = vst [vmem:[%s351 + $0x94] sm:%s343] %v426
          %v428 = vld [vmem:[%s350 + $0x8c] sm:%s343]
          %429 = vst [vmem:[%s351 + $0x98] sm:%s343] %v428
          %v430 = vld [vmem:[%s350 + $0x9c] sm:%s343]
          %431 = vst [vmem:[%s351 + $0x9c] sm:%s343] %v430
          %v432 = vld [vmem:[%s350 + $0xa0] sm:%s343]
          %433 = vst [vmem:[%s351 + $0xa0] sm:%s343] %v432
          %v434 = vld [vmem:[%s350 + $0xb0] sm:%s343]
          %435 = vst [vmem:[%s351 + $0xa4] sm:%s343] %v434
          %v436 = vld [vmem:[%s350 + $0xa4] sm:%s343]
          %437 = vst [vmem:[%s351 + $0xa8] sm:%s343] %v436
          %v438 = vld [vmem:[%s350 + $0xb4] sm:%s343]
          %439 = vst [vmem:[%s351 + $0xac] sm:%s343] %v438
          %v440 = vld [vmem:[%s350 + $0xa8] sm:%s343]
          %441 = vst [vmem:[%s351 + $0xb0] sm:%s343] %v440
          %v442 = vld [vmem:[%s350 + $0xb8] sm:%s343]
          %443 = vst [vmem:[%s351 + $0xb4] sm:%s343] %v442
          %v444 = vld [vmem:[%s350 + $0xac] sm:%s343]
          %445 = vst [vmem:[%s351 + $0xb8] sm:%s343] %v444
          %v446 = vld [vmem:[%s350 + $0xbc] sm:%s343]
          %447 = vst [vmem:[%s351 + $0xbc] sm:%s343] %v446
          %v448 = vld [vmem:[%s350 + $0xc0] sm:%s343]
          %449 = vst [vmem:[%s351 + $0xc0] sm:%s343] %v448
          %v450 = vld [vmem:[%s350 + $0xd0] sm:%s343]
          %451 = vst [vmem:[%s351 + $0xc4] sm:%s343] %v450
          %v452 = vld [vmem:[%s350 + $0xc4] sm:%s343]
          %453 = vst [vmem:[%s351 + $0xc8] sm:%s343] %v452
          %v454 = vld [vmem:[%s350 + $0xd4] sm:%s343]
          %455 = vst [vmem:[%s351 + $0xcc] sm:%s343] %v454
          %v456 = vld [vmem:[%s350 + $0xc8] sm:%s343]
          %457 = vst [vmem:[%s351 + $0xd0] sm:%s343] %v456
          %v458 = vld [vmem:[%s350 + $0xd8] sm:%s343]
          %459 = vst [vmem:[%s351 + $0xd4] sm:%s343] %v458
          %v460 = vld [vmem:[%s350 + $0xcc] sm:%s343]
          %461 = vst [vmem:[%s351 + $0xd8] sm:%s343] %v460
          %v462 = vld [vmem:[%s350 + $0xdc] sm:%s343]
          %463 = vst [vmem:[%s351 + $0xdc] sm:%s343] %v462
          %v464 = vld [vmem:[%s350 + $0xe0] sm:%s343]
          %465 = vst [vmem:[%s351 + $0xe0] sm:%s343] %v464
          %v466 = vld [vmem:[%s350 + $0xf0] sm:%s343]
          %467 = vst [vmem:[%s351 + $0xe4] sm:%s343] %v466
          %v468 = vld [vmem:[%s350 + $0xe4] sm:%s343]
          %469 = vst [vmem:[%s351 + $0xe8] sm:%s343] %v468
          %v470 = vld [vmem:[%s350 + $0xf4] sm:%s343]
          %471 = vst [vmem:[%s351 + $0xec] sm:%s343] %v470
          %v472 = vld [vmem:[%s350 + $0xe8] sm:%s343]
          %473 = vst [vmem:[%s351 + $0xf0] sm:%s343] %v472
          %v474 = vld [vmem:[%s350 + $0xf8] sm:%s343]
          %475 = vst [vmem:[%s351 + $0xf4] sm:%s343] %v474
          %v476 = vld [vmem:[%s350 + $0xec] sm:%s343]
          %477 = vst [vmem:[%s351 + $0xf8] sm:%s343] %v476
          %v478 = vld [vmem:[%s350 + $0xfc] sm:%s343]
          %479 = vst [vmem:[%s351 + $0xfc] sm:%s343] %v478
          %v480 = vld [vmem:[%s350 + $0x100] sm:%s343]
          %481 = vst [vmem:[%s351 + $0x100] sm:%s343] %v480
          %v482 = vld [vmem:[%s350 + $0x110] sm:%s343]
          %483 = vst [vmem:[%s351 + $0x104] sm:%s343] %v482
          %v484 = vld [vmem:[%s350 + $0x104] sm:%s343]
          %485 = vst [vmem:[%s351 + $0x108] sm:%s343] %v484
          %v486 = vld [vmem:[%s350 + $0x114] sm:%s343]
          %487 = vst [vmem:[%s351 + $0x10c] sm:%s343] %v486
          %v488 = vld [vmem:[%s350 + $0x108] sm:%s343]
          %489 = vst [vmem:[%s351 + $0x110] sm:%s343] %v488
          %v490 = vld [vmem:[%s350 + $0x118] sm:%s343]
          %491 = vst [vmem:[%s351 + $0x114] sm:%s343] %v490
          %v492 = vld [vmem:[%s350 + $0x10c] sm:%s343]
          %493 = vst [vmem:[%s351 + $0x118] sm:%s343] %v492
          %v494 = vld [vmem:[%s350 + $0x11c] sm:%s343]
          %495 = vst [vmem:[%s351 + $0x11c] sm:%s343] %v494
          %v496 = vld [vmem:[%s350 + $0x120] sm:%s343]
          %497 = vst [vmem:[%s351 + $0x120] sm:%s343] %v496
          %v498 = vld [vmem:[%s350 + $0x130] sm:%s343]
          %499 = vst [vmem:[%s351 + $0x124] sm:%s343] %v498
          %v500 = vld [vmem:[%s350 + $0x124] sm:%s343]
          %501 = vst [vmem:[%s351 + $0x128] sm:%s343] %v500
          %v502 = vld [vmem:[%s350 + $0x134] sm:%s343]
          %503 = vst [vmem:[%s351 + $0x12c] sm:%s343] %v502
          %v504 = vld [vmem:[%s350 + $0x128] sm:%s343]
          %505 = vst [vmem:[%s351 + $0x130] sm:%s343] %v504
          %v506 = vld [vmem:[%s350 + $0x138] sm:%s343]
          %507 = vst [vmem:[%s351 + $0x134] sm:%s343] %v506
          %v508 = vld [vmem:[%s350 + $0x12c] sm:%s343]
          %509 = vst [vmem:[%s351 + $0x138] sm:%s343] %v508
          %v510 = vld [vmem:[%s350 + $0x13c] sm:%s343]
          %511 = vst [vmem:[%s351 + $0x13c] sm:%s343] %v510
          %v512 = vld [vmem:[%s350 + $0x140] sm:%s343]
          %513 = vst [vmem:[%s351 + $0x140] sm:%s343] %v512
          %v514 = vld [vmem:[%s350 + $0x150] sm:%s343]
          %515 = vst [vmem:[%s351 + $0x144] sm:%s343] %v514
          %v516 = vld [vmem:[%s350 + $0x144] sm:%s343]
          %517 = vst [vmem:[%s351 + $0x148] sm:%s343] %v516
          %v518 = vld [vmem:[%s350 + $0x154] sm:%s343]
          %519 = vst [vmem:[%s351 + $0x14c] sm:%s343] %v518
          %v520 = vld [vmem:[%s350 + $0x148] sm:%s343]
          %521 = vst [vmem:[%s351 + $0x150] sm:%s343] %v520
          %v522 = vld [vmem:[%s350 + $0x158] sm:%s343]
          %523 = vst [vmem:[%s351 + $0x154] sm:%s343] %v522
          %v524 = vld [vmem:[%s350 + $0x14c] sm:%s343]
          %525 = vst [vmem:[%s351 + $0x158] sm:%s343] %v524
          %v526 = vld [vmem:[%s350 + $0x15c] sm:%s343]
          %527 = vst [vmem:[%s351 + $0x15c] sm:%s343] %v526
          %v528 = vld [vmem:[%s350 + $0x160] sm:%s343]
          %529 = vst [vmem:[%s351 + $0x160] sm:%s343] %v528
          %v530 = vld [vmem:[%s350 + $0x170] sm:%s343]
          %531 = vst [vmem:[%s351 + $0x164] sm:%s343] %v530
          %v532 = vld [vmem:[%s350 + $0x164] sm:%s343]
          %533 = vst [vmem:[%s351 + $0x168] sm:%s343] %v532
          %v534 = vld [vmem:[%s350 + $0x174] sm:%s343]
          %535 = vst [vmem:[%s351 + $0x16c] sm:%s343] %v534
          %v536 = vld [vmem:[%s350 + $0x168] sm:%s343]
          %537 = vst [vmem:[%s351 + $0x170] sm:%s343] %v536
          %v538 = vld [vmem:[%s350 + $0x178] sm:%s343]
          %539 = vst [vmem:[%s351 + $0x174] sm:%s343] %v538
          %v540 = vld [vmem:[%s350 + $0x16c] sm:%s343]
          %541 = vst [vmem:[%s351 + $0x178] sm:%s343] %v540
          %v542 = vld [vmem:[%s350 + $0x17c] sm:%s343]
          %543 = vst [vmem:[%s351 + $0x17c] sm:%s343] %v542
          %v544 = vld [vmem:[%s350 + $0x180] sm:%s343]
          %545 = vst [vmem:[%s351 + $0x180] sm:%s343] %v544
          %v546 = vld [vmem:[%s350 + $0x190] sm:%s343]
          %547 = vst [vmem:[%s351 + $0x184] sm:%s343] %v546
          %v548 = vld [vmem:[%s350 + $0x184] sm:%s343]
          %549 = vst [vmem:[%s351 + $0x188] sm:%s343] %v548
          %v550 = vld [vmem:[%s350 + $0x194] sm:%s343]
          %551 = vst [vmem:[%s351 + $0x18c] sm:%s343] %v550
          %v552 = vld [vmem:[%s350 + $0x188] sm:%s343]
          %553 = vst [vmem:[%s351 + $0x190] sm:%s343] %v552
          %v554 = vld [vmem:[%s350 + $0x198] sm:%s343]
          %555 = vst [vmem:[%s351 + $0x194] sm:%s343] %v554
          %v556 = vld [vmem:[%s350 + $0x18c] sm:%s343]
          %557 = vst [vmem:[%s351 + $0x198] sm:%s343] %v556
          %v558 = vld [vmem:[%s350 + $0x19c] sm:%s343]
          %559 = vst [vmem:[%s351 + $0x19c] sm:%s343] %v558
          %v560 = vld [vmem:[%s350 + $0x1a0] sm:%s343]
          %561 = vst [vmem:[%s351 + $0x1a0] sm:%s343] %v560
          %v562 = vld [vmem:[%s350 + $0x1b0] sm:%s343]
          %563 = vst [vmem:[%s351 + $0x1a4] sm:%s343] %v562
          %v564 = vld [vmem:[%s350 + $0x1a4] sm:%s343]
          %565 = vst [vmem:[%s351 + $0x1a8] sm:%s343] %v564
          %v566 = vld [vmem:[%s350 + $0x1b4] sm:%s343]
          %567 = vst [vmem:[%s351 + $0x1ac] sm:%s343] %v566
          %v568 = vld [vmem:[%s350 + $0x1a8] sm:%s343]
          %569 = vst [vmem:[%s351 + $0x1b0] sm:%s343] %v568
          %v570 = vld [vmem:[%s350 + $0x1b8] sm:%s343]
          %571 = vst [vmem:[%s351 + $0x1b4] sm:%s343] %v570
          %v572 = vld [vmem:[%s350 + $0x1ac] sm:%s343]
          %573 = vst [vmem:[%s351 + $0x1b8] sm:%s343] %v572
          %v574 = vld [vmem:[%s350 + $0x1bc] sm:%s343]
          %575 = vst [vmem:[%s351 + $0x1bc] sm:%s343] %v574
          %v576 = vld [vmem:[%s350 + $0x1c0] sm:%s343]
          %577 = vst [vmem:[%s351 + $0x1c0] sm:%s343] %v576
          %v578 = vld [vmem:[%s350 + $0x1d0] sm:%s343]
          %579 = vst [vmem:[%s351 + $0x1c4] sm:%s343] %v578
          %v580 = vld [vmem:[%s350 + $0x1c4] sm:%s343]
          %581 = vst [vmem:[%s351 + $0x1c8] sm:%s343] %v580
          %v582 = vld [vmem:[%s350 + $0x1d4] sm:%s343]
          %583 = vst [vmem:[%s351 + $0x1cc] sm:%s343] %v582
          %v584 = vld [vmem:[%s350 + $0x1c8] sm:%s343]
          %585 = vst [vmem:[%s351 + $0x1d0] sm:%s343] %v584
          %v586 = vld [vmem:[%s350 + $0x1d8] sm:%s343]
          %587 = vst [vmem:[%s351 + $0x1d4] sm:%s343] %v586
          %v588 = vld [vmem:[%s350 + $0x1cc] sm:%s343]
          %589 = vst [vmem:[%s351 + $0x1d8] sm:%s343] %v588
          %v590 = vld [vmem:[%s350 + $0x1dc] sm:%s343]
          %591 = vst [vmem:[%s351 + $0x1dc] sm:%s343] %v590
          %v592 = vld [vmem:[%s350 + $0x1e0] sm:%s343]
          %593 = vst [vmem:[%s351 + $0x1e0] sm:%s343] %v592
          %v594 = vld [vmem:[%s350 + $0x1f0] sm:%s343]
          %595 = vst [vmem:[%s351 + $0x1e4] sm:%s343] %v594
          %v596 = vld [vmem:[%s350 + $0x1e4] sm:%s343]
          %597 = vst [vmem:[%s351 + $0x1e8] sm:%s343] %v596
          %v598 = vld [vmem:[%s350 + $0x1f4] sm:%s343]
          %599 = vst [vmem:[%s351 + $0x1ec] sm:%s343] %v598
          %v600 = vld [vmem:[%s350 + $0x1e8] sm:%s343]
          %601 = vst [vmem:[%s351 + $0x1f0] sm:%s343] %v600
          %v602 = vld [vmem:[%s350 + $0x1f8] sm:%s343]
          %603 = vst [vmem:[%s351 + $0x1f4] sm:%s343] %v602
          %v604 = vld [vmem:[%s350 + $0x1ec] sm:%s343]
          %605 = vst [vmem:[%s351 + $0x1f8] sm:%s343] %v604
          %v606 = vld [vmem:[%s350 + $0x1fc] sm:%s343]
          %607 = vst [vmem:[%s351 + $0x1fc] sm:%s343] %v606
        $region84: #{lstm_model3_forward.1} parent=71 // loop_footer
          %s349 = sadd.s32 1, %s345
        $region85: #{lstm_model3_forward.1} parent=71 // loop_footer_branch
          %344 = sbr.rel target = $region81
        $region86: #{lstm_model3_forward.1} parent=71 // loop_exit
          _
      $region72: #{lstm_model3_forward.1} parent=56 // pred_fallthru
        _
    $region57: #{lstm_model3_forward.1} parent=1 // pred_fallthru
      _
    // Predicated region
    $region58: #{lstm_model3_forward.1} parent=1 // pred_check
      %p57 = pneg %p53
    $region59: #{lstm_model3_forward.1} parent=1 // pred_check_branch
      %59 = sbr.rel (%p57) target = $region61
    $region60: #{lstm_model3_forward.1} parent=1 // pred_region
      %s60 = sshllo.u32 0, 4
      loop: start=0, step=1, limit=1
      $region62: #{lstm_model3_forward.1} parent=60 // loop_pre_header
        _
      $region63: #{lstm_model3_forward.1} parent=60 // loop_header
        %s62 = sphi 0, %s66
        %p63 = scmp.ge.s32.totalorder %s62, 1
        %s67 = sphi %s5, %s5
        %s68 = sphi [#allocation2], [#allocation2]
      $region64: #{lstm_model3_forward.1} parent=60 // loop_header_branch
        %65 = sbr.rel (%p63) target = $region68
      $region65: #{lstm_model3_forward.1} parent=60 // loop_body
        %v69 = vld [vmem:[%s67] sm:%s60]
        %70 = vst [vmem:[%s68] sm:%s60] %v69
        %v71 = vld [vmem:[%s67 + $0x10] sm:%s60]
        %72 = vst [vmem:[%s68 + $0x4] sm:%s60] %v71
        %v73 = vld [vmem:[%s67 + $0x4] sm:%s60]
        %74 = vst [vmem:[%s68 + $0x8] sm:%s60] %v73
        %v75 = vld [vmem:[%s67 + $0x14] sm:%s60]
        %76 = vst [vmem:[%s68 + $0xc] sm:%s60] %v75
        %v77 = vld [vmem:[%s67 + $0x8] sm:%s60]
        %78 = vst [vmem:[%s68 + $0x10] sm:%s60] %v77
        %v79 = vld [vmem:[%s67 + $0x18] sm:%s60]
        %80 = vst [vmem:[%s68 + $0x14] sm:%s60] %v79
        %v81 = vld [vmem:[%s67 + $0xc] sm:%s60]
        %82 = vst [vmem:[%s68 + $0x18] sm:%s60] %v81
        %v83 = vld [vmem:[%s67 + $0x1c] sm:%s60]
        %84 = vst [vmem:[%s68 + $0x1c] sm:%s60] %v83
        %v85 = vld [vmem:[%s67 + $0x20] sm:%s60]
        %86 = vst [vmem:[%s68 + $0x20] sm:%s60] %v85
        %v87 = vld [vmem:[%s67 + $0x30] sm:%s60]
        %88 = vst [vmem:[%s68 + $0x24] sm:%s60] %v87
        %v89 = vld [vmem:[%s67 + $0x24] sm:%s60]
        %90 = vst [vmem:[%s68 + $0x28] sm:%s60] %v89
        %v91 = vld [vmem:[%s67 + $0x34] sm:%s60]
        %92 = vst [vmem:[%s68 + $0x2c] sm:%s60] %v91
        %v93 = vld [vmem:[%s67 + $0x28] sm:%s60]
        %94 = vst [vmem:[%s68 + $0x30] sm:%s60] %v93
        %v95 = vld [vmem:[%s67 + $0x38] sm:%s60]
        %96 = vst [vmem:[%s68 + $0x34] sm:%s60] %v95
        %v97 = vld [vmem:[%s67 + $0x2c] sm:%s60]
        %98 = vst [vmem:[%s68 + $0x38] sm:%s60] %v97
        %v99 = vld [vmem:[%s67 + $0x3c] sm:%s60]
        %100 = vst [vmem:[%s68 + $0x3c] sm:%s60] %v99
        %v101 = vld [vmem:[%s67 + $0x40] sm:%s60]
        %102 = vst [vmem:[%s68 + $0x40] sm:%s60] %v101
        %v103 = vld [vmem:[%s67 + $0x50] sm:%s60]
        %104 = vst [vmem:[%s68 + $0x44] sm:%s60] %v103
        %v105 = vld [vmem:[%s67 + $0x44] sm:%s60]
        %106 = vst [vmem:[%s68 + $0x48] sm:%s60] %v105
        %v107 = vld [vmem:[%s67 + $0x54] sm:%s60]
        %108 = vst [vmem:[%s68 + $0x4c] sm:%s60] %v107
        %v109 = vld [vmem:[%s67 + $0x48] sm:%s60]
        %110 = vst [vmem:[%s68 + $0x50] sm:%s60] %v109
        %v111 = vld [vmem:[%s67 + $0x58] sm:%s60]
        %112 = vst [vmem:[%s68 + $0x54] sm:%s60] %v111
        %v113 = vld [vmem:[%s67 + $0x4c] sm:%s60]
        %114 = vst [vmem:[%s68 + $0x58] sm:%s60] %v113
        %v115 = vld [vmem:[%s67 + $0x5c] sm:%s60]
        %116 = vst [vmem:[%s68 + $0x5c] sm:%s60] %v115
        %v117 = vld [vmem:[%s67 + $0x60] sm:%s60]
        %118 = vst [vmem:[%s68 + $0x60] sm:%s60] %v117
        %v119 = vld [vmem:[%s67 + $0x70] sm:%s60]
        %120 = vst [vmem:[%s68 + $0x64] sm:%s60] %v119
        %v121 = vld [vmem:[%s67 + $0x64] sm:%s60]
        %122 = vst [vmem:[%s68 + $0x68] sm:%s60] %v121
        %v123 = vld [vmem:[%s67 + $0x74] sm:%s60]
        %124 = vst [vmem:[%s68 + $0x6c] sm:%s60] %v123
        %v125 = vld [vmem:[%s67 + $0x68] sm:%s60]
        %126 = vst [vmem:[%s68 + $0x70] sm:%s60] %v125
        %v127 = vld [vmem:[%s67 + $0x78] sm:%s60]
        %128 = vst [vmem:[%s68 + $0x74] sm:%s60] %v127
        %v129 = vld [vmem:[%s67 + $0x6c] sm:%s60]
        %130 = vst [vmem:[%s68 + $0x78] sm:%s60] %v129
        %v131 = vld [vmem:[%s67 + $0x7c] sm:%s60]
        %132 = vst [vmem:[%s68 + $0x7c] sm:%s60] %v131
        %v133 = vld [vmem:[%s67 + $0x80] sm:%s60]
        %134 = vst [vmem:[%s68 + $0x80] sm:%s60] %v133
        %v135 = vld [vmem:[%s67 + $0x90] sm:%s60]
        %136 = vst [vmem:[%s68 + $0x84] sm:%s60] %v135
        %v137 = vld [vmem:[%s67 + $0x84] sm:%s60]
        %138 = vst [vmem:[%s68 + $0x88] sm:%s60] %v137
        %v139 = vld [vmem:[%s67 + $0x94] sm:%s60]
        %140 = vst [vmem:[%s68 + $0x8c] sm:%s60] %v139
        %v141 = vld [vmem:[%s67 + $0x88] sm:%s60]
        %142 = vst [vmem:[%s68 + $0x90] sm:%s60] %v141
        %v143 = vld [vmem:[%s67 + $0x98] sm:%s60]
        %144 = vst [vmem:[%s68 + $0x94] sm:%s60] %v143
        %v145 = vld [vmem:[%s67 + $0x8c] sm:%s60]
        %146 = vst [vmem:[%s68 + $0x98] sm:%s60] %v145
        %v147 = vld [vmem:[%s67 + $0x9c] sm:%s60]
        %148 = vst [vmem:[%s68 + $0x9c] sm:%s60] %v147
        %v149 = vld [vmem:[%s67 + $0xa0] sm:%s60]
        %150 = vst [vmem:[%s68 + $0xa0] sm:%s60] %v149
        %v151 = vld [vmem:[%s67 + $0xb0] sm:%s60]
        %152 = vst [vmem:[%s68 + $0xa4] sm:%s60] %v151
        %v153 = vld [vmem:[%s67 + $0xa4] sm:%s60]
        %154 = vst [vmem:[%s68 + $0xa8] sm:%s60] %v153
        %v155 = vld [vmem:[%s67 + $0xb4] sm:%s60]
        %156 = vst [vmem:[%s68 + $0xac] sm:%s60] %v155
        %v157 = vld [vmem:[%s67 + $0xa8] sm:%s60]
        %158 = vst [vmem:[%s68 + $0xb0] sm:%s60] %v157
        %v159 = vld [vmem:[%s67 + $0xb8] sm:%s60]
        %160 = vst [vmem:[%s68 + $0xb4] sm:%s60] %v159
        %v161 = vld [vmem:[%s67 + $0xac] sm:%s60]
        %162 = vst [vmem:[%s68 + $0xb8] sm:%s60] %v161
        %v163 = vld [vmem:[%s67 + $0xbc] sm:%s60]
        %164 = vst [vmem:[%s68 + $0xbc] sm:%s60] %v163
        %v165 = vld [vmem:[%s67 + $0xc0] sm:%s60]
        %166 = vst [vmem:[%s68 + $0xc0] sm:%s60] %v165
        %v167 = vld [vmem:[%s67 + $0xd0] sm:%s60]
        %168 = vst [vmem:[%s68 + $0xc4] sm:%s60] %v167
        %v169 = vld [vmem:[%s67 + $0xc4] sm:%s60]
        %170 = vst [vmem:[%s68 + $0xc8] sm:%s60] %v169
        %v171 = vld [vmem:[%s67 + $0xd4] sm:%s60]
        %172 = vst [vmem:[%s68 + $0xcc] sm:%s60] %v171
        %v173 = vld [vmem:[%s67 + $0xc8] sm:%s60]
        %174 = vst [vmem:[%s68 + $0xd0] sm:%s60] %v173
        %v175 = vld [vmem:[%s67 + $0xd8] sm:%s60]
        %176 = vst [vmem:[%s68 + $0xd4] sm:%s60] %v175
        %v177 = vld [vmem:[%s67 + $0xcc] sm:%s60]
        %178 = vst [vmem:[%s68 + $0xd8] sm:%s60] %v177
        %v179 = vld [vmem:[%s67 + $0xdc] sm:%s60]
        %180 = vst [vmem:[%s68 + $0xdc] sm:%s60] %v179
        %v181 = vld [vmem:[%s67 + $0xe0] sm:%s60]
        %182 = vst [vmem:[%s68 + $0xe0] sm:%s60] %v181
        %v183 = vld [vmem:[%s67 + $0xf0] sm:%s60]
        %184 = vst [vmem:[%s68 + $0xe4] sm:%s60] %v183
        %v185 = vld [vmem:[%s67 + $0xe4] sm:%s60]
        %186 = vst [vmem:[%s68 + $0xe8] sm:%s60] %v185
        %v187 = vld [vmem:[%s67 + $0xf4] sm:%s60]
        %188 = vst [vmem:[%s68 + $0xec] sm:%s60] %v187
        %v189 = vld [vmem:[%s67 + $0xe8] sm:%s60]
        %190 = vst [vmem:[%s68 + $0xf0] sm:%s60] %v189
        %v191 = vld [vmem:[%s67 + $0xf8] sm:%s60]
        %192 = vst [vmem:[%s68 + $0xf4] sm:%s60] %v191
        %v193 = vld [vmem:[%s67 + $0xec] sm:%s60]
        %194 = vst [vmem:[%s68 + $0xf8] sm:%s60] %v193
        %v195 = vld [vmem:[%s67 + $0xfc] sm:%s60]
        %196 = vst [vmem:[%s68 + $0xfc] sm:%s60] %v195
        %v197 = vld [vmem:[%s67 + $0x100] sm:%s60]
        %198 = vst [vmem:[%s68 + $0x100] sm:%s60] %v197
        %v199 = vld [vmem:[%s67 + $0x110] sm:%s60]
        %200 = vst [vmem:[%s68 + $0x104] sm:%s60] %v199
        %v201 = vld [vmem:[%s67 + $0x104] sm:%s60]
        %202 = vst [vmem:[%s68 + $0x108] sm:%s60] %v201
        %v203 = vld [vmem:[%s67 + $0x114] sm:%s60]
        %204 = vst [vmem:[%s68 + $0x10c] sm:%s60] %v203
        %v205 = vld [vmem:[%s67 + $0x108] sm:%s60]
        %206 = vst [vmem:[%s68 + $0x110] sm:%s60] %v205
        %v207 = vld [vmem:[%s67 + $0x118] sm:%s60]
        %208 = vst [vmem:[%s68 + $0x114] sm:%s60] %v207
        %v209 = vld [vmem:[%s67 + $0x10c] sm:%s60]
        %210 = vst [vmem:[%s68 + $0x118] sm:%s60] %v209
        %v211 = vld [vmem:[%s67 + $0x11c] sm:%s60]
        %212 = vst [vmem:[%s68 + $0x11c] sm:%s60] %v211
        %v213 = vld [vmem:[%s67 + $0x120] sm:%s60]
        %214 = vst [vmem:[%s68 + $0x120] sm:%s60] %v213
        %v215 = vld [vmem:[%s67 + $0x130] sm:%s60]
        %216 = vst [vmem:[%s68 + $0x124] sm:%s60] %v215
        %v217 = vld [vmem:[%s67 + $0x124] sm:%s60]
        %218 = vst [vmem:[%s68 + $0x128] sm:%s60] %v217
        %v219 = vld [vmem:[%s67 + $0x134] sm:%s60]
        %220 = vst [vmem:[%s68 + $0x12c] sm:%s60] %v219
        %v221 = vld [vmem:[%s67 + $0x128] sm:%s60]
        %222 = vst [vmem:[%s68 + $0x130] sm:%s60] %v221
        %v223 = vld [vmem:[%s67 + $0x138] sm:%s60]
        %224 = vst [vmem:[%s68 + $0x134] sm:%s60] %v223
        %v225 = vld [vmem:[%s67 + $0x12c] sm:%s60]
        %226 = vst [vmem:[%s68 + $0x138] sm:%s60] %v225
        %v227 = vld [vmem:[%s67 + $0x13c] sm:%s60]
        %228 = vst [vmem:[%s68 + $0x13c] sm:%s60] %v227
        %v229 = vld [vmem:[%s67 + $0x140] sm:%s60]
        %230 = vst [vmem:[%s68 + $0x140] sm:%s60] %v229
        %v231 = vld [vmem:[%s67 + $0x150] sm:%s60]
        %232 = vst [vmem:[%s68 + $0x144] sm:%s60] %v231
        %v233 = vld [vmem:[%s67 + $0x144] sm:%s60]
        %234 = vst [vmem:[%s68 + $0x148] sm:%s60] %v233
        %v235 = vld [vmem:[%s67 + $0x154] sm:%s60]
        %236 = vst [vmem:[%s68 + $0x14c] sm:%s60] %v235
        %v237 = vld [vmem:[%s67 + $0x148] sm:%s60]
        %238 = vst [vmem:[%s68 + $0x150] sm:%s60] %v237
        %v239 = vld [vmem:[%s67 + $0x158] sm:%s60]
        %240 = vst [vmem:[%s68 + $0x154] sm:%s60] %v239
        %v241 = vld [vmem:[%s67 + $0x14c] sm:%s60]
        %242 = vst [vmem:[%s68 + $0x158] sm:%s60] %v241
        %v243 = vld [vmem:[%s67 + $0x15c] sm:%s60]
        %244 = vst [vmem:[%s68 + $0x15c] sm:%s60] %v243
        %v245 = vld [vmem:[%s67 + $0x160] sm:%s60]
        %246 = vst [vmem:[%s68 + $0x160] sm:%s60] %v245
        %v247 = vld [vmem:[%s67 + $0x170] sm:%s60]
        %248 = vst [vmem:[%s68 + $0x164] sm:%s60] %v247
        %v249 = vld [vmem:[%s67 + $0x164] sm:%s60]
        %250 = vst [vmem:[%s68 + $0x168] sm:%s60] %v249
        %v251 = vld [vmem:[%s67 + $0x174] sm:%s60]
        %252 = vst [vmem:[%s68 + $0x16c] sm:%s60] %v251
        %v253 = vld [vmem:[%s67 + $0x168] sm:%s60]
        %254 = vst [vmem:[%s68 + $0x170] sm:%s60] %v253
        %v255 = vld [vmem:[%s67 + $0x178] sm:%s60]
        %256 = vst [vmem:[%s68 + $0x174] sm:%s60] %v255
        %v257 = vld [vmem:[%s67 + $0x16c] sm:%s60]
        %258 = vst [vmem:[%s68 + $0x178] sm:%s60] %v257
        %v259 = vld [vmem:[%s67 + $0x17c] sm:%s60]
        %260 = vst [vmem:[%s68 + $0x17c] sm:%s60] %v259
        %v261 = vld [vmem:[%s67 + $0x180] sm:%s60]
        %262 = vst [vmem:[%s68 + $0x180] sm:%s60] %v261
        %v263 = vld [vmem:[%s67 + $0x190] sm:%s60]
        %264 = vst [vmem:[%s68 + $0x184] sm:%s60] %v263
        %v265 = vld [vmem:[%s67 + $0x184] sm:%s60]
        %266 = vst [vmem:[%s68 + $0x188] sm:%s60] %v265
        %v267 = vld [vmem:[%s67 + $0x194] sm:%s60]
        %268 = vst [vmem:[%s68 + $0x18c] sm:%s60] %v267
        %v269 = vld [vmem:[%s67 + $0x188] sm:%s60]
        %270 = vst [vmem:[%s68 + $0x190] sm:%s60] %v269
        %v271 = vld [vmem:[%s67 + $0x198] sm:%s60]
        %272 = vst [vmem:[%s68 + $0x194] sm:%s60] %v271
        %v273 = vld [vmem:[%s67 + $0x18c] sm:%s60]
        %274 = vst [vmem:[%s68 + $0x198] sm:%s60] %v273
        %v275 = vld [vmem:[%s67 + $0x19c] sm:%s60]
        %276 = vst [vmem:[%s68 + $0x19c] sm:%s60] %v275
        %v277 = vld [vmem:[%s67 + $0x1a0] sm:%s60]
        %278 = vst [vmem:[%s68 + $0x1a0] sm:%s60] %v277
        %v279 = vld [vmem:[%s67 + $0x1b0] sm:%s60]
        %280 = vst [vmem:[%s68 + $0x1a4] sm:%s60] %v279
        %v281 = vld [vmem:[%s67 + $0x1a4] sm:%s60]
        %282 = vst [vmem:[%s68 + $0x1a8] sm:%s60] %v281
        %v283 = vld [vmem:[%s67 + $0x1b4] sm:%s60]
        %284 = vst [vmem:[%s68 + $0x1ac] sm:%s60] %v283
        %v285 = vld [vmem:[%s67 + $0x1a8] sm:%s60]
        %286 = vst [vmem:[%s68 + $0x1b0] sm:%s60] %v285
        %v287 = vld [vmem:[%s67 + $0x1b8] sm:%s60]
        %288 = vst [vmem:[%s68 + $0x1b4] sm:%s60] %v287
        %v289 = vld [vmem:[%s67 + $0x1ac] sm:%s60]
        %290 = vst [vmem:[%s68 + $0x1b8] sm:%s60] %v289
        %v291 = vld [vmem:[%s67 + $0x1bc] sm:%s60]
        %292 = vst [vmem:[%s68 + $0x1bc] sm:%s60] %v291
        %v293 = vld [vmem:[%s67 + $0x1c0] sm:%s60]
        %294 = vst [vmem:[%s68 + $0x1c0] sm:%s60] %v293
        %v295 = vld [vmem:[%s67 + $0x1d0] sm:%s60]
        %296 = vst [vmem:[%s68 + $0x1c4] sm:%s60] %v295
        %v297 = vld [vmem:[%s67 + $0x1c4] sm:%s60]
        %298 = vst [vmem:[%s68 + $0x1c8] sm:%s60] %v297
        %v299 = vld [vmem:[%s67 + $0x1d4] sm:%s60]
        %300 = vst [vmem:[%s68 + $0x1cc] sm:%s60] %v299
        %v301 = vld [vmem:[%s67 + $0x1c8] sm:%s60]
        %302 = vst [vmem:[%s68 + $0x1d0] sm:%s60] %v301
        %v303 = vld [vmem:[%s67 + $0x1d8] sm:%s60]
        %304 = vst [vmem:[%s68 + $0x1d4] sm:%s60] %v303
        %v305 = vld [vmem:[%s67 + $0x1cc] sm:%s60]
        %306 = vst [vmem:[%s68 + $0x1d8] sm:%s60] %v305
        %v307 = vld [vmem:[%s67 + $0x1dc] sm:%s60]
        %308 = vst [vmem:[%s68 + $0x1dc] sm:%s60] %v307
        %v309 = vld [vmem:[%s67 + $0x1e0] sm:%s60]
        %310 = vst [vmem:[%s68 + $0x1e0] sm:%s60] %v309
        %v311 = vld [vmem:[%s67 + $0x1f0] sm:%s60]
        %312 = vst [vmem:[%s68 + $0x1e4] sm:%s60] %v311
        %v313 = vld [vmem:[%s67 + $0x1e4] sm:%s60]
        %314 = vst [vmem:[%s68 + $0x1e8] sm:%s60] %v313
        %v315 = vld [vmem:[%s67 + $0x1f4] sm:%s60]
        %316 = vst [vmem:[%s68 + $0x1ec] sm:%s60] %v315
        %v317 = vld [vmem:[%s67 + $0x1e8] sm:%s60]
        %318 = vst [vmem:[%s68 + $0x1f0] sm:%s60] %v317
        %v319 = vld [vmem:[%s67 + $0x1f8] sm:%s60]
        %320 = vst [vmem:[%s68 + $0x1f4] sm:%s60] %v319
        %v321 = vld [vmem:[%s67 + $0x1ec] sm:%s60]
        %322 = vst [vmem:[%s68 + $0x1f8] sm:%s60] %v321
        %v323 = vld [vmem:[%s67 + $0x1fc] sm:%s60]
        %324 = vst [vmem:[%s68 + $0x1fc] sm:%s60] %v323
      $region66: #{lstm_model3_forward.1} parent=60 // loop_footer
        %s66 = sadd.s32 1, %s62
      $region67: #{lstm_model3_forward.1} parent=60 // loop_footer_branch
        %61 = sbr.rel target = $region63
      $region68: #{lstm_model3_forward.1} parent=60 // loop_exit
        _
    $region61: #{lstm_model3_forward.1} parent=1 // pred_fallthru
      _
    // Predicated region
    $region87: #{lstm_model3_forward.1} parent=1 // pred_check
      _
    $region88: #{lstm_model3_forward.1} parent=1 // pred_check_branch
      %610 = sbr.rel (0) target = $region90
    $region89: #{lstm_model3_forward.1} parent=1 // pred_region
      %611 = vsyncadd [#allocation6], 8192
    $region90: #{lstm_model3_forward.1} parent=1 // pred_fallthru
      _
    %s612 = scalar_lea.sflag [#allocation6], 1
    %p614 = scmp.lt.u32.totalorder 256, 8
    %p615 = pneg %p614
    // Predicated region
    $region91: #{lstm_model3_forward.1} parent=1 // pred_check
      _
    $region92: #{lstm_model3_forward.1} parent=1 // pred_check_branch
      %617 = sbr.rel (%p614) target = $region94
    $region93: #{lstm_model3_forward.1} parent=1 // pred_region
      %s632 = sand.u32 256, 7
      %p633 = scmp.eq.s32.totalorder %s632, 0
      // Predicated region
      $region106: #{lstm_model3_forward.1} parent=93 // pred_check
        %p634 = pneg %p633
      $region107: #{lstm_model3_forward.1} parent=93 // pred_check_branch
        %636 = sbr.rel (%p634) target = $region109
      $region108: #{lstm_model3_forward.1} parent=93 // pred_region
        loop: start=0, step=1, limit=1
        $region110: #{lstm_model3_forward.1} parent=108 // loop_pre_header
          _
        $region111: #{lstm_model3_forward.1} parent=108 // loop_header
          %s638 = sphi 0, %s642
          %p639 = scmp.ge.s32.totalorder %s638, 1
          %s643 = sphi %s7, %s7
          %s644 = sphi [#allocation3], [#allocation3]
        $region112: #{lstm_model3_forward.1} parent=108 // loop_header_branch
          %641 = sbr.rel (%p639) target = $region116
        $region113: #{lstm_model3_forward.1} parent=108 // loop_body
          %v645 = vld [vmem:[%s643] sm:$0xff]
          %646 = vst [vmem:[%s644] sm:$0xff] %v645
          %v647 = vld [vmem:[%s643 + $0x8] sm:$0xff]
          %648 = vst [vmem:[%s644 + $0x8] sm:$0xff] %v647
          %v649 = vld [vmem:[%s643 + $0x10] sm:$0xff]
          %650 = vst [vmem:[%s644 + $0x10] sm:$0xff] %v649
          %v651 = vld [vmem:[%s643 + $0x18] sm:$0xff]
          %652 = vst [vmem:[%s644 + $0x18] sm:$0xff] %v651
          %v653 = vld [vmem:[%s643 + $0x20] sm:$0xff]
          %654 = vst [vmem:[%s644 + $0x20] sm:$0xff] %v653
          %v655 = vld [vmem:[%s643 + $0x28] sm:$0xff]
          %656 = vst [vmem:[%s644 + $0x28] sm:$0xff] %v655
          %v657 = vld [vmem:[%s643 + $0x30] sm:$0xff]
          %658 = vst [vmem:[%s644 + $0x30] sm:$0xff] %v657
          %v659 = vld [vmem:[%s643 + $0x38] sm:$0xff]
          %660 = vst [vmem:[%s644 + $0x38] sm:$0xff] %v659
          %v661 = vld [vmem:[%s643 + $0x40] sm:$0xff]
          %662 = vst [vmem:[%s644 + $0x40] sm:$0xff] %v661
          %v663 = vld [vmem:[%s643 + $0x48] sm:$0xff]
          %664 = vst [vmem:[%s644 + $0x48] sm:$0xff] %v663
          %v665 = vld [vmem:[%s643 + $0x50] sm:$0xff]
          %666 = vst [vmem:[%s644 + $0x50] sm:$0xff] %v665
          %v667 = vld [vmem:[%s643 + $0x58] sm:$0xff]
          %668 = vst [vmem:[%s644 + $0x58] sm:$0xff] %v667
          %v669 = vld [vmem:[%s643 + $0x60] sm:$0xff]
          %670 = vst [vmem:[%s644 + $0x60] sm:$0xff] %v669
          %v671 = vld [vmem:[%s643 + $0x68] sm:$0xff]
          %672 = vst [vmem:[%s644 + $0x68] sm:$0xff] %v671
          %v673 = vld [vmem:[%s643 + $0x70] sm:$0xff]
          %674 = vst [vmem:[%s644 + $0x70] sm:$0xff] %v673
          %v675 = vld [vmem:[%s643 + $0x78] sm:$0xff]
          %676 = vst [vmem:[%s644 + $0x78] sm:$0xff] %v675
          %v677 = vld [vmem:[%s643 + $0x80] sm:$0xff]
          %678 = vst [vmem:[%s644 + $0x80] sm:$0xff] %v677
          %v679 = vld [vmem:[%s643 + $0x88] sm:$0xff]
          %680 = vst [vmem:[%s644 + $0x88] sm:$0xff] %v679
          %v681 = vld [vmem:[%s643 + $0x90] sm:$0xff]
          %682 = vst [vmem:[%s644 + $0x90] sm:$0xff] %v681
          %v683 = vld [vmem:[%s643 + $0x98] sm:$0xff]
          %684 = vst [vmem:[%s644 + $0x98] sm:$0xff] %v683
          %v685 = vld [vmem:[%s643 + $0xa0] sm:$0xff]
          %686 = vst [vmem:[%s644 + $0xa0] sm:$0xff] %v685
          %v687 = vld [vmem:[%s643 + $0xa8] sm:$0xff]
          %688 = vst [vmem:[%s644 + $0xa8] sm:$0xff] %v687
          %v689 = vld [vmem:[%s643 + $0xb0] sm:$0xff]
          %690 = vst [vmem:[%s644 + $0xb0] sm:$0xff] %v689
          %v691 = vld [vmem:[%s643 + $0xb8] sm:$0xff]
          %692 = vst [vmem:[%s644 + $0xb8] sm:$0xff] %v691
          %v693 = vld [vmem:[%s643 + $0xc0] sm:$0xff]
          %694 = vst [vmem:[%s644 + $0xc0] sm:$0xff] %v693
          %v695 = vld [vmem:[%s643 + $0xc8] sm:$0xff]
          %696 = vst [vmem:[%s644 + $0xc8] sm:$0xff] %v695
          %v697 = vld [vmem:[%s643 + $0xd0] sm:$0xff]
          %698 = vst [vmem:[%s644 + $0xd0] sm:$0xff] %v697
          %v699 = vld [vmem:[%s643 + $0xd8] sm:$0xff]
          %700 = vst [vmem:[%s644 + $0xd8] sm:$0xff] %v699
          %v701 = vld [vmem:[%s643 + $0xe0] sm:$0xff]
          %702 = vst [vmem:[%s644 + $0xe0] sm:$0xff] %v701
          %v703 = vld [vmem:[%s643 + $0xe8] sm:$0xff]
          %704 = vst [vmem:[%s644 + $0xe8] sm:$0xff] %v703
          %v705 = vld [vmem:[%s643 + $0xf0] sm:$0xff]
          %706 = vst [vmem:[%s644 + $0xf0] sm:$0xff] %v705
          %v707 = vld [vmem:[%s643 + $0xf8] sm:$0xff]
          %708 = vst [vmem:[%s644 + $0xf8] sm:$0xff] %v707
        $region114: #{lstm_model3_forward.1} parent=108 // loop_footer
          %s642 = sadd.s32 1, %s638
        $region115: #{lstm_model3_forward.1} parent=108 // loop_footer_branch
          %637 = sbr.rel target = $region111
        $region116: #{lstm_model3_forward.1} parent=108 // loop_exit
          _
      $region109: #{lstm_model3_forward.1} parent=93 // pred_fallthru
        _
      %p709 = pneg %p633
      // Predicated region
      $region117: #{lstm_model3_forward.1} parent=93 // pred_check
        _
      $region118: #{lstm_model3_forward.1} parent=93 // pred_check_branch
        %711 = sbr.rel (%p633) target = $region120
      $region119: #{lstm_model3_forward.1} parent=93 // pred_region
        %s712 = sand.u32 256, 7
      $region120: #{lstm_model3_forward.1} parent=93 // pred_fallthru
        _
    $region94: #{lstm_model3_forward.1} parent=1 // pred_fallthru
      _
    // Predicated region
    $region95: #{lstm_model3_forward.1} parent=1 // pred_check
      %p618 = pneg %p614
    $region96: #{lstm_model3_forward.1} parent=1 // pred_check_branch
      %620 = sbr.rel (%p618) target = $region98
    $region97: #{lstm_model3_forward.1} parent=1 // pred_region
      %s621 = sshllo.u32 0, 256
      loop: start=0, step=1, limit=1
      $region99: #{lstm_model3_forward.1} parent=97 // loop_pre_header
        _
      $region100: #{lstm_model3_forward.1} parent=97 // loop_header
        %s623 = sphi 0, %s627
        %p624 = scmp.ge.s32.totalorder %s623, 1
        %s628 = sphi %s7, %s7
        %s629 = sphi [#allocation3], [#allocation3]
      $region101: #{lstm_model3_forward.1} parent=97 // loop_header_branch
        %626 = sbr.rel (%p624) target = $region105
      $region102: #{lstm_model3_forward.1} parent=97 // loop_body
        %v630 = vld [vmem:[%s628] sm:%s621]
        %631 = vst [vmem:[%s629] sm:%s621] %v630
      $region103: #{lstm_model3_forward.1} parent=97 // loop_footer
        %s627 = sadd.s32 1, %s623
      $region104: #{lstm_model3_forward.1} parent=97 // loop_footer_branch
        %622 = sbr.rel target = $region100
      $region105: #{lstm_model3_forward.1} parent=97 // loop_exit
        _
    $region98: #{lstm_model3_forward.1} parent=1 // pred_fallthru
      _
    // Predicated region
    $region121: #{lstm_model3_forward.1} parent=1 // pred_check
      _
    $region122: #{lstm_model3_forward.1} parent=1 // pred_check_branch
      %715 = sbr.rel (0) target = $region124
    $region123: #{lstm_model3_forward.1} parent=1 // pred_region
      %716 = vsyncadd %s612, 4096
    $region124: #{lstm_model3_forward.1} parent=1 // pred_fallthru
      _
    %s717 = scalar_lea.sflag [#allocation6], 2
    %p719 = scmp.lt.u32.totalorder 4, 8
    %p720 = pneg %p719
    // Predicated region
    $region125: #{lstm_model3_forward.1} parent=1 // pred_check
      _
    $region126: #{lstm_model3_forward.1} parent=1 // pred_check_branch
      %722 = sbr.rel (%p719) target = $region128
    $region127: #{lstm_model3_forward.1} parent=1 // pred_region
      %s799 = sand.u32 4, 7
      %p800 = scmp.eq.s32.totalorder %s799, 0
      %p801 = pneg %p800
      // Predicated region
      $region140: #{lstm_model3_forward.1} parent=127 // pred_check
        _
      $region141: #{lstm_model3_forward.1} parent=127 // pred_check_branch
        %803 = sbr.rel (%p800) target = $region143
      $region142: #{lstm_model3_forward.1} parent=127 // pred_region
        %s804 = sand.u32 4, 7
        %s805 = ssub.s32 4, %s804
        %s806 = scalar_lea.vmem %s11, %s805
        %s807 = ssub.s32 4, %s804
        %s808 = scalar_lea.vmem [#allocation4], %s807
        loop: start=0, step=1, limit=1
        $region144: #{lstm_model3_forward.1} parent=142 // loop_pre_header
          _
        $region145: #{lstm_model3_forward.1} parent=142 // loop_header
          %s810 = sphi 0, %s814
          %p811 = scmp.ge.s32.totalorder %s810, 1
          %s815 = sphi %s11, %s11
          %s816 = sphi [#allocation4], [#allocation4]
        $region146: #{lstm_model3_forward.1} parent=142 // loop_header_branch
          %813 = sbr.rel (%p811) target = $region150
        $region147: #{lstm_model3_forward.1} parent=142 // loop_body
          _
        $region148: #{lstm_model3_forward.1} parent=142 // loop_footer
          %s814 = sadd.s32 1, %s810
        $region149: #{lstm_model3_forward.1} parent=142 // loop_footer_branch
          %809 = sbr.rel target = $region145
        $region150: #{lstm_model3_forward.1} parent=142 // loop_exit
          _
        %s817 = sshllo.u32 0, %s804
        loop: start=0, step=1, limit=1
        $region151: #{lstm_model3_forward.1} parent=142 // loop_pre_header
          _
        $region152: #{lstm_model3_forward.1} parent=142 // loop_header
          %s819 = sphi 0, %s823
          %p820 = scmp.ge.s32.totalorder %s819, 1
          %s824 = sphi %s806, %s806
          %s825 = sphi %s808, %s808
        $region153: #{lstm_model3_forward.1} parent=142 // loop_header_branch
          %822 = sbr.rel (%p820) target = $region157
        $region154: #{lstm_model3_forward.1} parent=142 // loop_body
          %v826 = vld [vmem:[%s824] sm:%s817]
          %827 = vst [vmem:[%s825] sm:%s817] %v826
          %v828 = vld [vmem:[%s824 + $0x10] sm:%s817]
          %829 = vst [vmem:[%s825 + $0x4] sm:%s817] %v828
          %v830 = vld [vmem:[%s824 + $0x4] sm:%s817]
          %831 = vst [vmem:[%s825 + $0x8] sm:%s817] %v830
          %v832 = vld [vmem:[%s824 + $0x14] sm:%s817]
          %833 = vst [vmem:[%s825 + $0xc] sm:%s817] %v832
          %v834 = vld [vmem:[%s824 + $0x8] sm:%s817]
          %835 = vst [vmem:[%s825 + $0x10] sm:%s817] %v834
          %v836 = vld [vmem:[%s824 + $0x18] sm:%s817]
          %837 = vst [vmem:[%s825 + $0x14] sm:%s817] %v836
          %v838 = vld [vmem:[%s824 + $0xc] sm:%s817]
          %839 = vst [vmem:[%s825 + $0x18] sm:%s817] %v838
          %v840 = vld [vmem:[%s824 + $0x1c] sm:%s817]
          %841 = vst [vmem:[%s825 + $0x1c] sm:%s817] %v840
          %v842 = vld [vmem:[%s824 + $0x20] sm:%s817]
          %843 = vst [vmem:[%s825 + $0x20] sm:%s817] %v842
          %v844 = vld [vmem:[%s824 + $0x30] sm:%s817]
          %845 = vst [vmem:[%s825 + $0x24] sm:%s817] %v844
          %v846 = vld [vmem:[%s824 + $0x24] sm:%s817]
          %847 = vst [vmem:[%s825 + $0x28] sm:%s817] %v846
          %v848 = vld [vmem:[%s824 + $0x34] sm:%s817]
          %849 = vst [vmem:[%s825 + $0x2c] sm:%s817] %v848
          %v850 = vld [vmem:[%s824 + $0x28] sm:%s817]
          %851 = vst [vmem:[%s825 + $0x30] sm:%s817] %v850
          %v852 = vld [vmem:[%s824 + $0x38] sm:%s817]
          %853 = vst [vmem:[%s825 + $0x34] sm:%s817] %v852
          %v854 = vld [vmem:[%s824 + $0x2c] sm:%s817]
          %855 = vst [vmem:[%s825 + $0x38] sm:%s817] %v854
          %v856 = vld [vmem:[%s824 + $0x3c] sm:%s817]
          %857 = vst [vmem:[%s825 + $0x3c] sm:%s817] %v856
          %v858 = vld [vmem:[%s824 + $0x40] sm:%s817]
          %859 = vst [vmem:[%s825 + $0x40] sm:%s817] %v858
          %v860 = vld [vmem:[%s824 + $0x50] sm:%s817]
          %861 = vst [vmem:[%s825 + $0x44] sm:%s817] %v860
          %v862 = vld [vmem:[%s824 + $0x44] sm:%s817]
          %863 = vst [vmem:[%s825 + $0x48] sm:%s817] %v862
          %v864 = vld [vmem:[%s824 + $0x54] sm:%s817]
          %865 = vst [vmem:[%s825 + $0x4c] sm:%s817] %v864
          %v866 = vld [vmem:[%s824 + $0x48] sm:%s817]
          %867 = vst [vmem:[%s825 + $0x50] sm:%s817] %v866
          %v868 = vld [vmem:[%s824 + $0x58] sm:%s817]
          %869 = vst [vmem:[%s825 + $0x54] sm:%s817] %v868
          %v870 = vld [vmem:[%s824 + $0x4c] sm:%s817]
          %871 = vst [vmem:[%s825 + $0x58] sm:%s817] %v870
          %v872 = vld [vmem:[%s824 + $0x5c] sm:%s817]
          %873 = vst [vmem:[%s825 + $0x5c] sm:%s817] %v872
          %v874 = vld [vmem:[%s824 + $0x60] sm:%s817]
          %875 = vst [vmem:[%s825 + $0x60] sm:%s817] %v874
          %v876 = vld [vmem:[%s824 + $0x70] sm:%s817]
          %877 = vst [vmem:[%s825 + $0x64] sm:%s817] %v876
          %v878 = vld [vmem:[%s824 + $0x64] sm:%s817]
          %879 = vst [vmem:[%s825 + $0x68] sm:%s817] %v878
          %v880 = vld [vmem:[%s824 + $0x74] sm:%s817]
          %881 = vst [vmem:[%s825 + $0x6c] sm:%s817] %v880
          %v882 = vld [vmem:[%s824 + $0x68] sm:%s817]
          %883 = vst [vmem:[%s825 + $0x70] sm:%s817] %v882
          %v884 = vld [vmem:[%s824 + $0x78] sm:%s817]
          %885 = vst [vmem:[%s825 + $0x74] sm:%s817] %v884
          %v886 = vld [vmem:[%s824 + $0x6c] sm:%s817]
          %887 = vst [vmem:[%s825 + $0x78] sm:%s817] %v886
          %v888 = vld [vmem:[%s824 + $0x7c] sm:%s817]
          %889 = vst [vmem:[%s825 + $0x7c] sm:%s817] %v888
        $region155: #{lstm_model3_forward.1} parent=142 // loop_footer
          %s823 = sadd.s32 1, %s819
        $region156: #{lstm_model3_forward.1} parent=142 // loop_footer_branch
          %818 = sbr.rel target = $region152
        $region157: #{lstm_model3_forward.1} parent=142 // loop_exit
          _
      $region143: #{lstm_model3_forward.1} parent=127 // pred_fallthru
        _
    $region128: #{lstm_model3_forward.1} parent=1 // pred_fallthru
      _
    // Predicated region
    $region129: #{lstm_model3_forward.1} parent=1 // pred_check
      %p723 = pneg %p719
    $region130: #{lstm_model3_forward.1} parent=1 // pred_check_branch
      %725 = sbr.rel (%p723) target = $region132
    $region131: #{lstm_model3_forward.1} parent=1 // pred_region
      %s726 = sshllo.u32 0, 4
      loop: start=0, step=1, limit=1
      $region133: #{lstm_model3_forward.1} parent=131 // loop_pre_header
        _
      $region134: #{lstm_model3_forward.1} parent=131 // loop_header
        %s728 = sphi 0, %s732
        %p729 = scmp.ge.s32.totalorder %s728, 1
        %s733 = sphi %s11, %s11
        %s734 = sphi [#allocation4], [#allocation4]
      $region135: #{lstm_model3_forward.1} parent=131 // loop_header_branch
        %731 = sbr.rel (%p729) target = $region139
      $region136: #{lstm_model3_forward.1} parent=131 // loop_body
        %v735 = vld [vmem:[%s733] sm:%s726]
        %736 = vst [vmem:[%s734] sm:%s726] %v735
        %v737 = vld [vmem:[%s733 + $0x10] sm:%s726]
        %738 = vst [vmem:[%s734 + $0x4] sm:%s726] %v737
        %v739 = vld [vmem:[%s733 + $0x4] sm:%s726]
        %740 = vst [vmem:[%s734 + $0x8] sm:%s726] %v739
        %v741 = vld [vmem:[%s733 + $0x14] sm:%s726]
        %742 = vst [vmem:[%s734 + $0xc] sm:%s726] %v741
        %v743 = vld [vmem:[%s733 + $0x8] sm:%s726]
        %744 = vst [vmem:[%s734 + $0x10] sm:%s726] %v743
        %v745 = vld [vmem:[%s733 + $0x18] sm:%s726]
        %746 = vst [vmem:[%s734 + $0x14] sm:%s726] %v745
        %v747 = vld [vmem:[%s733 + $0xc] sm:%s726]
        %748 = vst [vmem:[%s734 + $0x18] sm:%s726] %v747
        %v749 = vld [vmem:[%s733 + $0x1c] sm:%s726]
        %750 = vst [vmem:[%s734 + $0x1c] sm:%s726] %v749
        %v751 = vld [vmem:[%s733 + $0x20] sm:%s726]
        %752 = vst [vmem:[%s734 + $0x20] sm:%s726] %v751
        %v753 = vld [vmem:[%s733 + $0x30] sm:%s726]
        %754 = vst [vmem:[%s734 + $0x24] sm:%s726] %v753
        %v755 = vld [vmem:[%s733 + $0x24] sm:%s726]
        %756 = vst [vmem:[%s734 + $0x28] sm:%s726] %v755
        %v757 = vld [vmem:[%s733 + $0x34] sm:%s726]
        %758 = vst [vmem:[%s734 + $0x2c] sm:%s726] %v757
        %v759 = vld [vmem:[%s733 + $0x28] sm:%s726]
        %760 = vst [vmem:[%s734 + $0x30] sm:%s726] %v759
        %v761 = vld [vmem:[%s733 + $0x38] sm:%s726]
        %762 = vst [vmem:[%s734 + $0x34] sm:%s726] %v761
        %v763 = vld [vmem:[%s733 + $0x2c] sm:%s726]
        %764 = vst [vmem:[%s734 + $0x38] sm:%s726] %v763
        %v765 = vld [vmem:[%s733 + $0x3c] sm:%s726]
        %766 = vst [vmem:[%s734 + $0x3c] sm:%s726] %v765
        %v767 = vld [vmem:[%s733 + $0x40] sm:%s726]
        %768 = vst [vmem:[%s734 + $0x40] sm:%s726] %v767
        %v769 = vld [vmem:[%s733 + $0x50] sm:%s726]
        %770 = vst [vmem:[%s734 + $0x44] sm:%s726] %v769
        %v771 = vld [vmem:[%s733 + $0x44] sm:%s726]
        %772 = vst [vmem:[%s734 + $0x48] sm:%s726] %v771
        %v773 = vld [vmem:[%s733 + $0x54] sm:%s726]
        %774 = vst [vmem:[%s734 + $0x4c] sm:%s726] %v773
        %v775 = vld [vmem:[%s733 + $0x48] sm:%s726]
        %776 = vst [vmem:[%s734 + $0x50] sm:%s726] %v775
        %v777 = vld [vmem:[%s733 + $0x58] sm:%s726]
        %778 = vst [vmem:[%s734 + $0x54] sm:%s726] %v777
        %v779 = vld [vmem:[%s733 + $0x4c] sm:%s726]
        %780 = vst [vmem:[%s734 + $0x58] sm:%s726] %v779
        %v781 = vld [vmem:[%s733 + $0x5c] sm:%s726]
        %782 = vst [vmem:[%s734 + $0x5c] sm:%s726] %v781
        %v783 = vld [vmem:[%s733 + $0x60] sm:%s726]
        %784 = vst [vmem:[%s734 + $0x60] sm:%s726] %v783
        %v785 = vld [vmem:[%s733 + $0x70] sm:%s726]
        %786 = vst [vmem:[%s734 + $0x64] sm:%s726] %v785
        %v787 = vld [vmem:[%s733 + $0x64] sm:%s726]
        %788 = vst [vmem:[%s734 + $0x68] sm:%s726] %v787
        %v789 = vld [vmem:[%s733 + $0x74] sm:%s726]
        %790 = vst [vmem:[%s734 + $0x6c] sm:%s726] %v789
        %v791 = vld [vmem:[%s733 + $0x68] sm:%s726]
        %792 = vst [vmem:[%s734 + $0x70] sm:%s726] %v791
        %v793 = vld [vmem:[%s733 + $0x78] sm:%s726]
        %794 = vst [vmem:[%s734 + $0x74] sm:%s726] %v793
        %v795 = vld [vmem:[%s733 + $0x6c] sm:%s726]
        %796 = vst [vmem:[%s734 + $0x78] sm:%s726] %v795
        %v797 = vld [vmem:[%s733 + $0x7c] sm:%s726]
        %798 = vst [vmem:[%s734 + $0x7c] sm:%s726] %v797
      $region137: #{lstm_model3_forward.1} parent=131 // loop_footer
        %s732 = sadd.s32 1, %s728
      $region138: #{lstm_model3_forward.1} parent=131 // loop_footer_branch
        %727 = sbr.rel target = $region134
      $region139: #{lstm_model3_forward.1} parent=131 // loop_exit
        _
    $region132: #{lstm_model3_forward.1} parent=1 // pred_fallthru
      _
    // Predicated region
    $region158: #{lstm_model3_forward.1} parent=1 // pred_check
      _
    $region159: #{lstm_model3_forward.1} parent=1 // pred_check_branch
      %892 = sbr.rel (0) target = $region161
    $region160: #{lstm_model3_forward.1} parent=1 // pred_region
      %893 = vsyncadd %s717, 2048
    $region161: #{lstm_model3_forward.1} parent=1 // pred_fallthru
      _
    %s894 = scalar_lea.sflag [#allocation6], 3
    %p896 = scmp.lt.u32.totalorder 256, 8
    %p897 = pneg %p896
    // Predicated region
    $region162: #{lstm_model3_forward.1} parent=1 // pred_check
      _
    $region163: #{lstm_model3_forward.1} parent=1 // pred_check_branch
      %899 = sbr.rel (%p896) target = $region165
    $region164: #{lstm_model3_forward.1} parent=1 // pred_region
      %s914 = sand.u32 256, 7
      %p915 = scmp.eq.s32.totalorder %s914, 0
      // Predicated region
      $region177: #{lstm_model3_forward.1} parent=164 // pred_check
        %p916 = pneg %p915
      $region178: #{lstm_model3_forward.1} parent=164 // pred_check_branch
        %918 = sbr.rel (%p916) target = $region180
      $region179: #{lstm_model3_forward.1} parent=164 // pred_region
        loop: start=0, step=1, limit=1
        $region181: #{lstm_model3_forward.1} parent=179 // loop_pre_header
          _
        $region182: #{lstm_model3_forward.1} parent=179 // loop_header
          %s920 = sphi 0, %s924
          %p921 = scmp.ge.s32.totalorder %s920, 1
          %s925 = sphi %s13, %s13
          %s926 = sphi [#allocation5], [#allocation5]
        $region183: #{lstm_model3_forward.1} parent=179 // loop_header_branch
          %923 = sbr.rel (%p921) target = $region187
        $region184: #{lstm_model3_forward.1} parent=179 // loop_body
          %v927 = vld [vmem:[%s925] sm:$0xff]
          %928 = vst [vmem:[%s926] sm:$0xff] %v927
          %v929 = vld [vmem:[%s925 + $0x8] sm:$0xff]
          %930 = vst [vmem:[%s926 + $0x8] sm:$0xff] %v929
          %v931 = vld [vmem:[%s925 + $0x10] sm:$0xff]
          %932 = vst [vmem:[%s926 + $0x10] sm:$0xff] %v931
          %v933 = vld [vmem:[%s925 + $0x18] sm:$0xff]
          %934 = vst [vmem:[%s926 + $0x18] sm:$0xff] %v933
          %v935 = vld [vmem:[%s925 + $0x20] sm:$0xff]
          %936 = vst [vmem:[%s926 + $0x20] sm:$0xff] %v935
          %v937 = vld [vmem:[%s925 + $0x28] sm:$0xff]
          %938 = vst [vmem:[%s926 + $0x28] sm:$0xff] %v937
          %v939 = vld [vmem:[%s925 + $0x30] sm:$0xff]
          %940 = vst [vmem:[%s926 + $0x30] sm:$0xff] %v939
          %v941 = vld [vmem:[%s925 + $0x38] sm:$0xff]
          %942 = vst [vmem:[%s926 + $0x38] sm:$0xff] %v941
          %v943 = vld [vmem:[%s925 + $0x40] sm:$0xff]
          %944 = vst [vmem:[%s926 + $0x40] sm:$0xff] %v943
          %v945 = vld [vmem:[%s925 + $0x48] sm:$0xff]
          %946 = vst [vmem:[%s926 + $0x48] sm:$0xff] %v945
          %v947 = vld [vmem:[%s925 + $0x50] sm:$0xff]
          %948 = vst [vmem:[%s926 + $0x50] sm:$0xff] %v947
          %v949 = vld [vmem:[%s925 + $0x58] sm:$0xff]
          %950 = vst [vmem:[%s926 + $0x58] sm:$0xff] %v949
          %v951 = vld [vmem:[%s925 + $0x60] sm:$0xff]
          %952 = vst [vmem:[%s926 + $0x60] sm:$0xff] %v951
          %v953 = vld [vmem:[%s925 + $0x68] sm:$0xff]
          %954 = vst [vmem:[%s926 + $0x68] sm:$0xff] %v953
          %v955 = vld [vmem:[%s925 + $0x70] sm:$0xff]
          %956 = vst [vmem:[%s926 + $0x70] sm:$0xff] %v955
          %v957 = vld [vmem:[%s925 + $0x78] sm:$0xff]
          %958 = vst [vmem:[%s926 + $0x78] sm:$0xff] %v957
          %v959 = vld [vmem:[%s925 + $0x80] sm:$0xff]
          %960 = vst [vmem:[%s926 + $0x80] sm:$0xff] %v959
          %v961 = vld [vmem:[%s925 + $0x88] sm:$0xff]
          %962 = vst [vmem:[%s926 + $0x88] sm:$0xff] %v961
          %v963 = vld [vmem:[%s925 + $0x90] sm:$0xff]
          %964 = vst [vmem:[%s926 + $0x90] sm:$0xff] %v963
          %v965 = vld [vmem:[%s925 + $0x98] sm:$0xff]
          %966 = vst [vmem:[%s926 + $0x98] sm:$0xff] %v965
          %v967 = vld [vmem:[%s925 + $0xa0] sm:$0xff]
          %968 = vst [vmem:[%s926 + $0xa0] sm:$0xff] %v967
          %v969 = vld [vmem:[%s925 + $0xa8] sm:$0xff]
          %970 = vst [vmem:[%s926 + $0xa8] sm:$0xff] %v969
          %v971 = vld [vmem:[%s925 + $0xb0] sm:$0xff]
          %972 = vst [vmem:[%s926 + $0xb0] sm:$0xff] %v971
          %v973 = vld [vmem:[%s925 + $0xb8] sm:$0xff]
          %974 = vst [vmem:[%s926 + $0xb8] sm:$0xff] %v973
          %v975 = vld [vmem:[%s925 + $0xc0] sm:$0xff]
          %976 = vst [vmem:[%s926 + $0xc0] sm:$0xff] %v975
          %v977 = vld [vmem:[%s925 + $0xc8] sm:$0xff]
          %978 = vst [vmem:[%s926 + $0xc8] sm:$0xff] %v977
          %v979 = vld [vmem:[%s925 + $0xd0] sm:$0xff]
          %980 = vst [vmem:[%s926 + $0xd0] sm:$0xff] %v979
          %v981 = vld [vmem:[%s925 + $0xd8] sm:$0xff]
          %982 = vst [vmem:[%s926 + $0xd8] sm:$0xff] %v981
          %v983 = vld [vmem:[%s925 + $0xe0] sm:$0xff]
          %984 = vst [vmem:[%s926 + $0xe0] sm:$0xff] %v983
          %v985 = vld [vmem:[%s925 + $0xe8] sm:$0xff]
          %986 = vst [vmem:[%s926 + $0xe8] sm:$0xff] %v985
          %v987 = vld [vmem:[%s925 + $0xf0] sm:$0xff]
          %988 = vst [vmem:[%s926 + $0xf0] sm:$0xff] %v987
          %v989 = vld [vmem:[%s925 + $0xf8] sm:$0xff]
          %990 = vst [vmem:[%s926 + $0xf8] sm:$0xff] %v989
        $region185: #{lstm_model3_forward.1} parent=179 // loop_footer
          %s924 = sadd.s32 1, %s920
        $region186: #{lstm_model3_forward.1} parent=179 // loop_footer_branch
          %919 = sbr.rel target = $region182
        $region187: #{lstm_model3_forward.1} parent=179 // loop_exit
          _
      $region180: #{lstm_model3_forward.1} parent=164 // pred_fallthru
        _
      %p991 = pneg %p915
      // Predicated region
      $region188: #{lstm_model3_forward.1} parent=164 // pred_check
        _
      $region189: #{lstm_model3_forward.1} parent=164 // pred_check_branch
        %993 = sbr.rel (%p915) target = $region191
      $region190: #{lstm_model3_forward.1} parent=164 // pred_region
        %s994 = sand.u32 256, 7
      $region191: #{lstm_model3_forward.1} parent=164 // pred_fallthru
        _
    $region165: #{lstm_model3_forward.1} parent=1 // pred_fallthru
      _
    // Predicated region
    $region166: #{lstm_model3_forward.1} parent=1 // pred_check
      %p900 = pneg %p896
    $region167: #{lstm_model3_forward.1} parent=1 // pred_check_branch
      %902 = sbr.rel (%p900) target = $region169
    $region168: #{lstm_model3_forward.1} parent=1 // pred_region
      %s903 = sshllo.u32 0, 256
      loop: start=0, step=1, limit=1
      $region170: #{lstm_model3_forward.1} parent=168 // loop_pre_header
        _
      $region171: #{lstm_model3_forward.1} parent=168 // loop_header
        %s905 = sphi 0, %s909
        %p906 = scmp.ge.s32.totalorder %s905, 1
        %s910 = sphi %s13, %s13
        %s911 = sphi [#allocation5], [#allocation5]
      $region172: #{lstm_model3_forward.1} parent=168 // loop_header_branch
        %908 = sbr.rel (%p906) target = $region176
      $region173: #{lstm_model3_forward.1} parent=168 // loop_body
        %v912 = vld [vmem:[%s910] sm:%s903]
        %913 = vst [vmem:[%s911] sm:%s903] %v912
      $region174: #{lstm_model3_forward.1} parent=168 // loop_footer
        %s909 = sadd.s32 1, %s905
      $region175: #{lstm_model3_forward.1} parent=168 // loop_footer_branch
        %904 = sbr.rel target = $region171
      $region176: #{lstm_model3_forward.1} parent=168 // loop_exit
        _
    $region169: #{lstm_model3_forward.1} parent=1 // pred_fallthru
      _
    // Predicated region
    $region192: #{lstm_model3_forward.1} parent=1 // pred_check
      _
    $region193: #{lstm_model3_forward.1} parent=1 // pred_check_branch
      %997 = sbr.rel (0) target = $region195
    $region194: #{lstm_model3_forward.1} parent=1 // pred_region
      %998 = vsyncadd %s894, 4096
    $region195: #{lstm_model3_forward.1} parent=1 // pred_fallthru
      _
    %v999 = vld [vmem:[%s3] sm:$0xff]
    %v1000 = vld [vmem:[%s3 + $0x8] sm:$0xff]
    %v1001 = vld [vmem:[%s3 + $0x10] sm:$0xff]
    %v1002 = vld [vmem:[%s3 + $0x18] sm:$0xff]
    %v1003 = vld [vmem:[%s3 + $0x20] sm:$0xff]
    %v1004 = vld [vmem:[%s3 + $0x28] sm:$0xff]
    %v1005 = vld [vmem:[%s3 + $0x30] sm:$0xff]
    %v1006 = vld [vmem:[%s3 + $0x38] sm:$0xff]
    %v1007 = vld [vmem:[%s3 + $0x40] sm:$0xff]
    %v1008 = vld [vmem:[%s3 + $0x48] sm:$0xff]
    %v1009 = vld [vmem:[%s3 + $0x50] sm:$0xff]
    %v1010 = vld [vmem:[%s3 + $0x58] sm:$0xff]
    %v1011 = vld [vmem:[%s3 + $0x60] sm:$0xff]
    %v1012 = vld [vmem:[%s3 + $0x68] sm:$0xff]
    %v1013 = vld [vmem:[%s3 + $0x70] sm:$0xff]
    %v1014 = vld [vmem:[%s3 + $0x78] sm:$0xff]
    %v1015 = vld [vmem:[%s4] sm:$0x3]
    %v1016 = vld [vmem:[%s0] sm:$0xff]
    %v1017 = vld [vmem:[%s0 + $0x8] sm:$0xff]
    %v1018 = vld [vmem:[%s0 + $0x10] sm:$0xff]
    %v1019 = vld [vmem:[%s0 + $0x18] sm:$0xff]
    %v1020 = vld [vmem:[%s0 + $0x20] sm:$0xff]
    %v1021 = vld [vmem:[%s0 + $0x28] sm:$0xff]
    %v1022 = vld [vmem:[%s0 + $0x30] sm:$0xff]
    %v1023 = vld [vmem:[%s0 + $0x38] sm:$0xff]
    %v1024 = vld [vmem:[%s1] sm:$0xf]
    %v1025 = vld [vmem:[%s2] sm:$0x1]
    %v1027 = vlaneseq
    %v1028 = vshrl.u32 %v1027, 7
    %v1029 = vsub.s32 0, %v1028
    %v1030 = vrot.slane %v1025, %v1029
    %vm1032 = vcmask 31744
    %v1034 = vsel %vm1032, %v1016, 0
    %v1037 = vsel %vm1032, %v1017, 0
    %v1040 = vsel %vm1032, %v1018, 0
    %v1043 = vsel %vm1032, %v1019, 0
    %v1046 = vsel %vm1032, %v1020, 0
    %v1049 = vsel %vm1032, %v1021, 0
    %v1052 = vsel %vm1032, %v1022, 0
    %v1055 = vsel %vm1032, %v1023, 0
    %vm1057 = vcmask 1043456
    %v1059 = vsel %vm1057, %v1024, 0
    %1061 = vmatprep.subr.mxu0 0.0
    %1062 = vmatpush1.msra.mxu0 %v1059
    %1063 = vmatprep.subr.mxu0 0.0
    %1064 = vmatpush1.msra.mxu0 0.0
    %1065 = vmatprep.subr.mxu0 0.0
    %1066 = vmatpush1.msra.mxu0 0.0
    %1067 = vmatprep.subr.mxu0 0.0
    %1068 = vmatpush1.msra.mxu0 0.0
    %1069 = vmatprep.subr.mxu0 0.0
    %1070 = vmatpush1.msra.mxu0 0.0
    %1071 = vmatprep.subr.mxu0 0.0
    %1072 = vmatpush1.msra.mxu0 0.0
    %1073 = vmatprep.subr.mxu0 0.0
    %1074 = vmatpush1.msra.mxu0 0.0
    %1075 = vmatprep.subr.mxu0 0.0
    %1076 = vmatpush1.msra.mxu0 0.0
    %1077 = vmatprep.subr.mxu0 0.0
    %1078 = vmatpush1.msra.mxu0 0.0
    %1079 = vmatprep.subr.mxu0 0.0
    %1080 = vmatpush1.msra.mxu0 0.0
    %1081 = vmatprep.subr.mxu0 0.0
    %1082 = vmatpush1.msra.mxu0 0.0
    %1083 = vmatprep.subr.mxu0 0.0
    %1084 = vmatpush1.msra.mxu0 0.0
    %1085 = vmatprep.subr.mxu0 0.0
    %1086 = vmatpush1.msra.mxu0 0.0
    %1087 = vmatprep.subr.mxu0 0.0
    %1088 = vmatpush1.msra.mxu0 0.0
    %1089 = vmatprep.subr.mxu0 0.0
    %1090 = vmatpush1.msra.mxu0 0.0
    %1091 = vmatprep.subr.mxu0 0.0
    %1092 = vmatpush1.msra.mxu0 0.0
    %1093 = vmatprep.subr.mxu0 0.0
    %1094 = vmatpush1.msra.mxu0 0.0
    %1095 = vmatprep.subr.mxu0 0.0
    %1096 = vmatpush1.msra.mxu0 0.0
    %1097 = vmatprep.subr.mxu0 0.0
    %1098 = vmatpush1.msra.mxu0 0.0
    %1099 = vmatprep.subr.mxu0 0.0
    %1100 = vmatpush1.msra.mxu0 0.0
    %1101 = vmatprep.subr.mxu0 0.0
    %1102 = vmatpush1.msra.mxu0 0.0
    %1103 = vmatprep.subr.mxu0 0.0
    %1104 = vmatpush1.msra.mxu0 0.0
    %1105 = vmatprep.subr.mxu0 0.0
    %1106 = vmatpush1.msra.mxu0 0.0
    %1107 = vmatprep.subr.mxu0 0.0
    %1108 = vmatpush1.msra.mxu0 0.0
    %1109 = vmatprep.subr.mxu0 0.0
    %1110 = vmatpush1.msra.mxu0 0.0
    %1111 = vmatprep.subr.mxu0 0.0
    %1112 = vmatpush1.msra.mxu0 0.0
    %1113 = vmatprep.subr.mxu0 0.0
    %1114 = vmatpush1.msra.mxu0 0.0
    %1115 = vmatprep.subr.mxu0 0.0
    %1116 = vmatpush1.msra.mxu0 0.0
    %1117 = vmatprep.subr.mxu0 0.0
    %1118 = vmatpush1.msra.mxu0 0.0
    %1119 = vmatprep.subr.mxu0 0.0
    %1120 = vmatpush1.msra.mxu0 0.0
    %1121 = vmatprep.subr.mxu0 0.0
    %1122 = vmatpush1.msra.mxu0 0.0
    %1123 = vmatprep.subr.mxu0 0.0
    %1124 = vmatpush1.msra.mxu0 0.0
    %1125 = vmatprep.mubr.f32.mxu0 0.0
    %1126 = vmatmul.mubr.f32.gmra.mrb[0].mxu0 %v1034
    %v1127 = vpop.f32.mrb[0].mxu0
    %v1128 = vadd.f32 %v1030, %v1127
    %v1129 = vpop.f32.mrb[0].mxu0
    %1130 = vmatprep.mubr.f32.mxu0 0.0
    %1131 = vmatmul.mubr.f32.gmra.mrb[0].mxu0 %v1037
    %v1132 = vpop.f32.mrb[0].mxu0
    %v1133 = vadd.f32 %v1030, %v1132
    %v1134 = vpop.f32.mrb[0].mxu0
    %1135 = vmatprep.mubr.f32.mxu0 0.0
    %1136 = vmatmul.mubr.f32.gmra.mrb[0].mxu0 %v1040
    %v1137 = vpop.f32.mrb[0].mxu0
    %v1138 = vadd.f32 %v1030, %v1137
    %v1139 = vpop.f32.mrb[0].mxu0
    %1140 = vmatprep.mubr.f32.mxu0 0.0
    %1141 = vmatmul.mubr.f32.gmra.mrb[0].mxu0 %v1043
    %v1142 = vpop.f32.mrb[0].mxu0
    %v1143 = vadd.f32 %v1030, %v1142
    %v1144 = vpop.f32.mrb[0].mxu0
    %1145 = vmatprep.mubr.f32.mxu0 0.0
    %1146 = vmatmul.mubr.f32.gmra.mrb[0].mxu0 %v1046
    %v1147 = vpop.f32.mrb[0].mxu0
    %v1148 = vadd.f32 %v1030, %v1147
    %v1149 = vpop.f32.mrb[0].mxu0
    %1150 = vmatprep.mubr.f32.mxu0 0.0
    %1151 = vmatmul.mubr.f32.gmra.mrb[0].mxu0 %v1049
    %v1152 = vpop.f32.mrb[0].mxu0
    %v1153 = vadd.f32 %v1030, %v1152
    %v1154 = vpop.f32.mrb[0].mxu0
    %1155 = vmatprep.mubr.f32.mxu0 0.0
    %1156 = vmatmul.mubr.f32.gmra.mrb[0].mxu0 %v1052
    %v1157 = vpop.f32.mrb[0].mxu0
    %v1158 = vadd.f32 %v1030, %v1157
    %v1159 = vpop.f32.mrb[0].mxu0
    %1160 = vmatprep.mubr.f32.mxu0 0.0
    %1161 = vmatmul.mubr.f32.gmra.mrb[0].mxu0 %v1055
    %v1162 = vpop.f32.mrb[0].mxu0
    %v1163 = vadd.f32 %v1030, %v1162
    %v1164 = vpop.f32.mrb[0].mxu0
    %1165 = vdwg.mxu0
    %v1166 = vlaneseq
    %v1167 = vand.u32 %v1166, 127
    %vm1168 = vcmp.ge.s32.totalorder %v1167, 64
    %vm1169 = vcmp.lt.s32.totalorder %v1167, 96
    %vm1170 = vmand %vm1168, %vm1169
    %v1171 = vsel %vm1170, 2.0, 1.0
    %v1172 = vmul.f32 %v1128, %v1171
    %v1173 = vxor.u32 %v1172, 2147483648
    %v1174 = vmul.f32 %v1173, 1.442695
    %v1175 = vpow.pop %v1174
    %v1176 = vadd.f32 %v1175, 1.0
    %v1177 = vrcp.pop %v1176
    %v1178 = vmul.f32 1.0, %v1177
    %v1179 = vmul.f32 %v1178, 2.0
    %v1180 = vsub.f32 %v1179, 1.0
    %v1181 = vmul.f32 %v1178, 0.0
    %1183 = vrot.lane.b32.xlu0 %v1180, 64
    %v1184 = vpop.permute.xlu0 %1183
    %v1186 = vmul.f32 %v1178, %v1184
    %1188 = vrot.lane.b32.xlu0 %v1186, 32
    %v1189 = vpop.permute.xlu0 %1188
    %v1191 = vadd.f32 %v1181, %v1189
    %v1192 = vtanh.pop %v1191
    %1194 = vrot.lane.b32.xlu0 %v1192, 64
    %v1195 = vpop.permute.xlu0 %1194
    %v1197 = vmul.f32 %v1178, %v1195
    %1199 = vrot.lane.b32.xlu0 %v1197, 32
    %v1200 = vpop.permute.xlu0 %1199
    %vm1202 = vcmask 261120
    %v1203 = vsel %vm1202, %v1200, 0.0
    %v1205 = vlaneseq
    %v1206 = vshrl.u32 %v1205, 7
    %v1207 = vsub.s32 0, %v1206
    %v1208 = vrot.slane %v1015, %v1207
    %v1209 = vlaneseq
    %v1210 = vshrl.u32 %v1209, 7
    %v1211 = vsub.s32 1, %v1210
    %v1212 = vrot.slane %v1015, %v1211
    %vm1215 = vcmask 523264
    %v1217 = vsel %vm1215, %v1203, 0
    %1219 = vmatprep.subr.mxu0 %v1000
    %1220 = vmatpush1.msra.mxu0 %v999
    %1221 = vmatprep.subr.mxu0 %v1002
    %1222 = vmatpush1.msra.mxu0 %v1001
    %1223 = vmatprep.subr.mxu0 %v1004
    %1224 = vmatpush1.msra.mxu0 %v1003
    %1225 = vmatprep.subr.mxu0 %v1006
    %1226 = vmatpush1.msra.mxu0 %v1005
    %1227 = vmatprep.subr.mxu0 %v1008
    %1228 = vmatpush1.msra.mxu0 %v1007
    %1229 = vmatprep.subr.mxu0 %v1010
    %1230 = vmatpush1.msra.mxu0 %v1009
    %1231 = vmatprep.subr.mxu0 %v1012
    %1232 = vmatpush1.msra.mxu0 %v1011
    %1233 = vmatprep.subr.mxu0 %v1014
    %1234 = vmatpush1.msra.mxu0 %v1013
    %1235 = vmatprep.subr.mxu0 0.0
    %1236 = vmatpush1.msra.mxu0 0.0
    %1237 = vmatprep.subr.mxu0 0.0
    %1238 = vmatpush1.msra.mxu0 0.0
    %1239 = vmatprep.subr.mxu0 0.0
    %1240 = vmatpush1.msra.mxu0 0.0
    %1241 = vmatprep.subr.mxu0 0.0
    %1242 = vmatpush1.msra.mxu0 0.0
    %1243 = vmatprep.subr.mxu0 0.0
    %1244 = vmatpush1.msra.mxu0 0.0
    %1245 = vmatprep.subr.mxu0 0.0
    %1246 = vmatpush1.msra.mxu0 0.0
    %1247 = vmatprep.subr.mxu0 0.0
    %1248 = vmatpush1.msra.mxu0 0.0
    %1249 = vmatprep.subr.mxu0 0.0
    %1250 = vmatpush1.msra.mxu0 0.0
    %1251 = vmatprep.subr.mxu0 0.0
    %1252 = vmatpush1.msra.mxu0 0.0
    %1253 = vmatprep.subr.mxu0 0.0
    %1254 = vmatpush1.msra.mxu0 0.0
    %1255 = vmatprep.subr.mxu0 0.0
    %1256 = vmatpush1.msra.mxu0 0.0
    %1257 = vmatprep.subr.mxu0 0.0
    %1258 = vmatpush1.msra.mxu0 0.0
    %1259 = vmatprep.subr.mxu0 0.0
    %1260 = vmatpush1.msra.mxu0 0.0
    %1261 = vmatprep.subr.mxu0 0.0
    %1262 = vmatpush1.msra.mxu0 0.0
    %1263 = vmatprep.subr.mxu0 0.0
    %1264 = vmatpush1.msra.mxu0 0.0
    %1265 = vmatprep.subr.mxu0 0.0
    %1266 = vmatpush1.msra.mxu0 0.0
    %1267 = vmatprep.subr.mxu0 0.0
    %1268 = vmatpush1.msra.mxu0 0.0
    %1269 = vmatprep.subr.mxu0 0.0
    %1270 = vmatpush1.msra.mxu0 0.0
    %1271 = vmatprep.subr.mxu0 0.0
    %1272 = vmatpush1.msra.mxu0 0.0
    %1273 = vmatprep.subr.mxu0 0.0
    %1274 = vmatpush1.msra.mxu0 0.0
    %1275 = vmatprep.subr.mxu0 0.0
    %1276 = vmatpush1.msra.mxu0 0.0
    %1277 = vmatprep.subr.mxu0 0.0
    %1278 = vmatpush1.msra.mxu0 0.0
    %1279 = vmatprep.subr.mxu0 0.0
    %1280 = vmatpush1.msra.mxu0 0.0
    %1281 = vmatprep.subr.mxu0 0.0
    %1282 = vmatpush1.msra.mxu0 0.0
    %1283 = vmatprep.mubr.f32.mxu0 0.0
    %1284 = vmatmul.mubr.f32.gmra.mrb[0].mxu0 %v1217
    %v1285 = vpop.f32.mrb[0].mxu0
    %v1286 = vadd.f32 %v1208, %v1285
    %v1287 = vpop.f32.mrb[0].mxu0
    %v1288 = vadd.f32 %v1212, %v1287
    %1289 = vdwg.mxu0
    %v1290 = vmul.f32 %v1286, %v1171
    %v1291 = vxor.u32 %v1290, 2147483648
    %v1292 = vmul.f32 %v1291, 1.442695
    %v1293 = vpow.pop %v1292
    %v1294 = vadd.f32 %v1293, 1.0
    %v1295 = vrcp.pop %v1294
    %v1296 = vmul.f32 1.0, %v1295
    %v1297 = vmul.f32 %v1296, 2.0
    %v1298 = vsub.f32 %v1297, 1.0
    %v1299 = vmul.f32 %v1296, 0.0
    %1301 = vrot.lane.b32.xlu0 %v1298, 64
    %v1302 = vpop.permute.xlu0 %1301
    %v1304 = vmul.f32 %v1296, %v1302
    %1306 = vrot.lane.b32.xlu0 %v1304, 32
    %v1307 = vpop.permute.xlu0 %1306
    %v1309 = vadd.f32 %v1299, %v1307
    %v1310 = vtanh.pop %v1309
    %1312 = vrot.lane.b32.xlu0 %v1310, 64
    %v1313 = vpop.permute.xlu0 %1312
    %v1315 = vmul.f32 %v1296, %v1313
    %v1316 = vadd.f32 %v1133, %v1288
    %v1317 = vmul.f32 %v1316, %v1171
    %v1318 = vxor.u32 %v1317, 2147483648
    %v1319 = vmul.f32 %v1318, 1.442695
    %v1320 = vpow.pop %v1319
    %v1321 = vadd.f32 %v1320, 1.0
    %v1322 = vrcp.pop %v1321
    %v1323 = vmul.f32 1.0, %v1322
    %v1324 = vmul.f32 %v1323, 2.0
    %v1325 = vsub.f32 %v1324, 1.0
    %v1326 = vmul.f32 %v1323, %v1191
    %1328 = vrot.lane.b32.xlu0 %v1325, 64
    %v1329 = vpop.permute.xlu0 %1328
    %v1331 = vmul.f32 %v1323, %v1329
    %1333 = vrot.lane.b32.xlu0 %v1331, 32
    %v1334 = vpop.permute.xlu0 %1333
    %v1336 = vadd.f32 %v1326, %v1334
    %v1337 = vtanh.pop %v1336
    %1339 = vrot.lane.b32.xlu0 %v1337, 64
    %v1340 = vpop.permute.xlu0 %1339
    %v1342 = vmul.f32 %v1323, %v1340
    %1344 = vrot.lane.b32.xlu0 %v1342, 32
    %v1345 = vpop.permute.xlu0 %1344
    %1348 = vrot.lane.b32.xlu0 %v1315, 64
    %v1349 = vpop.permute.xlu0 %1348
    %v1351 = vsel %vm1202, %v1345, %v1349
    %v1353 = vsel %vm1215, %v1351, 0
    %1355 = vmatprep.subr.mxu0 %v1000
    %1356 = vmatpush1.msra.mxu0 %v999
    %1357 = vmatprep.subr.mxu0 %v1002
    %1358 = vmatpush1.msra.mxu0 %v1001
    %1359 = vmatprep.subr.mxu0 %v1004
    %1360 = vmatpush1.msra.mxu0 %v1003
    %1361 = vmatprep.subr.mxu0 %v1006
    %1362 = vmatpush1.msra.mxu0 %v1005
    %1363 = vmatprep.subr.mxu0 %v1008
    %1364 = vmatpush1.msra.mxu0 %v1007
    %1365 = vmatprep.subr.mxu0 %v1010
    %1366 = vmatpush1.msra.mxu0 %v1009
    %1367 = vmatprep.subr.mxu0 %v1012
    %1368 = vmatpush1.msra.mxu0 %v1011
    %1369 = vmatprep.subr.mxu0 %v1014
    %1370 = vmatpush1.msra.mxu0 %v1013
    %1371 = vmatprep.subr.mxu0 0.0
    %1372 = vmatpush1.msra.mxu0 0.0
    %1373 = vmatprep.subr.mxu0 0.0
    %1374 = vmatpush1.msra.mxu0 0.0
    %1375 = vmatprep.subr.mxu0 0.0
    %1376 = vmatpush1.msra.mxu0 0.0
    %1377 = vmatprep.subr.mxu0 0.0
    %1378 = vmatpush1.msra.mxu0 0.0
    %1379 = vmatprep.subr.mxu0 0.0
    %1380 = vmatpush1.msra.mxu0 0.0
    %1381 = vmatprep.subr.mxu0 0.0
    %1382 = vmatpush1.msra.mxu0 0.0
    %1383 = vmatprep.subr.mxu0 0.0
    %1384 = vmatpush1.msra.mxu0 0.0
    %1385 = vmatprep.subr.mxu0 0.0
    %1386 = vmatpush1.msra.mxu0 0.0
    %1387 = vmatprep.subr.mxu0 0.0
    %1388 = vmatpush1.msra.mxu0 0.0
    %1389 = vmatprep.subr.mxu0 0.0
    %1390 = vmatpush1.msra.mxu0 0.0
    %1391 = vmatprep.subr.mxu0 0.0
    %1392 = vmatpush1.msra.mxu0 0.0
    %1393 = vmatprep.subr.mxu0 0.0
    %1394 = vmatpush1.msra.mxu0 0.0
    %1395 = vmatprep.subr.mxu0 0.0
    %1396 = vmatpush1.msra.mxu0 0.0
    %1397 = vmatprep.subr.mxu0 0.0
    %1398 = vmatpush1.msra.mxu0 0.0
    %1399 = vmatprep.subr.mxu0 0.0
    %1400 = vmatpush1.msra.mxu0 0.0
    %1401 = vmatprep.subr.mxu0 0.0
    %1402 = vmatpush1.msra.mxu0 0.0
    %1403 = vmatprep.subr.mxu0 0.0
    %1404 = vmatpush1.msra.mxu0 0.0
    %1405 = vmatprep.subr.mxu0 0.0
    %1406 = vmatpush1.msra.mxu0 0.0
    %1407 = vmatprep.subr.mxu0 0.0
    %1408 = vmatpush1.msra.mxu0 0.0
    %1409 = vmatprep.subr.mxu0 0.0
    %1410 = vmatpush1.msra.mxu0 0.0
    %1411 = vmatprep.subr.mxu0 0.0
    %1412 = vmatpush1.msra.mxu0 0.0
    %1413 = vmatprep.subr.mxu0 0.0
    %1414 = vmatpush1.msra.mxu0 0.0
    %1415 = vmatprep.subr.mxu0 0.0
    %1416 = vmatpush1.msra.mxu0 0.0
    %1417 = vmatprep.subr.mxu0 0.0
    %1418 = vmatpush1.msra.mxu0 0.0
    %1419 = vmatprep.mubr.f32.mxu0 0.0
    %1420 = vmatmul.mubr.f32.gmra.mrb[0].mxu0 %v1353
    %v1421 = vpop.f32.mrb[0].mxu0
    %v1422 = vadd.f32 %v1208, %v1421
    %v1423 = vpop.f32.mrb[0].mxu0
    %v1424 = vadd.f32 %v1212, %v1423
    %1425 = vdwg.mxu0
    %v1426 = vmul.f32 %v1422, %v1171
    %v1427 = vxor.u32 %v1426, 2147483648
    %v1428 = vmul.f32 %v1427, 1.442695
    %v1429 = vpow.pop %v1428
    %v1430 = vadd.f32 %v1429, 1.0
    %v1431 = vrcp.pop %v1430
    %v1432 = vmul.f32 1.0, %v1431
    %v1433 = vmul.f32 %v1432, 2.0
    %v1434 = vsub.f32 %v1433, 1.0
    %v1435 = vmul.f32 %v1432, %v1309
    %1437 = vrot.lane.b32.xlu0 %v1434, 64
    %v1438 = vpop.permute.xlu0 %1437
    %v1440 = vmul.f32 %v1432, %v1438
    %1442 = vrot.lane.b32.xlu0 %v1440, 32
    %v1443 = vpop.permute.xlu0 %1442
    %v1445 = vadd.f32 %v1435, %v1443
    %v1446 = vtanh.pop %v1445
    %1448 = vrot.lane.b32.xlu0 %v1446, 64
    %v1449 = vpop.permute.xlu0 %1448
    %v1451 = vmul.f32 %v1432, %v1449
    %v1452 = vadd.f32 %v1138, %v1424
    %v1453 = vmul.f32 %v1452, %v1171
    %v1454 = vxor.u32 %v1453, 2147483648
    %v1455 = vmul.f32 %v1454, 1.442695
    %v1456 = vpow.pop %v1455
    %v1457 = vadd.f32 %v1456, 1.0
    %v1458 = vrcp.pop %v1457
    %v1459 = vmul.f32 1.0, %v1458
    %v1460 = vmul.f32 %v1459, 2.0
    %v1461 = vsub.f32 %v1460, 1.0
    %v1462 = vmul.f32 %v1459, %v1336
    %1464 = vrot.lane.b32.xlu0 %v1461, 64
    %v1465 = vpop.permute.xlu0 %1464
    %v1467 = vmul.f32 %v1459, %v1465
    %1469 = vrot.lane.b32.xlu0 %v1467, 32
    %v1470 = vpop.permute.xlu0 %1469
    %v1472 = vadd.f32 %v1462, %v1470
    %v1473 = vtanh.pop %v1472
    %1475 = vrot.lane.b32.xlu0 %v1473, 64
    %v1476 = vpop.permute.xlu0 %1475
    %v1478 = vmul.f32 %v1459, %v1476
    %1480 = vrot.lane.b32.xlu0 %v1478, 32
    %v1481 = vpop.permute.xlu0 %1480
    %1484 = vrot.lane.b32.xlu0 %v1451, 64
    %v1485 = vpop.permute.xlu0 %1484
    %v1487 = vsel %vm1202, %v1481, %v1485
    %v1489 = vsel %vm1215, %v1487, 0
    %1491 = vmatprep.subr.mxu0 %v1000
    %1492 = vmatpush1.msra.mxu0 %v999
    %1493 = vmatprep.subr.mxu0 %v1002
    %1494 = vmatpush1.msra.mxu0 %v1001
    %1495 = vmatprep.subr.mxu0 %v1004
    %1496 = vmatpush1.msra.mxu0 %v1003
    %1497 = vmatprep.subr.mxu0 %v1006
    %1498 = vmatpush1.msra.mxu0 %v1005
    %1499 = vmatprep.subr.mxu0 %v1008
    %1500 = vmatpush1.msra.mxu0 %v1007
    %1501 = vmatprep.subr.mxu0 %v1010
    %1502 = vmatpush1.msra.mxu0 %v1009
    %1503 = vmatprep.subr.mxu0 %v1012
    %1504 = vmatpush1.msra.mxu0 %v1011
    %1505 = vmatprep.subr.mxu0 %v1014
    %1506 = vmatpush1.msra.mxu0 %v1013
    %1507 = vmatprep.subr.mxu0 0.0
    %1508 = vmatpush1.msra.mxu0 0.0
    %1509 = vmatprep.subr.mxu0 0.0
    %1510 = vmatpush1.msra.mxu0 0.0
    %1511 = vmatprep.subr.mxu0 0.0
    %1512 = vmatpush1.msra.mxu0 0.0
    %1513 = vmatprep.subr.mxu0 0.0
    %1514 = vmatpush1.msra.mxu0 0.0
    %1515 = vmatprep.subr.mxu0 0.0
    %1516 = vmatpush1.msra.mxu0 0.0
    %1517 = vmatprep.subr.mxu0 0.0
    %1518 = vmatpush1.msra.mxu0 0.0
    %1519 = vmatprep.subr.mxu0 0.0
    %1520 = vmatpush1.msra.mxu0 0.0
    %1521 = vmatprep.subr.mxu0 0.0
    %1522 = vmatpush1.msra.mxu0 0.0
    %1523 = vmatprep.subr.mxu0 0.0
    %1524 = vmatpush1.msra.mxu0 0.0
    %1525 = vmatprep.subr.mxu0 0.0
    %1526 = vmatpush1.msra.mxu0 0.0
    %1527 = vmatprep.subr.mxu0 0.0
    %1528 = vmatpush1.msra.mxu0 0.0
    %1529 = vmatprep.subr.mxu0 0.0
    %1530 = vmatpush1.msra.mxu0 0.0
    %1531 = vmatprep.subr.mxu0 0.0
    %1532 = vmatpush1.msra.mxu0 0.0
    %1533 = vmatprep.subr.mxu0 0.0
    %1534 = vmatpush1.msra.mxu0 0.0
    %1535 = vmatprep.subr.mxu0 0.0
    %1536 = vmatpush1.msra.mxu0 0.0
    %1537 = vmatprep.subr.mxu0 0.0
    %1538 = vmatpush1.msra.mxu0 0.0
    %1539 = vmatprep.subr.mxu0 0.0
    %1540 = vmatpush1.msra.mxu0 0.0
    %1541 = vmatprep.subr.mxu0 0.0
    %1542 = vmatpush1.msra.mxu0 0.0
    %1543 = vmatprep.subr.mxu0 0.0
    %1544 = vmatpush1.msra.mxu0 0.0
    %1545 = vmatprep.subr.mxu0 0.0
    %1546 = vmatpush1.msra.mxu0 0.0
    %1547 = vmatprep.subr.mxu0 0.0
    %1548 = vmatpush1.msra.mxu0 0.0
    %1549 = vmatprep.subr.mxu0 0.0
    %1550 = vmatpush1.msra.mxu0 0.0
    %1551 = vmatprep.subr.mxu0 0.0
    %1552 = vmatpush1.msra.mxu0 0.0
    %1553 = vmatprep.subr.mxu0 0.0
    %1554 = vmatpush1.msra.mxu0 0.0
    %1555 = vmatprep.mubr.f32.mxu0 0.0
    %1556 = vmatmul.mubr.f32.gmra.mrb[0].mxu0 %v1489
    %v1557 = vpop.f32.mrb[0].mxu0
    %v1558 = vadd.f32 %v1208, %v1557
    %v1559 = vpop.f32.mrb[0].mxu0
    %v1560 = vadd.f32 %v1212, %v1559
    %1561 = vdwg.mxu0
    %v1562 = vmul.f32 %v1558, %v1171
    %v1563 = vxor.u32 %v1562, 2147483648
    %v1564 = vmul.f32 %v1563, 1.442695
    %v1565 = vpow.pop %v1564
    %v1566 = vadd.f32 %v1565, 1.0
    %v1567 = vrcp.pop %v1566
    %v1568 = vmul.f32 1.0, %v1567
    %v1569 = vmul.f32 %v1568, 2.0
    %v1570 = vsub.f32 %v1569, 1.0
    %v1571 = vmul.f32 %v1568, %v1445
    %1573 = vrot.lane.b32.xlu0 %v1570, 64
    %v1574 = vpop.permute.xlu0 %1573
    %v1576 = vmul.f32 %v1568, %v1574
    %1578 = vrot.lane.b32.xlu0 %v1576, 32
    %v1579 = vpop.permute.xlu0 %1578
    %v1581 = vadd.f32 %v1571, %v1579
    %v1582 = vtanh.pop %v1581
    %1584 = vrot.lane.b32.xlu0 %v1582, 64
    %v1585 = vpop.permute.xlu0 %1584
    %v1587 = vmul.f32 %v1568, %v1585
    %v1588 = vadd.f32 %v1143, %v1560
    %v1589 = vmul.f32 %v1588, %v1171
    %v1590 = vxor.u32 %v1589, 2147483648
    %v1591 = vmul.f32 %v1590, 1.442695
    %v1592 = vpow.pop %v1591
    %v1593 = vadd.f32 %v1592, 1.0
    %v1594 = vrcp.pop %v1593
    %v1595 = vmul.f32 1.0, %v1594
    %v1596 = vmul.f32 %v1595, 2.0
    %v1597 = vsub.f32 %v1596, 1.0
    %v1598 = vmul.f32 %v1595, %v1472
    %1600 = vrot.lane.b32.xlu0 %v1597, 64
    %v1601 = vpop.permute.xlu0 %1600
    %v1603 = vmul.f32 %v1595, %v1601
    %1605 = vrot.lane.b32.xlu0 %v1603, 32
    %v1606 = vpop.permute.xlu0 %1605
    %v1608 = vadd.f32 %v1598, %v1606
    %v1609 = vtanh.pop %v1608
    %1611 = vrot.lane.b32.xlu0 %v1609, 64
    %v1612 = vpop.permute.xlu0 %1611
    %v1614 = vmul.f32 %v1595, %v1612
    %1616 = vrot.lane.b32.xlu0 %v1614, 32
    %v1617 = vpop.permute.xlu0 %1616
    %1620 = vrot.lane.b32.xlu0 %v1587, 64
    %v1621 = vpop.permute.xlu0 %1620
    %v1623 = vsel %vm1202, %v1617, %v1621
    %v1625 = vsel %vm1215, %v1623, 0
    %1627 = vmatprep.subr.mxu0 %v1000
    %1628 = vmatpush1.msra.mxu0 %v999
    %1629 = vmatprep.subr.mxu0 %v1002
    %1630 = vmatpush1.msra.mxu0 %v1001
    %1631 = vmatprep.subr.mxu0 %v1004
    %1632 = vmatpush1.msra.mxu0 %v1003
    %1633 = vmatprep.subr.mxu0 %v1006
    %1634 = vmatpush1.msra.mxu0 %v1005
    %1635 = vmatprep.subr.mxu0 %v1008
    %1636 = vmatpush1.msra.mxu0 %v1007
    %1637 = vmatprep.subr.mxu0 %v1010
    %1638 = vmatpush1.msra.mxu0 %v1009
    %1639 = vmatprep.subr.mxu0 %v1012
    %1640 = vmatpush1.msra.mxu0 %v1011
    %1641 = vmatprep.subr.mxu0 %v1014
    %1642 = vmatpush1.msra.mxu0 %v1013
    %1643 = vmatprep.subr.mxu0 0.0
    %1644 = vmatpush1.msra.mxu0 0.0
    %1645 = vmatprep.subr.mxu0 0.0
    %1646 = vmatpush1.msra.mxu0 0.0
    %1647 = vmatprep.subr.mxu0 0.0
    %1648 = vmatpush1.msra.mxu0 0.0
    %1649 = vmatprep.subr.mxu0 0.0
    %1650 = vmatpush1.msra.mxu0 0.0
    %1651 = vmatprep.subr.mxu0 0.0
    %1652 = vmatpush1.msra.mxu0 0.0
    %1653 = vmatprep.subr.mxu0 0.0
    %1654 = vmatpush1.msra.mxu0 0.0
    %1655 = vmatprep.subr.mxu0 0.0
    %1656 = vmatpush1.msra.mxu0 0.0
    %1657 = vmatprep.subr.mxu0 0.0
    %1658 = vmatpush1.msra.mxu0 0.0
    %1659 = vmatprep.subr.mxu0 0.0
    %1660 = vmatpush1.msra.mxu0 0.0
    %1661 = vmatprep.subr.mxu0 0.0
    %1662 = vmatpush1.msra.mxu0 0.0
    %1663 = vmatprep.subr.mxu0 0.0
    %1664 = vmatpush1.msra.mxu0 0.0
    %1665 = vmatprep.subr.mxu0 0.0
    %1666 = vmatpush1.msra.mxu0 0.0
    %1667 = vmatprep.subr.mxu0 0.0
    %1668 = vmatpush1.msra.mxu0 0.0
    %1669 = vmatprep.subr.mxu0 0.0
    %1670 = vmatpush1.msra.mxu0 0.0
    %1671 = vmatprep.subr.mxu0 0.0
    %1672 = vmatpush1.msra.mxu0 0.0
    %1673 = vmatprep.subr.mxu0 0.0
    %1674 = vmatpush1.msra.mxu0 0.0
    %1675 = vmatprep.subr.mxu0 0.0
    %1676 = vmatpush1.msra.mxu0 0.0
    %1677 = vmatprep.subr.mxu0 0.0
    %1678 = vmatpush1.msra.mxu0 0.0
    %1679 = vmatprep.subr.mxu0 0.0
    %1680 = vmatpush1.msra.mxu0 0.0
    %1681 = vmatprep.subr.mxu0 0.0
    %1682 = vmatpush1.msra.mxu0 0.0
    %1683 = vmatprep.subr.mxu0 0.0
    %1684 = vmatpush1.msra.mxu0 0.0
    %1685 = vmatprep.subr.mxu0 0.0
    %1686 = vmatpush1.msra.mxu0 0.0
    %1687 = vmatprep.subr.mxu0 0.0
    %1688 = vmatpush1.msra.mxu0 0.0
    %1689 = vmatprep.subr.mxu0 0.0
    %1690 = vmatpush1.msra.mxu0 0.0
    %1691 = vmatprep.mubr.f32.mxu0 0.0
    %1692 = vmatmul.mubr.f32.gmra.mrb[0].mxu0 %v1625
    %v1693 = vpop.f32.mrb[0].mxu0
    %v1694 = vadd.f32 %v1208, %v1693
    %v1695 = vpop.f32.mrb[0].mxu0
    %v1696 = vadd.f32 %v1212, %v1695
    %1697 = vdwg.mxu0
    %v1698 = vmul.f32 %v1694, %v1171
    %v1699 = vxor.u32 %v1698, 2147483648
    %v1700 = vmul.f32 %v1699, 1.442695
    %v1701 = vpow.pop %v1700
    %v1702 = vadd.f32 %v1701, 1.0
    %v1703 = vrcp.pop %v1702
    %v1704 = vmul.f32 1.0, %v1703
    %v1705 = vmul.f32 %v1704, 2.0
    %v1706 = vsub.f32 %v1705, 1.0
    %v1707 = vmul.f32 %v1704, %v1581
    %1709 = vrot.lane.b32.xlu0 %v1706, 64
    %v1710 = vpop.permute.xlu0 %1709
    %v1712 = vmul.f32 %v1704, %v1710
    %1714 = vrot.lane.b32.xlu0 %v1712, 32
    %v1715 = vpop.permute.xlu0 %1714
    %v1717 = vadd.f32 %v1707, %v1715
    %v1718 = vtanh.pop %v1717
    %1720 = vrot.lane.b32.xlu0 %v1718, 64
    %v1721 = vpop.permute.xlu0 %1720
    %v1723 = vmul.f32 %v1704, %v1721
    %v1724 = vadd.f32 %v1148, %v1696
    %v1725 = vmul.f32 %v1724, %v1171
    %v1726 = vxor.u32 %v1725, 2147483648
    %v1727 = vmul.f32 %v1726, 1.442695
    %v1728 = vpow.pop %v1727
    %v1729 = vadd.f32 %v1728, 1.0
    %v1730 = vrcp.pop %v1729
    %v1731 = vmul.f32 1.0, %v1730
    %v1732 = vmul.f32 %v1731, 2.0
    %v1733 = vsub.f32 %v1732, 1.0
    %v1734 = vmul.f32 %v1731, %v1608
    %1736 = vrot.lane.b32.xlu0 %v1733, 64
    %v1737 = vpop.permute.xlu0 %1736
    %v1739 = vmul.f32 %v1731, %v1737
    %1741 = vrot.lane.b32.xlu0 %v1739, 32
    %v1742 = vpop.permute.xlu0 %1741
    %v1744 = vadd.f32 %v1734, %v1742
    %v1745 = vtanh.pop %v1744
    %1747 = vrot.lane.b32.xlu0 %v1745, 64
    %v1748 = vpop.permute.xlu0 %1747
    %v1750 = vmul.f32 %v1731, %v1748
    %1752 = vrot.lane.b32.xlu0 %v1750, 32
    %v1753 = vpop.permute.xlu0 %1752
    %1756 = vrot.lane.b32.xlu0 %v1723, 64
    %v1757 = vpop.permute.xlu0 %1756
    %v1759 = vsel %vm1202, %v1753, %v1757
    %v1761 = vsel %vm1215, %v1759, 0
    %1763 = vmatprep.subr.mxu0 %v1000
    %1764 = vmatpush1.msra.mxu0 %v999
    %1765 = vmatprep.subr.mxu0 %v1002
    %1766 = vmatpush1.msra.mxu0 %v1001
    %1767 = vmatprep.subr.mxu0 %v1004
    %1768 = vmatpush1.msra.mxu0 %v1003
    %1769 = vmatprep.subr.mxu0 %v1006
    %1770 = vmatpush1.msra.mxu0 %v1005
    %1771 = vmatprep.subr.mxu0 %v1008
    %1772 = vmatpush1.msra.mxu0 %v1007
    %1773 = vmatprep.subr.mxu0 %v1010
    %1774 = vmatpush1.msra.mxu0 %v1009
    %1775 = vmatprep.subr.mxu0 %v1012
    %1776 = vmatpush1.msra.mxu0 %v1011
    %1777 = vmatprep.subr.mxu0 %v1014
    %1778 = vmatpush1.msra.mxu0 %v1013
    %1779 = vmatprep.subr.mxu0 0.0
    %1780 = vmatpush1.msra.mxu0 0.0
    %1781 = vmatprep.subr.mxu0 0.0
    %1782 = vmatpush1.msra.mxu0 0.0
    %1783 = vmatprep.subr.mxu0 0.0
    %1784 = vmatpush1.msra.mxu0 0.0
    %1785 = vmatprep.subr.mxu0 0.0
    %1786 = vmatpush1.msra.mxu0 0.0
    %1787 = vmatprep.subr.mxu0 0.0
    %1788 = vmatpush1.msra.mxu0 0.0
    %1789 = vmatprep.subr.mxu0 0.0
    %1790 = vmatpush1.msra.mxu0 0.0
    %1791 = vmatprep.subr.mxu0 0.0
    %1792 = vmatpush1.msra.mxu0 0.0
    %1793 = vmatprep.subr.mxu0 0.0
    %1794 = vmatpush1.msra.mxu0 0.0
    %1795 = vmatprep.subr.mxu0 0.0
    %1796 = vmatpush1.msra.mxu0 0.0
    %1797 = vmatprep.subr.mxu0 0.0
    %1798 = vmatpush1.msra.mxu0 0.0
    %1799 = vmatprep.subr.mxu0 0.0
    %1800 = vmatpush1.msra.mxu0 0.0
    %1801 = vmatprep.subr.mxu0 0.0
    %1802 = vmatpush1.msra.mxu0 0.0
    %1803 = vmatprep.subr.mxu0 0.0
    %1804 = vmatpush1.msra.mxu0 0.0
    %1805 = vmatprep.subr.mxu0 0.0
    %1806 = vmatpush1.msra.mxu0 0.0
    %1807 = vmatprep.subr.mxu0 0.0
    %1808 = vmatpush1.msra.mxu0 0.0
    %1809 = vmatprep.subr.mxu0 0.0
    %1810 = vmatpush1.msra.mxu0 0.0
    %1811 = vmatprep.subr.mxu0 0.0
    %1812 = vmatpush1.msra.mxu0 0.0
    %1813 = vmatprep.subr.mxu0 0.0
    %1814 = vmatpush1.msra.mxu0 0.0
    %1815 = vmatprep.subr.mxu0 0.0
    %1816 = vmatpush1.msra.mxu0 0.0
    %1817 = vmatprep.subr.mxu0 0.0
    %1818 = vmatpush1.msra.mxu0 0.0
    %1819 = vmatprep.subr.mxu0 0.0
    %1820 = vmatpush1.msra.mxu0 0.0
    %1821 = vmatprep.subr.mxu0 0.0
    %1822 = vmatpush1.msra.mxu0 0.0
    %1823 = vmatprep.subr.mxu0 0.0
    %1824 = vmatpush1.msra.mxu0 0.0
    %1825 = vmatprep.subr.mxu0 0.0
    %1826 = vmatpush1.msra.mxu0 0.0
    %1827 = vmatprep.mubr.f32.mxu0 0.0
    %1828 = vmatmul.mubr.f32.gmra.mrb[0].mxu0 %v1761
    %v1829 = vpop.f32.mrb[0].mxu0
    %v1830 = vadd.f32 %v1208, %v1829
    %v1831 = vpop.f32.mrb[0].mxu0
    %v1832 = vadd.f32 %v1212, %v1831
    %1833 = vdwg.mxu0
    %v1834 = vmul.f32 %v1830, %v1171
    %v1835 = vxor.u32 %v1834, 2147483648
    %v1836 = vmul.f32 %v1835, 1.442695
    %v1837 = vpow.pop %v1836
    %v1838 = vadd.f32 %v1837, 1.0
    %v1839 = vrcp.pop %v1838
    %v1840 = vmul.f32 1.0, %v1839
    %v1841 = vmul.f32 %v1840, 2.0
    %v1842 = vsub.f32 %v1841, 1.0
    %v1843 = vmul.f32 %v1840, %v1717
    %1845 = vrot.lane.b32.xlu0 %v1842, 64
    %v1846 = vpop.permute.xlu0 %1845
    %v1848 = vmul.f32 %v1840, %v1846
    %1850 = vrot.lane.b32.xlu0 %v1848, 32
    %v1851 = vpop.permute.xlu0 %1850
    %v1853 = vadd.f32 %v1843, %v1851
    %v1854 = vtanh.pop %v1853
    %1856 = vrot.lane.b32.xlu0 %v1854, 64
    %v1857 = vpop.permute.xlu0 %1856
    %v1859 = vmul.f32 %v1840, %v1857
    %v1860 = vadd.f32 %v1153, %v1832
    %v1861 = vmul.f32 %v1860, %v1171
    %v1862 = vxor.u32 %v1861, 2147483648
    %v1863 = vmul.f32 %v1862, 1.442695
    %v1864 = vpow.pop %v1863
    %v1865 = vadd.f32 %v1864, 1.0
    %v1866 = vrcp.pop %v1865
    %v1867 = vmul.f32 1.0, %v1866
    %v1868 = vmul.f32 %v1867, 2.0
    %v1869 = vsub.f32 %v1868, 1.0
    %v1870 = vmul.f32 %v1867, %v1744
    %1872 = vrot.lane.b32.xlu0 %v1869, 64
    %v1873 = vpop.permute.xlu0 %1872
    %v1875 = vmul.f32 %v1867, %v1873
    %1877 = vrot.lane.b32.xlu0 %v1875, 32
    %v1878 = vpop.permute.xlu0 %1877
    %v1880 = vadd.f32 %v1870, %v1878
    %v1881 = vtanh.pop %v1880
    %1883 = vrot.lane.b32.xlu0 %v1881, 64
    %v1884 = vpop.permute.xlu0 %1883
    %v1886 = vmul.f32 %v1867, %v1884
    %1888 = vrot.lane.b32.xlu0 %v1886, 32
    %v1889 = vpop.permute.xlu0 %1888
    %1892 = vrot.lane.b32.xlu0 %v1859, 64
    %v1893 = vpop.permute.xlu0 %1892
    %v1895 = vsel %vm1202, %v1889, %v1893
    %v1897 = vsel %vm1215, %v1895, 0
    %1899 = vmatprep.subr.mxu0 %v1000
    %1900 = vmatpush1.msra.mxu0 %v999
    %1901 = vmatprep.subr.mxu0 %v1002
    %1902 = vmatpush1.msra.mxu0 %v1001
    %1903 = vmatprep.subr.mxu0 %v1004
    %1904 = vmatpush1.msra.mxu0 %v1003
    %1905 = vmatprep.subr.mxu0 %v1006
    %1906 = vmatpush1.msra.mxu0 %v1005
    %1907 = vmatprep.subr.mxu0 %v1008
    %1908 = vmatpush1.msra.mxu0 %v1007
    %1909 = vmatprep.subr.mxu0 %v1010
    %1910 = vmatpush1.msra.mxu0 %v1009
    %1911 = vmatprep.subr.mxu0 %v1012
    %1912 = vmatpush1.msra.mxu0 %v1011
    %1913 = vmatprep.subr.mxu0 %v1014
    %1914 = vmatpush1.msra.mxu0 %v1013
    %1915 = vmatprep.subr.mxu0 0.0
    %1916 = vmatpush1.msra.mxu0 0.0
    %1917 = vmatprep.subr.mxu0 0.0
    %1918 = vmatpush1.msra.mxu0 0.0
    %1919 = vmatprep.subr.mxu0 0.0
    %1920 = vmatpush1.msra.mxu0 0.0
    %1921 = vmatprep.subr.mxu0 0.0
    %1922 = vmatpush1.msra.mxu0 0.0
    %1923 = vmatprep.subr.mxu0 0.0
    %1924 = vmatpush1.msra.mxu0 0.0
    %1925 = vmatprep.subr.mxu0 0.0
    %1926 = vmatpush1.msra.mxu0 0.0
    %1927 = vmatprep.subr.mxu0 0.0
    %1928 = vmatpush1.msra.mxu0 0.0
    %1929 = vmatprep.subr.mxu0 0.0
    %1930 = vmatpush1.msra.mxu0 0.0
    %1931 = vmatprep.subr.mxu0 0.0
    %1932 = vmatpush1.msra.mxu0 0.0
    %1933 = vmatprep.subr.mxu0 0.0
    %1934 = vmatpush1.msra.mxu0 0.0
    %1935 = vmatprep.subr.mxu0 0.0
    %1936 = vmatpush1.msra.mxu0 0.0
    %1937 = vmatprep.subr.mxu0 0.0
    %1938 = vmatpush1.msra.mxu0 0.0
    %1939 = vmatprep.subr.mxu0 0.0
    %1940 = vmatpush1.msra.mxu0 0.0
    %1941 = vmatprep.subr.mxu0 0.0
    %1942 = vmatpush1.msra.mxu0 0.0
    %1943 = vmatprep.subr.mxu0 0.0
    %1944 = vmatpush1.msra.mxu0 0.0
    %1945 = vmatprep.subr.mxu0 0.0
    %1946 = vmatpush1.msra.mxu0 0.0
    %1947 = vmatprep.subr.mxu0 0.0
    %1948 = vmatpush1.msra.mxu0 0.0
    %1949 = vmatprep.subr.mxu0 0.0
    %1950 = vmatpush1.msra.mxu0 0.0
    %1951 = vmatprep.subr.mxu0 0.0
    %1952 = vmatpush1.msra.mxu0 0.0
    %1953 = vmatprep.subr.mxu0 0.0
    %1954 = vmatpush1.msra.mxu0 0.0
    %1955 = vmatprep.subr.mxu0 0.0
    %1956 = vmatpush1.msra.mxu0 0.0
    %1957 = vmatprep.subr.mxu0 0.0
    %1958 = vmatpush1.msra.mxu0 0.0
    %1959 = vmatprep.subr.mxu0 0.0
    %1960 = vmatpush1.msra.mxu0 0.0
    %1961 = vmatprep.subr.mxu0 0.0
    %1962 = vmatpush1.msra.mxu0 0.0
    %1963 = vmatprep.mubr.f32.mxu0 0.0
    %1964 = vmatmul.mubr.f32.gmra.mrb[0].mxu0 %v1897
    %v1965 = vpop.f32.mrb[0].mxu0
    %v1966 = vadd.f32 %v1208, %v1965
    %v1967 = vpop.f32.mrb[0].mxu0
    %v1968 = vadd.f32 %v1212, %v1967
    %1969 = vdwg.mxu0
    %v1970 = vmul.f32 %v1966, %v1171
    %v1971 = vxor.u32 %v1970, 2147483648
    %v1972 = vmul.f32 %v1971, 1.442695
    %v1973 = vpow.pop %v1972
    %v1974 = vadd.f32 %v1973, 1.0
    %v1975 = vrcp.pop %v1974
    %v1976 = vmul.f32 1.0, %v1975
    %v1977 = vmul.f32 %v1976, 2.0
    %v1978 = vsub.f32 %v1977, 1.0
    %v1979 = vmul.f32 %v1976, %v1853
    %1981 = vrot.lane.b32.xlu0 %v1978, 64
    %v1982 = vpop.permute.xlu0 %1981
    %v1984 = vmul.f32 %v1976, %v1982
    %1986 = vrot.lane.b32.xlu0 %v1984, 32
    %v1987 = vpop.permute.xlu0 %1986
    %v1989 = vadd.f32 %v1979, %v1987
    %v1990 = vtanh.pop %v1989
    %1992 = vrot.lane.b32.xlu0 %v1990, 64
    %v1993 = vpop.permute.xlu0 %1992
    %v1995 = vmul.f32 %v1976, %v1993
    %v1996 = vadd.f32 %v1158, %v1968
    %v1997 = vmul.f32 %v1996, %v1171
    %v1998 = vxor.u32 %v1997, 2147483648
    %v1999 = vmul.f32 %v1998, 1.442695
    %v2000 = vpow.pop %v1999
    %v2001 = vadd.f32 %v2000, 1.0
    %v2002 = vrcp.pop %v2001
    %v2003 = vmul.f32 1.0, %v2002
    %v2004 = vmul.f32 %v2003, 2.0
    %v2005 = vsub.f32 %v2004, 1.0
    %v2006 = vmul.f32 %v2003, %v1880
    %2008 = vrot.lane.b32.xlu0 %v2005, 64
    %v2009 = vpop.permute.xlu0 %2008
    %v2011 = vmul.f32 %v2003, %v2009
    %2013 = vrot.lane.b32.xlu0 %v2011, 32
    %v2014 = vpop.permute.xlu0 %2013
    %v2016 = vadd.f32 %v2006, %v2014
    %v2017 = vtanh.pop %v2016
    %2019 = vrot.lane.b32.xlu0 %v2017, 64
    %v2020 = vpop.permute.xlu0 %2019
    %v2022 = vmul.f32 %v2003, %v2020
    %2024 = vrot.lane.b32.xlu0 %v2022, 32
    %v2025 = vpop.permute.xlu0 %2024
    %2028 = vrot.lane.b32.xlu0 %v1995, 64
    %v2029 = vpop.permute.xlu0 %2028
    %v2031 = vsel %vm1202, %v2025, %v2029
    %v2033 = vsel %vm1215, %v2031, 0
    %2035 = vmatprep.subr.mxu0 %v1000
    %2036 = vmatpush1.msra.mxu0 %v999
    %2037 = vmatprep.subr.mxu0 %v1002
    %2038 = vmatpush1.msra.mxu0 %v1001
    %2039 = vmatprep.subr.mxu0 %v1004
    %2040 = vmatpush1.msra.mxu0 %v1003
    %2041 = vmatprep.subr.mxu0 %v1006
    %2042 = vmatpush1.msra.mxu0 %v1005
    %2043 = vmatprep.subr.mxu0 %v1008
    %2044 = vmatpush1.msra.mxu0 %v1007
    %2045 = vmatprep.subr.mxu0 %v1010
    %2046 = vmatpush1.msra.mxu0 %v1009
    %2047 = vmatprep.subr.mxu0 %v1012
    %2048 = vmatpush1.msra.mxu0 %v1011
    %2049 = vmatprep.subr.mxu0 %v1014
    %2050 = vmatpush1.msra.mxu0 %v1013
    %2051 = vmatprep.subr.mxu0 0.0
    %2052 = vmatpush1.msra.mxu0 0.0
    %2053 = vmatprep.subr.mxu0 0.0
    %2054 = vmatpush1.msra.mxu0 0.0
    %2055 = vmatprep.subr.mxu0 0.0
    %2056 = vmatpush1.msra.mxu0 0.0
    %2057 = vmatprep.subr.mxu0 0.0
    %2058 = vmatpush1.msra.mxu0 0.0
    %2059 = vmatprep.subr.mxu0 0.0
    %2060 = vmatpush1.msra.mxu0 0.0
    %2061 = vmatprep.subr.mxu0 0.0
    %2062 = vmatpush1.msra.mxu0 0.0
    %2063 = vmatprep.subr.mxu0 0.0
    %2064 = vmatpush1.msra.mxu0 0.0
    %2065 = vmatprep.subr.mxu0 0.0
    %2066 = vmatpush1.msra.mxu0 0.0
    %2067 = vmatprep.subr.mxu0 0.0
    %2068 = vmatpush1.msra.mxu0 0.0
    %2069 = vmatprep.subr.mxu0 0.0
    %2070 = vmatpush1.msra.mxu0 0.0
    %2071 = vmatprep.subr.mxu0 0.0
    %2072 = vmatpush1.msra.mxu0 0.0
    %2073 = vmatprep.subr.mxu0 0.0
    %2074 = vmatpush1.msra.mxu0 0.0
    %2075 = vmatprep.subr.mxu0 0.0
    %2076 = vmatpush1.msra.mxu0 0.0
    %2077 = vmatprep.subr.mxu0 0.0
    %2078 = vmatpush1.msra.mxu0 0.0
    %2079 = vmatprep.subr.mxu0 0.0
    %2080 = vmatpush1.msra.mxu0 0.0
    %2081 = vmatprep.subr.mxu0 0.0
    %2082 = vmatpush1.msra.mxu0 0.0
    %2083 = vmatprep.subr.mxu0 0.0
    %2084 = vmatpush1.msra.mxu0 0.0
    %2085 = vmatprep.subr.mxu0 0.0
    %2086 = vmatpush1.msra.mxu0 0.0
    %2087 = vmatprep.subr.mxu0 0.0
    %2088 = vmatpush1.msra.mxu0 0.0
    %2089 = vmatprep.subr.mxu0 0.0
    %2090 = vmatpush1.msra.mxu0 0.0
    %2091 = vmatprep.subr.mxu0 0.0
    %2092 = vmatpush1.msra.mxu0 0.0
    %2093 = vmatprep.subr.mxu0 0.0
    %2094 = vmatpush1.msra.mxu0 0.0
    %2095 = vmatprep.subr.mxu0 0.0
    %2096 = vmatpush1.msra.mxu0 0.0
    %2097 = vmatprep.subr.mxu0 0.0
    %2098 = vmatpush1.msra.mxu0 0.0
    %2099 = vmatprep.mubr.f32.mxu0 0.0
    %2100 = vmatmul.mubr.f32.gmra.mrb[0].mxu0 %v2033
    %v2101 = vpop.f32.mrb[0].mxu0
    %v2102 = vadd.f32 %v1208, %v2101
    %v2103 = vpop.f32.mrb[0].mxu0
    %v2104 = vadd.f32 %v1212, %v2103
    %2105 = vdwg.mxu0
    %v2106 = vmul.f32 %v2102, %v1171
    %v2107 = vxor.u32 %v2106, 2147483648
    %v2108 = vmul.f32 %v2107, 1.442695
    %v2109 = vpow.pop %v2108
    %v2110 = vadd.f32 %v2109, 1.0
    %v2111 = vrcp.pop %v2110
    %v2112 = vmul.f32 1.0, %v2111
    %v2113 = vmul.f32 %v2112, 2.0
    %v2114 = vsub.f32 %v2113, 1.0
    %v2115 = vmul.f32 %v2112, %v1989
    %2117 = vrot.lane.b32.xlu0 %v2114, 64
    %v2118 = vpop.permute.xlu0 %2117
    %v2120 = vmul.f32 %v2112, %v2118
    %2122 = vrot.lane.b32.xlu0 %v2120, 32
    %v2123 = vpop.permute.xlu0 %2122
    %v2125 = vadd.f32 %v2115, %v2123
    %v2126 = vtanh.pop %v2125
    %2128 = vrot.lane.b32.xlu0 %v2126, 64
    %v2129 = vpop.permute.xlu0 %2128
    %v2131 = vmul.f32 %v2112, %v2129
    %v2132 = vadd.f32 %v1163, %v2104
    %v2133 = vmul.f32 %v2132, %v1171
    %v2134 = vxor.u32 %v2133, 2147483648
    %v2135 = vmul.f32 %v2134, 1.442695
    %v2136 = vpow.pop %v2135
    %v2137 = vadd.f32 %v2136, 1.0
    %v2138 = vrcp.pop %v2137
    %v2139 = vmul.f32 1.0, %v2138
    %v2140 = vmul.f32 %v2139, 2.0
    %v2141 = vsub.f32 %v2140, 1.0
    %v2142 = vmul.f32 %v2139, %v2016
    %2144 = vrot.lane.b32.xlu0 %v2141, 64
    %v2145 = vpop.permute.xlu0 %2144
    %v2147 = vmul.f32 %v2139, %v2145
    %2149 = vrot.lane.b32.xlu0 %v2147, 32
    %v2150 = vpop.permute.xlu0 %2149
    %v2152 = vadd.f32 %v2142, %v2150
    %v2153 = vtanh.pop %v2152
    %2155 = vrot.lane.b32.xlu0 %v2153, 64
    %v2156 = vpop.permute.xlu0 %2155
    %v2158 = vmul.f32 %v2139, %v2156
    %2160 = vrot.lane.b32.xlu0 %v2158, 32
    %v2161 = vpop.permute.xlu0 %2160
    %2164 = vrot.lane.b32.xlu0 %v2131, 64
    %v2165 = vpop.permute.xlu0 %2164
    %v2167 = vsel %vm1202, %v2161, %v2165
    %v2169 = vsel %vm1215, %v2167, 0
    %2171 = vmatprep.subr.mxu0 %v1000
    %2172 = vmatpush1.msra.mxu0 %v999
    %2173 = vmatprep.subr.mxu0 %v1002
    %2174 = vmatpush1.msra.mxu0 %v1001
    %2175 = vmatprep.subr.mxu0 %v1004
    %2176 = vmatpush1.msra.mxu0 %v1003
    %2177 = vmatprep.subr.mxu0 %v1006
    %2178 = vmatpush1.msra.mxu0 %v1005
    %2179 = vmatprep.subr.mxu0 %v1008
    %2180 = vmatpush1.msra.mxu0 %v1007
    %2181 = vmatprep.subr.mxu0 %v1010
    %2182 = vmatpush1.msra.mxu0 %v1009
    %2183 = vmatprep.subr.mxu0 %v1012
    %2184 = vmatpush1.msra.mxu0 %v1011
    %2185 = vmatprep.subr.mxu0 %v1014
    %2186 = vmatpush1.msra.mxu0 %v1013
    %2187 = vmatprep.subr.mxu0 0.0
    %2188 = vmatpush1.msra.mxu0 0.0
    %2189 = vmatprep.subr.mxu0 0.0
    %2190 = vmatpush1.msra.mxu0 0.0
    %2191 = vmatprep.subr.mxu0 0.0
    %2192 = vmatpush1.msra.mxu0 0.0
    %2193 = vmatprep.subr.mxu0 0.0
    %2194 = vmatpush1.msra.mxu0 0.0
    %2195 = vmatprep.subr.mxu0 0.0
    %2196 = vmatpush1.msra.mxu0 0.0
    %2197 = vmatprep.subr.mxu0 0.0
    %2198 = vmatpush1.msra.mxu0 0.0
    %2199 = vmatprep.subr.mxu0 0.0
    %2200 = vmatpush1.msra.mxu0 0.0
    %2201 = vmatprep.subr.mxu0 0.0
    %2202 = vmatpush1.msra.mxu0 0.0
    %2203 = vmatprep.subr.mxu0 0.0
    %2204 = vmatpush1.msra.mxu0 0.0
    %2205 = vmatprep.subr.mxu0 0.0
    %2206 = vmatpush1.msra.mxu0 0.0
    %2207 = vmatprep.subr.mxu0 0.0
    %2208 = vmatpush1.msra.mxu0 0.0
    %2209 = vmatprep.subr.mxu0 0.0
    %2210 = vmatpush1.msra.mxu0 0.0
    %2211 = vmatprep.subr.mxu0 0.0
    %2212 = vmatpush1.msra.mxu0 0.0
    %2213 = vmatprep.subr.mxu0 0.0
    %2214 = vmatpush1.msra.mxu0 0.0
    %2215 = vmatprep.subr.mxu0 0.0
    %2216 = vmatpush1.msra.mxu0 0.0
    %2217 = vmatprep.subr.mxu0 0.0
    %2218 = vmatpush1.msra.mxu0 0.0
    %2219 = vmatprep.subr.mxu0 0.0
    %2220 = vmatpush1.msra.mxu0 0.0
    %2221 = vmatprep.subr.mxu0 0.0
    %2222 = vmatpush1.msra.mxu0 0.0
    %2223 = vmatprep.subr.mxu0 0.0
    %2224 = vmatpush1.msra.mxu0 0.0
    %2225 = vmatprep.subr.mxu0 0.0
    %2226 = vmatpush1.msra.mxu0 0.0
    %2227 = vmatprep.subr.mxu0 0.0
    %2228 = vmatpush1.msra.mxu0 0.0
    %2229 = vmatprep.subr.mxu0 0.0
    %2230 = vmatpush1.msra.mxu0 0.0
    %2231 = vmatprep.subr.mxu0 0.0
    %2232 = vmatpush1.msra.mxu0 0.0
    %2233 = vmatprep.subr.mxu0 0.0
    %2234 = vmatpush1.msra.mxu0 0.0
    %2235 = vmatprep.mubr.f32.mxu0 0.0
    %2236 = vmatmul.mubr.f32.gmra.mrb[0].mxu0 %v2169
    %v2237 = vpop.f32.mrb[0].mxu0
    %v2238 = vadd.f32 %v1208, %v2237
    %v2239 = vpop.f32.mrb[0].mxu0
    %2240 = vdwg.mxu0
    %v2241 = vmul.f32 %v2238, %v1171
    %v2242 = vxor.u32 %v2241, 2147483648
    %v2243 = vmul.f32 %v2242, 1.442695
    %v2244 = vpow.pop %v2243
    %v2245 = vadd.f32 %v2244, 1.0
    %v2246 = vrcp.pop %v2245
    %v2247 = vmul.f32 1.0, %v2246
    %v2248 = vmul.f32 %v2247, 2.0
    %v2249 = vsub.f32 %v2248, 1.0
    %v2250 = vmul.f32 %v2247, %v2125
    %2252 = vrot.lane.b32.xlu0 %v2249, 64
    %v2253 = vpop.permute.xlu0 %2252
    %v2255 = vmul.f32 %v2247, %v2253
    %2257 = vrot.lane.b32.xlu0 %v2255, 32
    %v2258 = vpop.permute.xlu0 %2257
    %v2260 = vadd.f32 %v2250, %v2258
    %v2261 = vtanh.pop %v2260
    %2263 = vrot.lane.b32.xlu0 %v2261, 64
    %v2264 = vpop.permute.xlu0 %2263
    %v2266 = vmul.f32 %v2247, %v2264
    %2267 = vrot.lane.b32.xlu0 %v1315, 32
    %v2268 = vpop.permute.xlu0 %2267
    %2270 = vrot.lane.b32.xlu0 %v1587, 96
    %v2271 = vpop.permute.xlu0 %2270
    %2273 = vrot.lane.b32.xlu0 %v1859, 32
    %v2274 = vpop.permute.xlu0 %2273
    %2276 = vrot.lane.b32.xlu0 %v2131, 96
    %v2277 = vpop.permute.xlu0 %2276
    %v2279 = vsel %vm1202, %v2268, %v1485
    %v2280 = vsel %vm1215, %v2279, %v2271
    %vm2281 = vcmask 785408
    %v2282 = vsel %vm2281, %v2280, %v1723
    %v2283 = vsel %vm1202, %v2274, %v2029
    %v2284 = vsel %vm1215, %v2283, %v2277
    %v2285 = vsel %vm2281, %v2284, %v2266
    %s2286 = smul.u32 4, 32
    %s2287 = smul.u32 %s2286, 4
    %s2288 = sshll.u32 %s2287, 4
    %2289 = dma.done [#allocation6], %s2288
    %v2290 = vpack.c.bf16 %v2282, %v2282
    %v2291 = vpack.c.bf16 %v2285, %v2285
    %v2292 = vld [vmem:[#allocation2] sm:$0xff]
    %v2293 = vld [vmem:[#allocation2 + $0x8] sm:$0xff]
    %v2294 = vld [vmem:[#allocation2 + $0x10] sm:$0xff]
    %v2295 = vld [vmem:[#allocation2 + $0x18] sm:$0xff]
    %v2296 = vld [vmem:[#allocation2 + $0x20] sm:$0xff]
    %v2297 = vld [vmem:[#allocation2 + $0x28] sm:$0xff]
    %v2298 = vld [vmem:[#allocation2 + $0x30] sm:$0xff]
    %v2299 = vld [vmem:[#allocation2 + $0x38] sm:$0xff]
    %v2300 = vld [vmem:[#allocation2 + $0x40] sm:$0xff]
    %v2301 = vld [vmem:[#allocation2 + $0x48] sm:$0xff]
    %v2302 = vld [vmem:[#allocation2 + $0x50] sm:$0xff]
    %v2303 = vld [vmem:[#allocation2 + $0x58] sm:$0xff]
    %v2304 = vld [vmem:[#allocation2 + $0x60] sm:$0xff]
    %v2305 = vld [vmem:[#allocation2 + $0x68] sm:$0xff]
    %v2306 = vld [vmem:[#allocation2 + $0x70] sm:$0xff]
    %v2307 = vld [vmem:[#allocation2 + $0x78] sm:$0xff]
    %v2308 = vld [vmem:[#allocation2 + $0x80] sm:$0xff]
    %v2309 = vld [vmem:[#allocation2 + $0x88] sm:$0xff]
    %v2310 = vld [vmem:[#allocation2 + $0x90] sm:$0xff]
    %v2311 = vld [vmem:[#allocation2 + $0x98] sm:$0xff]
    %v2312 = vld [vmem:[#allocation2 + $0xa0] sm:$0xff]
    %v2313 = vld [vmem:[#allocation2 + $0xa8] sm:$0xff]
    %v2314 = vld [vmem:[#allocation2 + $0xb0] sm:$0xff]
    %v2315 = vld [vmem:[#allocation2 + $0xb8] sm:$0xff]
    %v2316 = vld [vmem:[#allocation2 + $0xc0] sm:$0xff]
    %v2317 = vld [vmem:[#allocation2 + $0xc8] sm:$0xff]
    %v2318 = vld [vmem:[#allocation2 + $0xd0] sm:$0xff]
    %v2319 = vld [vmem:[#allocation2 + $0xd8] sm:$0xff]
    %v2320 = vld [vmem:[#allocation2 + $0xe0] sm:$0xff]
    %v2321 = vld [vmem:[#allocation2 + $0xe8] sm:$0xff]
    %v2322 = vld [vmem:[#allocation2 + $0xf0] sm:$0xff]
    %v2323 = vld [vmem:[#allocation2 + $0xf8] sm:$0xff]
    %v2324 = vld [vmem:[#allocation2 + $0x100] sm:$0xff]
    %v2325 = vld [vmem:[#allocation2 + $0x108] sm:$0xff]
    %v2326 = vld [vmem:[#allocation2 + $0x110] sm:$0xff]
    %v2327 = vld [vmem:[#allocation2 + $0x118] sm:$0xff]
    %v2328 = vld [vmem:[#allocation2 + $0x120] sm:$0xff]
    %v2329 = vld [vmem:[#allocation2 + $0x128] sm:$0xff]
    %v2330 = vld [vmem:[#allocation2 + $0x130] sm:$0xff]
    %v2331 = vld [vmem:[#allocation2 + $0x138] sm:$0xff]
    %v2332 = vld [vmem:[#allocation2 + $0x140] sm:$0xff]
    %v2333 = vld [vmem:[#allocation2 + $0x148] sm:$0xff]
    %v2334 = vld [vmem:[#allocation2 + $0x150] sm:$0xff]
    %v2335 = vld [vmem:[#allocation2 + $0x158] sm:$0xff]
    %v2336 = vld [vmem:[#allocation2 + $0x160] sm:$0xff]
    %v2337 = vld [vmem:[#allocation2 + $0x168] sm:$0xff]
    %v2338 = vld [vmem:[#allocation2 + $0x170] sm:$0xff]
    %v2339 = vld [vmem:[#allocation2 + $0x178] sm:$0xff]
    %v2340 = vld [vmem:[#allocation2 + $0x180] sm:$0xff]
    %v2341 = vld [vmem:[#allocation2 + $0x188] sm:$0xff]
    %v2342 = vld [vmem:[#allocation2 + $0x190] sm:$0xff]
    %v2343 = vld [vmem:[#allocation2 + $0x198] sm:$0xff]
    %v2344 = vld [vmem:[#allocation2 + $0x1a0] sm:$0xff]
    %v2345 = vld [vmem:[#allocation2 + $0x1a8] sm:$0xff]
    %v2346 = vld [vmem:[#allocation2 + $0x1b0] sm:$0xff]
    %v2347 = vld [vmem:[#allocation2 + $0x1b8] sm:$0xff]
    %v2348 = vld [vmem:[#allocation2 + $0x1c0] sm:$0xff]
    %v2349 = vld [vmem:[#allocation2 + $0x1c8] sm:$0xff]
    %v2350 = vld [vmem:[#allocation2 + $0x1d0] sm:$0xff]
    %v2351 = vld [vmem:[#allocation2 + $0x1d8] sm:$0xff]
    %v2352 = vld [vmem:[#allocation2 + $0x1e0] sm:$0xff]
    %v2353 = vld [vmem:[#allocation2 + $0x1e8] sm:$0xff]
    %v2354 = vld [vmem:[#allocation2 + $0x1f0] sm:$0xff]
    %v2355 = vld [vmem:[#allocation2 + $0x1f8] sm:$0xff]
    %v2356 = vld [vmem:[%s6] sm:$0xf]
    %v2358 = vlaneseq
    %v2359 = vshrl.u32 %v2358, 7
    %v2360 = vsub.s32 0, %v2359
    %v2361 = vrot.slane %v2356, %v2360
    %v2362 = vlaneseq
    %v2363 = vshrl.u32 %v2362, 7
    %v2364 = vsub.s32 1, %v2363
    %v2365 = vrot.slane %v2356, %v2364
    %v2366 = vlaneseq
    %v2367 = vshrl.u32 %v2366, 7
    %v2368 = vsub.s32 2, %v2367
    %v2369 = vrot.slane %v2356, %v2368
    %v2370 = vlaneseq
    %v2371 = vshrl.u32 %v2370, 7
    %v2372 = vsub.s32 3, %v2371
    %v2373 = vrot.slane %v2356, %v2372
    %2378 = vmatprep.subr.bf16.mxu0 %v2293
    %2379 = vmatpush1.bf16.msra.mxu0 %v2292
    %2380 = vmatprep.subr.bf16.mxu0 %v2297
    %2381 = vmatpush1.bf16.msra.mxu0 %v2296
    %2382 = vmatprep.subr.bf16.mxu0 %v2301
    %2383 = vmatpush1.bf16.msra.mxu0 %v2300
    %2384 = vmatprep.subr.bf16.mxu0 %v2305
    %2385 = vmatpush1.bf16.msra.mxu0 %v2304
    %2386 = vmatprep.subr.bf16.mxu0 %v2309
    %2387 = vmatpush1.bf16.msra.mxu0 %v2308
    %2388 = vmatprep.subr.bf16.mxu0 %v2313
    %2389 = vmatpush1.bf16.msra.mxu0 %v2312
    %2390 = vmatprep.subr.bf16.mxu0 %v2317
    %2391 = vmatpush1.bf16.msra.mxu0 %v2316
    %2392 = vmatprep.subr.bf16.mxu0 %v2321
    %2393 = vmatpush1.bf16.msra.mxu0 %v2320
    %2394 = vmatprep.subr.bf16.mxu0 %v2325
    %2395 = vmatpush1.bf16.msra.mxu0 %v2324
    %2396 = vmatprep.subr.bf16.mxu0 %v2329
    %2397 = vmatpush1.bf16.msra.mxu0 %v2328
    %2398 = vmatprep.subr.bf16.mxu0 %v2333
    %2399 = vmatpush1.bf16.msra.mxu0 %v2332
    %2400 = vmatprep.subr.bf16.mxu0 %v2337
    %2401 = vmatpush1.bf16.msra.mxu0 %v2336
    %2402 = vmatprep.subr.bf16.mxu0 %v2341
    %2403 = vmatpush1.bf16.msra.mxu0 %v2340
    %2404 = vmatprep.subr.bf16.mxu0 %v2345
    %2405 = vmatpush1.bf16.msra.mxu0 %v2344
    %2406 = vmatprep.subr.bf16.mxu0 %v2349
    %2407 = vmatpush1.bf16.msra.mxu0 %v2348
    %2408 = vmatprep.subr.bf16.mxu0 %v2353
    %2409 = vmatpush1.bf16.msra.mxu0 %v2352
    %2410 = vmatprep.mubr.bf16.mxu0 %v2291
    %2411 = vmatmul.mubr.bf16.gmra.mrb[0].mxu0 %v2290
    %v2412 = vpop.f32.mrb[0].mxu0
    %v2413 = vadd.f32 %v2361, %v2412
    %v2414 = vpop.f32.mrb[0].mxu0
    %v2415 = vadd.f32 %v2365, %v2414
    %v2416 = vpop.f32.mrb[0].mxu0
    %v2417 = vpop.f32.mrb[0].mxu0
    %2418 = vdwg.mxu0
    %2419 = vmatprep.subr.bf16.mxu0 %v2295
    %2420 = vmatpush1.bf16.msra.mxu0 %v2294
    %2421 = vmatprep.subr.bf16.mxu0 %v2299
    %2422 = vmatpush1.bf16.msra.mxu0 %v2298
    %2423 = vmatprep.subr.bf16.mxu0 %v2303
    %2424 = vmatpush1.bf16.msra.mxu0 %v2302
    %2425 = vmatprep.subr.bf16.mxu0 %v2307
    %2426 = vmatpush1.bf16.msra.mxu0 %v2306
    %2427 = vmatprep.subr.bf16.mxu0 %v2311
    %2428 = vmatpush1.bf16.msra.mxu0 %v2310
    %2429 = vmatprep.subr.bf16.mxu0 %v2315
    %2430 = vmatpush1.bf16.msra.mxu0 %v2314
    %2431 = vmatprep.subr.bf16.mxu0 %v2319
    %2432 = vmatpush1.bf16.msra.mxu0 %v2318
    %2433 = vmatprep.subr.bf16.mxu0 %v2323
    %2434 = vmatpush1.bf16.msra.mxu0 %v2322
    %2435 = vmatprep.subr.bf16.mxu0 %v2327
    %2436 = vmatpush1.bf16.msra.mxu0 %v2326
    %2437 = vmatprep.subr.bf16.mxu0 %v2331
    %2438 = vmatpush1.bf16.msra.mxu0 %v2330
    %2439 = vmatprep.subr.bf16.mxu0 %v2335
    %2440 = vmatpush1.bf16.msra.mxu0 %v2334
    %2441 = vmatprep.subr.bf16.mxu0 %v2339
    %2442 = vmatpush1.bf16.msra.mxu0 %v2338
    %2443 = vmatprep.subr.bf16.mxu0 %v2343
    %2444 = vmatpush1.bf16.msra.mxu0 %v2342
    %2445 = vmatprep.subr.bf16.mxu0 %v2347
    %2446 = vmatpush1.bf16.msra.mxu0 %v2346
    %2447 = vmatprep.subr.bf16.mxu0 %v2351
    %2448 = vmatpush1.bf16.msra.mxu0 %v2350
    %2449 = vmatprep.subr.bf16.mxu0 %v2355
    %2450 = vmatpush1.bf16.msra.mxu0 %v2354
    %2451 = vmatprep.mubr.bf16.mxu0 %v2291
    %2452 = vmatmul.mubr.bf16.gmra.mrb[0].mxu0 %v2290
    %v2453 = vpop.f32.mrb[0].mxu0
    %v2454 = vadd.f32 %v2369, %v2453
    %v2455 = vpop.f32.mrb[0].mxu0
    %v2456 = vadd.f32 %v2373, %v2455
    %v2457 = vpop.f32.mrb[0].mxu0
    %v2458 = vpop.f32.mrb[0].mxu0
    %2459 = vdwg.mxu0
    %v2460 = vmax.f32 %v2413, 0.0
    %v2461 = vmax.f32 %v2415, 0.0
    %v2462 = vmax.f32 %v2454, 0.0
    %v2463 = vmax.f32 %v2456, 0.0
    %s2464 = smul.u32 4, 64
    %s2465 = smul.u32 %s2464, 1
    %s2466 = sshll.u32 %s2465, 4
    %2467 = dma.done %s612, %s2466
    %v2468 = vpack.c.bf16 %v2460, %v2460
    %v2469 = vpack.c.bf16 %v2461, %v2461
    %v2470 = vpack.c.bf16 %v2462, %v2462
    %v2471 = vpack.c.bf16 %v2463, %v2463
    %v2472 = vld [vmem:[#allocation3] sm:$0xff]
    %v2473 = vld [vmem:[#allocation3 + $0x8] sm:$0xff]
    %v2474 = vld [vmem:[#allocation3 + $0x10] sm:$0xff]
    %v2475 = vld [vmem:[#allocation3 + $0x18] sm:$0xff]
    %v2476 = vld [vmem:[#allocation3 + $0x20] sm:$0xff]
    %v2477 = vld [vmem:[#allocation3 + $0x28] sm:$0xff]
    %v2478 = vld [vmem:[#allocation3 + $0x30] sm:$0xff]
    %v2479 = vld [vmem:[#allocation3 + $0x38] sm:$0xff]
    %v2480 = vld [vmem:[#allocation3 + $0x40] sm:$0xff]
    %v2481 = vld [vmem:[#allocation3 + $0x48] sm:$0xff]
    %v2482 = vld [vmem:[#allocation3 + $0x50] sm:$0xff]
    %v2483 = vld [vmem:[#allocation3 + $0x58] sm:$0xff]
    %v2484 = vld [vmem:[#allocation3 + $0x60] sm:$0xff]
    %v2485 = vld [vmem:[#allocation3 + $0x68] sm:$0xff]
    %v2486 = vld [vmem:[#allocation3 + $0x70] sm:$0xff]
    %v2487 = vld [vmem:[#allocation3 + $0x78] sm:$0xff]
    %v2488 = vld [vmem:[#allocation3 + $0x80] sm:$0xff]
    %v2489 = vld [vmem:[#allocation3 + $0x88] sm:$0xff]
    %v2490 = vld [vmem:[#allocation3 + $0x90] sm:$0xff]
    %v2491 = vld [vmem:[#allocation3 + $0x98] sm:$0xff]
    %v2492 = vld [vmem:[#allocation3 + $0xa0] sm:$0xff]
    %v2493 = vld [vmem:[#allocation3 + $0xa8] sm:$0xff]
    %v2494 = vld [vmem:[#allocation3 + $0xb0] sm:$0xff]
    %v2495 = vld [vmem:[#allocation3 + $0xb8] sm:$0xff]
    %v2496 = vld [vmem:[#allocation3 + $0xc0] sm:$0xff]
    %v2497 = vld [vmem:[#allocation3 + $0xc8] sm:$0xff]
    %v2498 = vld [vmem:[#allocation3 + $0xd0] sm:$0xff]
    %v2499 = vld [vmem:[#allocation3 + $0xd8] sm:$0xff]
    %v2500 = vld [vmem:[#allocation3 + $0xe0] sm:$0xff]
    %v2501 = vld [vmem:[#allocation3 + $0xe8] sm:$0xff]
    %v2502 = vld [vmem:[#allocation3 + $0xf0] sm:$0xff]
    %v2503 = vld [vmem:[#allocation3 + $0xf8] sm:$0xff]
    %v2504 = vld [vmem:[%s8] sm:$0x1]
    %v2506 = vlaneseq
    %v2507 = vshrl.u32 %v2506, 7
    %v2508 = vsub.s32 0, %v2507
    %v2509 = vrot.slane %v2504, %v2508
    %2511 = vmatprep.subr.bf16.mxu0 0
    %2512 = vmatpush1.bf16.msra.mxu0 %v2472
    %2513 = vmatprep.subr.bf16.mxu0 0
    %2514 = vmatpush1.bf16.msra.mxu0 %v2473
    %2515 = vmatprep.subr.bf16.mxu0 0
    %2516 = vmatpush1.bf16.msra.mxu0 %v2474
    %2517 = vmatprep.subr.bf16.mxu0 0
    %2518 = vmatpush1.bf16.msra.mxu0 %v2475
    %2519 = vmatprep.subr.bf16.mxu0 0
    %2520 = vmatpush1.bf16.msra.mxu0 %v2476
    %2521 = vmatprep.subr.bf16.mxu0 0
    %2522 = vmatpush1.bf16.msra.mxu0 %v2477
    %2523 = vmatprep.subr.bf16.mxu0 0
    %2524 = vmatpush1.bf16.msra.mxu0 %v2478
    %2525 = vmatprep.subr.bf16.mxu0 0
    %2526 = vmatpush1.bf16.msra.mxu0 %v2479
    %2527 = vmatprep.subr.bf16.mxu0 0
    %2528 = vmatpush1.bf16.msra.mxu0 %v2480
    %2529 = vmatprep.subr.bf16.mxu0 0
    %2530 = vmatpush1.bf16.msra.mxu0 %v2481
    %2531 = vmatprep.subr.bf16.mxu0 0
    %2532 = vmatpush1.bf16.msra.mxu0 %v2482
    %2533 = vmatprep.subr.bf16.mxu0 0
    %2534 = vmatpush1.bf16.msra.mxu0 %v2483
    %2535 = vmatprep.subr.bf16.mxu0 0
    %2536 = vmatpush1.bf16.msra.mxu0 %v2484
    %2537 = vmatprep.subr.bf16.mxu0 0
    %2538 = vmatpush1.bf16.msra.mxu0 %v2485
    %2539 = vmatprep.subr.bf16.mxu0 0
    %2540 = vmatpush1.bf16.msra.mxu0 %v2486
    %2541 = vmatprep.subr.bf16.mxu0 0
    %2542 = vmatpush1.bf16.msra.mxu0 %v2487
    %2543 = vmatprep.mubr.bf16.mxu0 %v2469
    %2544 = vmatmul.mubr.bf16.gmra.mrb[0].mxu0 %v2468
    %v2545 = vpop.f32.mrb[0].mxu0
    %v2546 = vadd.f32 %v2509, %v2545
    %v2547 = vpop.f32.mrb[0].mxu0
    %v2548 = vpop.f32.mrb[0].mxu0
    %v2549 = vpop.f32.mrb[0].mxu0
    %2550 = vdwg.mxu0
    %2551 = vmatprep.subr.bf16.mxu0 0
    %2552 = vmatpush1.bf16.msra.mxu0 %v2488
    %2553 = vmatprep.subr.bf16.mxu0 0
    %2554 = vmatpush1.bf16.msra.mxu0 %v2489
    %2555 = vmatprep.subr.bf16.mxu0 0
    %2556 = vmatpush1.bf16.msra.mxu0 %v2490
    %2557 = vmatprep.subr.bf16.mxu0 0
    %2558 = vmatpush1.bf16.msra.mxu0 %v2491
    %2559 = vmatprep.subr.bf16.mxu0 0
    %2560 = vmatpush1.bf16.msra.mxu0 %v2492
    %2561 = vmatprep.subr.bf16.mxu0 0
    %2562 = vmatpush1.bf16.msra.mxu0 %v2493
    %2563 = vmatprep.subr.bf16.mxu0 0
    %2564 = vmatpush1.bf16.msra.mxu0 %v2494
    %2565 = vmatprep.subr.bf16.mxu0 0
    %2566 = vmatpush1.bf16.msra.mxu0 %v2495
    %2567 = vmatprep.subr.bf16.mxu0 0
    %2568 = vmatpush1.bf16.msra.mxu0 %v2496
    %2569 = vmatprep.subr.bf16.mxu0 0
    %2570 = vmatpush1.bf16.msra.mxu0 %v2497
    %2571 = vmatprep.subr.bf16.mxu0 0
    %2572 = vmatpush1.bf16.msra.mxu0 %v2498
    %2573 = vmatprep.subr.bf16.mxu0 0
    %2574 = vmatpush1.bf16.msra.mxu0 %v2499
    %2575 = vmatprep.subr.bf16.mxu0 0
    %2576 = vmatpush1.bf16.msra.mxu0 %v2500
    %2577 = vmatprep.subr.bf16.mxu0 0
    %2578 = vmatpush1.bf16.msra.mxu0 %v2501
    %2579 = vmatprep.subr.bf16.mxu0 0
    %2580 = vmatpush1.bf16.msra.mxu0 %v2502
    %2581 = vmatprep.subr.bf16.mxu0 0
    %2582 = vmatpush1.bf16.msra.mxu0 %v2503
    %2583 = vmatprep.mubr.bf16.mxu0 %v2471
    %2584 = vmatmul.mubr.bf16.gmra.mrb[0].mxu0 %v2470
    %v2585 = vpop.f32.mrb[0].mxu0
    %v2586 = vadd.f32 %v2546, %v2585
    %v2587 = vpop.f32.mrb[0].mxu0
    %v2588 = vpop.f32.mrb[0].mxu0
    %v2589 = vpop.f32.mrb[0].mxu0
    %2590 = vdwg.mxu0
    %v2591 = vmax.f32 %v2586, 0.0
    %v2592 = vld [vmem:[%s9] sm:$0xff]
    %v2593 = vld [vmem:[%s9 + $0x8] sm:$0xff]
    %v2594 = vld [vmem:[%s9 + $0x10] sm:$0xff]
    %v2595 = vld [vmem:[%s9 + $0x18] sm:$0xff]
    %v2596 = vld [vmem:[%s9 + $0x20] sm:$0xff]
    %v2597 = vld [vmem:[%s9 + $0x28] sm:$0xff]
    %v2598 = vld [vmem:[%s9 + $0x30] sm:$0xff]
    %v2599 = vld [vmem:[%s9 + $0x38] sm:$0xff]
    %v2600 = vld [vmem:[#allocation7] sm:$0x1]
    %v2602 = vlaneseq
    %v2603 = vshrl.u32 %v2602, 7
    %v2604 = vsub.s32 0, %v2603
    %v2605 = vrot.slane %v2600, %v2604
    %v2608 = vsel %vm1215, %v2591, 0
    %2610 = vmatprep.subr.mxu0 0.0
    %2611 = vmatpush1.msra.mxu0 %v2592
    %2612 = vmatprep.subr.mxu0 0.0
    %2613 = vmatpush1.msra.mxu0 %v2593
    %2614 = vmatprep.subr.mxu0 0.0
    %2615 = vmatpush1.msra.mxu0 %v2594
    %2616 = vmatprep.subr.mxu0 0.0
    %2617 = vmatpush1.msra.mxu0 %v2595
    %2618 = vmatprep.subr.mxu0 0.0
    %2619 = vmatpush1.msra.mxu0 %v2596
    %2620 = vmatprep.subr.mxu0 0.0
    %2621 = vmatpush1.msra.mxu0 %v2597
    %2622 = vmatprep.subr.mxu0 0.0
    %2623 = vmatpush1.msra.mxu0 %v2598
    %2624 = vmatprep.subr.mxu0 0.0
    %2625 = vmatpush1.msra.mxu0 %v2599
    %2626 = vmatprep.subr.mxu0 0.0
    %2627 = vmatpush1.msra.mxu0 0.0
    %2628 = vmatprep.subr.mxu0 0.0
    %2629 = vmatpush1.msra.mxu0 0.0
    %2630 = vmatprep.subr.mxu0 0.0
    %2631 = vmatpush1.msra.mxu0 0.0
    %2632 = vmatprep.subr.mxu0 0.0
    %2633 = vmatpush1.msra.mxu0 0.0
    %2634 = vmatprep.subr.mxu0 0.0
    %2635 = vmatpush1.msra.mxu0 0.0
    %2636 = vmatprep.subr.mxu0 0.0
    %2637 = vmatpush1.msra.mxu0 0.0
    %2638 = vmatprep.subr.mxu0 0.0
    %2639 = vmatpush1.msra.mxu0 0.0
    %2640 = vmatprep.subr.mxu0 0.0
    %2641 = vmatpush1.msra.mxu0 0.0
    %2642 = vmatprep.subr.mxu0 0.0
    %2643 = vmatpush1.msra.mxu0 0.0
    %2644 = vmatprep.subr.mxu0 0.0
    %2645 = vmatpush1.msra.mxu0 0.0
    %2646 = vmatprep.subr.mxu0 0.0
    %2647 = vmatpush1.msra.mxu0 0.0
    %2648 = vmatprep.subr.mxu0 0.0
    %2649 = vmatpush1.msra.mxu0 0.0
    %2650 = vmatprep.subr.mxu0 0.0
    %2651 = vmatpush1.msra.mxu0 0.0
    %2652 = vmatprep.subr.mxu0 0.0
    %2653 = vmatpush1.msra.mxu0 0.0
    %2654 = vmatprep.subr.mxu0 0.0
    %2655 = vmatpush1.msra.mxu0 0.0
    %2656 = vmatprep.subr.mxu0 0.0
    %2657 = vmatpush1.msra.mxu0 0.0
    %2658 = vmatprep.subr.mxu0 0.0
    %2659 = vmatpush1.msra.mxu0 0.0
    %2660 = vmatprep.subr.mxu0 0.0
    %2661 = vmatpush1.msra.mxu0 0.0
    %2662 = vmatprep.subr.mxu0 0.0
    %2663 = vmatpush1.msra.mxu0 0.0
    %2664 = vmatprep.subr.mxu0 0.0
    %2665 = vmatpush1.msra.mxu0 0.0
    %2666 = vmatprep.subr.mxu0 0.0
    %2667 = vmatpush1.msra.mxu0 0.0
    %2668 = vmatprep.subr.mxu0 0.0
    %2669 = vmatpush1.msra.mxu0 0.0
    %2670 = vmatprep.subr.mxu0 0.0
    %2671 = vmatpush1.msra.mxu0 0.0
    %2672 = vmatprep.subr.mxu0 0.0
    %2673 = vmatpush1.msra.mxu0 0.0
    %2674 = vmatprep.mubr.f32.mxu0 0.0
    %2675 = vmatmul.mubr.f32.gmra.mrb[0].mxu0 %v2608
    %v2676 = vpop.f32.mrb[0].mxu0
    %v2677 = vadd.f32 %v2605, %v2676
    %v2678 = vpop.f32.mrb[0].mxu0
    %2679 = vdwg.mxu0
    %v2680 = vmax.f32 %v2677, 0.0
    %v2681 = vlaneseq
    %v2682 = vshrl.u32 %v2681, 7
    %vm2683 = vcmp.eq.s32.totalorder %v2682, %v1167
    %v2684 = vsel %vm2683, 1, 0
    %v2685 = vcvt.s32.f32 %v2684
    %2687 = vset.pattern.permute.xlu0 0
    %2688 = vperm.xlu0 %2687, %v2680
    %v2689 = vpop.permute.xlu0 %2688
    %v2691 = vmul.f32 %v2685, %v2689
    %vm2692 = vcmask 64512
    %v2693 = vsel %vm2692, %v2691, 0.0
    %v2694 = vrot.slane %v2693, 4
    %v2695 = vadd.f32 %v2693, %v2694
    %v2696 = vrot.slane %v2695, 2
    %v2697 = vadd.f32 %v2695, %v2696
    %v2698 = vrot.slane %v2697, 1
    %v2699 = vadd.f32 %v2697, %v2698
    %v2700 = vsub.f32 %v2689, %v2699
    %v2701 = vand.u32 2147483647, %v2700
    %v2702 = vsel %vm2692, %v2701, 0.0
    %v2703 = vrot.slane %v2702, 4
    %v2704 = vadd.f32 %v2702, %v2703
    %v2705 = vrot.slane %v2704, 2
    %v2706 = vadd.f32 %v2704, %v2705
    %v2707 = vrot.slane %v2706, 1
    %v2708 = vadd.f32 %v2706, %v2707
    %v2709 = vcvt.s32.f32 %v2682
    %v2710 = vmul.f32 %v2709, 2.0
    %v2711 = vsub.f32 7.0, %v2710
    %v2712 = vmul.f32 %v2711, %v2699
    %v2713 = vsub.f32 %v2712, %v2708
    %v2714 = vrcp.pop 5.0
    %v2715 = vmul.f32 %v2713, %v2714
    %v2716 = vsel %vm2692, %v2715, -inf
    %2717 = vmax.xlane.f32.xlu0 %v2716
    %v2718 = vpop.xlane.xlu0 %2717
    %v2719 = vsub.f32 %v2715, %v2718
    %v2720 = vmul.f32 %v2719, 1.442695
    %v2721 = vpow.pop %v2720
    %v2722 = vsel %vm2692, %v2721, 0.0
    %2723 = vadd.xlane.f32.xlu0 %v2722
    %v2724 = vpop.xlane.xlu0 %2723
    %v2725 = vrcp.pop %v2724
    %v2726 = vmul.f32 %v2721, %v2725
    %2728 = vrot.lane.b32.xlu0 %v2726, 8
    %v2729 = vpop.permute.xlu0 %2728
    %2731 = vrot.lane.b32.xlu0 %v2726, 16
    %v2732 = vpop.permute.xlu0 %2731
    %2734 = vrot.lane.b32.xlu0 %v2726, 24
    %v2735 = vpop.permute.xlu0 %2734
    %2737 = vrot.lane.b32.xlu0 %v2726, 32
    %v2738 = vpop.permute.xlu0 %2737
    %2740 = vrot.lane.b32.xlu0 %v2726, 40
    %v2741 = vpop.permute.xlu0 %2740
    %2743 = vrot.lane.b32.xlu0 %v2726, 48
    %v2744 = vpop.permute.xlu0 %2743
    %2746 = vrot.lane.b32.xlu0 %v2726, 56
    %v2747 = vpop.permute.xlu0 %2746
    %v2749 = vsel %vm2692, %v2726, %v2729
    %vm2750 = vcmask 130048
    %v2751 = vsel %vm2750, %v2749, %v2732
    %vm2752 = vcmask 195584
    %v2753 = vsel %vm2752, %v2751, %v2735
    %v2754 = vsel %vm1202, %v2753, %v2738
    %vm2755 = vcmask 326656
    %v2756 = vsel %vm2755, %v2754, %v2741
    %vm2757 = vcmask 392192
    %v2758 = vsel %vm2757, %v2756, %v2744
    %vm2759 = vcmask 457728
    %v2760 = vsel %vm2759, %v2758, %v2747
    %v2761 = vmul.u32 %v2682, 8
    %vm2762 = vcmp.ge.s32.totalorder %v1167, %v2761
    %v2763 = vadd.s32 %v2682, 1
    %v2764 = vmul.u32 %v2763, 8
    %vm2765 = vcmp.lt.s32.totalorder %v1167, %v2764
    %vm2766 = vmand %vm2762, %vm2765
    %v2767 = vsel %vm2766, %v2760, 0.0
    %v2768 = vsel %vm1215, %v2767, 0.0
    %v2769 = vrot.slane %v2768, 4
    %v2770 = vadd.f32 %v2768, %v2769
    %v2771 = vrot.slane %v2770, 2
    %v2772 = vadd.f32 %v2770, %v2771
    %v2773 = vrot.slane %v2772, 1
    %v2774 = vadd.f32 %v2772, %v2773
    %s2775 = smul.u32 4, 8
    %s2776 = smul.u32 %s2775, 4
    %s2777 = sshll.u32 %s2776, 4
    %2778 = dma.done %s717, %s2777
    %v2779 = vpack.c.bf16 %v2774, %v2774
    %v2780 = vld [vmem:[#allocation4] sm:$0xff]
    %v2781 = vld [vmem:[#allocation4 + $0x8] sm:$0xff]
    %v2782 = vld [vmem:[#allocation4 + $0x10] sm:$0xff]
    %v2783 = vld [vmem:[#allocation4 + $0x18] sm:$0xff]
    %v2784 = vld [vmem:[#allocation4 + $0x20] sm:$0xff]
    %v2785 = vld [vmem:[#allocation4 + $0x28] sm:$0xff]
    %v2786 = vld [vmem:[#allocation4 + $0x30] sm:$0xff]
    %v2787 = vld [vmem:[#allocation4 + $0x38] sm:$0xff]
    %v2788 = vld [vmem:[#allocation4 + $0x40] sm:$0xff]
    %v2789 = vld [vmem:[#allocation4 + $0x48] sm:$0xff]
    %v2790 = vld [vmem:[#allocation4 + $0x50] sm:$0xff]
    %v2791 = vld [vmem:[#allocation4 + $0x58] sm:$0xff]
    %v2792 = vld [vmem:[#allocation4 + $0x60] sm:$0xff]
    %v2793 = vld [vmem:[#allocation4 + $0x68] sm:$0xff]
    %v2794 = vld [vmem:[#allocation4 + $0x70] sm:$0xff]
    %v2795 = vld [vmem:[#allocation4 + $0x78] sm:$0xff]
    %v2796 = vld [vmem:[%s12] sm:$0xf]
    %v2798 = vlaneseq
    %v2799 = vshrl.u32 %v2798, 7
    %v2800 = vsub.s32 0, %v2799
    %v2801 = vrot.slane %v2796, %v2800
    %v2802 = vlaneseq
    %v2803 = vshrl.u32 %v2802, 7
    %v2804 = vsub.s32 1, %v2803
    %v2805 = vrot.slane %v2796, %v2804
    %v2806 = vlaneseq
    %v2807 = vshrl.u32 %v2806, 7
    %v2808 = vsub.s32 2, %v2807
    %v2809 = vrot.slane %v2796, %v2808
    %v2810 = vlaneseq
    %v2811 = vshrl.u32 %v2810, 7
    %v2812 = vsub.s32 3, %v2811
    %v2813 = vrot.slane %v2796, %v2812
    %v2819 = vsel %vm1215, %v2779, 0
    %2821 = vmatprep.subr.bf16.mxu0 %v2781
    %2822 = vmatpush1.bf16.msra.mxu0 %v2780
    %2823 = vmatprep.subr.bf16.mxu0 %v2785
    %2824 = vmatpush1.bf16.msra.mxu0 %v2784
    %2825 = vmatprep.subr.bf16.mxu0 %v2789
    %2826 = vmatpush1.bf16.msra.mxu0 %v2788
    %2827 = vmatprep.subr.bf16.mxu0 %v2793
    %2828 = vmatpush1.bf16.msra.mxu0 %v2792
    %2829 = vmatprep.subr.bf16.mxu0 0
    %2830 = vmatpush1.bf16.msra.mxu0 0
    %2831 = vmatprep.subr.bf16.mxu0 0
    %2832 = vmatpush1.bf16.msra.mxu0 0
    %2833 = vmatprep.subr.bf16.mxu0 0
    %2834 = vmatpush1.bf16.msra.mxu0 0
    %2835 = vmatprep.subr.bf16.mxu0 0
    %2836 = vmatpush1.bf16.msra.mxu0 0
    %2837 = vmatprep.subr.bf16.mxu0 0
    %2838 = vmatpush1.bf16.msra.mxu0 0
    %2839 = vmatprep.subr.bf16.mxu0 0
    %2840 = vmatpush1.bf16.msra.mxu0 0
    %2841 = vmatprep.subr.bf16.mxu0 0
    %2842 = vmatpush1.bf16.msra.mxu0 0
    %2843 = vmatprep.subr.bf16.mxu0 0
    %2844 = vmatpush1.bf16.msra.mxu0 0
    %2845 = vmatprep.subr.bf16.mxu0 0
    %2846 = vmatpush1.bf16.msra.mxu0 0
    %2847 = vmatprep.subr.bf16.mxu0 0
    %2848 = vmatpush1.bf16.msra.mxu0 0
    %2849 = vmatprep.subr.bf16.mxu0 0
    %2850 = vmatpush1.bf16.msra.mxu0 0
    %2851 = vmatprep.subr.bf16.mxu0 0
    %2852 = vmatpush1.bf16.msra.mxu0 0
    %2853 = vmatprep.mubr.bf16.mxu0 0
    %2854 = vmatmul.mubr.bf16.gmra.mrb[0].mxu0 %v2819
    %v2855 = vpop.f32.mrb[0].mxu0
    %v2856 = vadd.f32 %v2801, %v2855
    %v2857 = vpop.f32.mrb[0].mxu0
    %v2858 = vadd.f32 %v2805, %v2857
    %v2859 = vpop.f32.mrb[0].mxu0
    %v2860 = vpop.f32.mrb[0].mxu0
    %2861 = vdwg.mxu0
    %2862 = vmatprep.subr.bf16.mxu0 %v2783
    %2863 = vmatpush1.bf16.msra.mxu0 %v2782
    %2864 = vmatprep.subr.bf16.mxu0 %v2787
    %2865 = vmatpush1.bf16.msra.mxu0 %v2786
    %2866 = vmatprep.subr.bf16.mxu0 %v2791
    %2867 = vmatpush1.bf16.msra.mxu0 %v2790
    %2868 = vmatprep.subr.bf16.mxu0 %v2795
    %2869 = vmatpush1.bf16.msra.mxu0 %v2794
    %2870 = vmatprep.subr.bf16.mxu0 0
    %2871 = vmatpush1.bf16.msra.mxu0 0
    %2872 = vmatprep.subr.bf16.mxu0 0
    %2873 = vmatpush1.bf16.msra.mxu0 0
    %2874 = vmatprep.subr.bf16.mxu0 0
    %2875 = vmatpush1.bf16.msra.mxu0 0
    %2876 = vmatprep.subr.bf16.mxu0 0
    %2877 = vmatpush1.bf16.msra.mxu0 0
    %2878 = vmatprep.subr.bf16.mxu0 0
    %2879 = vmatpush1.bf16.msra.mxu0 0
    %2880 = vmatprep.subr.bf16.mxu0 0
    %2881 = vmatpush1.bf16.msra.mxu0 0
    %2882 = vmatprep.subr.bf16.mxu0 0
    %2883 = vmatpush1.bf16.msra.mxu0 0
    %2884 = vmatprep.subr.bf16.mxu0 0
    %2885 = vmatpush1.bf16.msra.mxu0 0
    %2886 = vmatprep.subr.bf16.mxu0 0
    %2887 = vmatpush1.bf16.msra.mxu0 0
    %2888 = vmatprep.subr.bf16.mxu0 0
    %2889 = vmatpush1.bf16.msra.mxu0 0
    %2890 = vmatprep.subr.bf16.mxu0 0
    %2891 = vmatpush1.bf16.msra.mxu0 0
    %2892 = vmatprep.subr.bf16.mxu0 0
    %2893 = vmatpush1.bf16.msra.mxu0 0
    %2894 = vmatprep.mubr.bf16.mxu0 0
    %2895 = vmatmul.mubr.bf16.gmra.mrb[0].mxu0 %v2819
    %v2896 = vpop.f32.mrb[0].mxu0
    %v2897 = vadd.f32 %v2809, %v2896
    %v2898 = vpop.f32.mrb[0].mxu0
    %v2899 = vadd.f32 %v2813, %v2898
    %v2900 = vpop.f32.mrb[0].mxu0
    %v2901 = vpop.f32.mrb[0].mxu0
    %2902 = vdwg.mxu0
    %v2903 = vmax.f32 %v2856, 0.0
    %v2904 = vmax.f32 %v2858, 0.0
    %v2905 = vmax.f32 %v2897, 0.0
    %v2906 = vmax.f32 %v2899, 0.0
    %s2907 = sshll.u32 %s2465, 4
    %2908 = dma.done %s894, %s2907
    %v2909 = vpack.c.bf16 %v2903, %v2903
    %v2910 = vpack.c.bf16 %v2904, %v2904
    %v2911 = vpack.c.bf16 %v2905, %v2905
    %v2912 = vpack.c.bf16 %v2906, %v2906
    %v2913 = vld [vmem:[#allocation5] sm:$0xff]
    %v2914 = vld [vmem:[#allocation5 + $0x8] sm:$0xff]
    %v2915 = vld [vmem:[#allocation5 + $0x10] sm:$0xff]
    %v2916 = vld [vmem:[#allocation5 + $0x18] sm:$0xff]
    %v2917 = vld [vmem:[#allocation5 + $0x20] sm:$0xff]
    %v2918 = vld [vmem:[#allocation5 + $0x28] sm:$0xff]
    %v2919 = vld [vmem:[#allocation5 + $0x30] sm:$0xff]
    %v2920 = vld [vmem:[#allocation5 + $0x38] sm:$0xff]
    %v2921 = vld [vmem:[#allocation5 + $0x40] sm:$0xff]
    %v2922 = vld [vmem:[#allocation5 + $0x48] sm:$0xff]
    %v2923 = vld [vmem:[#allocation5 + $0x50] sm:$0xff]
    %v2924 = vld [vmem:[#allocation5 + $0x58] sm:$0xff]
    %v2925 = vld [vmem:[#allocation5 + $0x60] sm:$0xff]
    %v2926 = vld [vmem:[#allocation5 + $0x68] sm:$0xff]
    %v2927 = vld [vmem:[#allocation5 + $0x70] sm:$0xff]
    %v2928 = vld [vmem:[#allocation5 + $0x78] sm:$0xff]
    %v2929 = vld [vmem:[#allocation5 + $0x80] sm:$0xff]
    %v2930 = vld [vmem:[#allocation5 + $0x88] sm:$0xff]
    %v2931 = vld [vmem:[#allocation5 + $0x90] sm:$0xff]
    %v2932 = vld [vmem:[#allocation5 + $0x98] sm:$0xff]
    %v2933 = vld [vmem:[#allocation5 + $0xa0] sm:$0xff]
    %v2934 = vld [vmem:[#allocation5 + $0xa8] sm:$0xff]
    %v2935 = vld [vmem:[#allocation5 + $0xb0] sm:$0xff]
    %v2936 = vld [vmem:[#allocation5 + $0xb8] sm:$0xff]
    %v2937 = vld [vmem:[#allocation5 + $0xc0] sm:$0xff]
    %v2938 = vld [vmem:[#allocation5 + $0xc8] sm:$0xff]
    %v2939 = vld [vmem:[#allocation5 + $0xd0] sm:$0xff]
    %v2940 = vld [vmem:[#allocation5 + $0xd8] sm:$0xff]
    %v2941 = vld [vmem:[#allocation5 + $0xe0] sm:$0xff]
    %v2942 = vld [vmem:[#allocation5 + $0xe8] sm:$0xff]
    %v2943 = vld [vmem:[#allocation5 + $0xf0] sm:$0xff]
    %v2944 = vld [vmem:[#allocation5 + $0xf8] sm:$0xff]
    %v2945 = vld [vmem:[%s14] sm:$0x1]
    %2946 = vmatprep.subr.bf16.mxu0 0
    %2947 = vmatpush1.bf16.msra.mxu0 %v2913
    %2948 = vmatprep.subr.bf16.mxu0 0
    %2949 = vmatpush1.bf16.msra.mxu0 %v2914
    %2950 = vmatprep.subr.bf16.mxu0 0
    %2951 = vmatpush1.bf16.msra.mxu0 %v2915
    %2952 = vmatprep.subr.bf16.mxu0 0
    %2953 = vmatpush1.bf16.msra.mxu0 %v2916
    %2954 = vmatprep.subr.bf16.mxu0 0
    %2955 = vmatpush1.bf16.msra.mxu0 %v2917
    %2956 = vmatprep.subr.bf16.mxu0 0
    %2957 = vmatpush1.bf16.msra.mxu0 %v2918
    %2958 = vmatprep.subr.bf16.mxu0 0
    %2959 = vmatpush1.bf16.msra.mxu0 %v2919
    %2960 = vmatprep.subr.bf16.mxu0 0
    %2961 = vmatpush1.bf16.msra.mxu0 %v2920
    %2962 = vmatprep.subr.bf16.mxu0 0
    %2963 = vmatpush1.bf16.msra.mxu0 %v2921
    %2964 = vmatprep.subr.bf16.mxu0 0
    %2965 = vmatpush1.bf16.msra.mxu0 %v2922
    %2966 = vmatprep.subr.bf16.mxu0 0
    %2967 = vmatpush1.bf16.msra.mxu0 %v2923
    %2968 = vmatprep.subr.bf16.mxu0 0
    %2969 = vmatpush1.bf16.msra.mxu0 %v2924
    %2970 = vmatprep.subr.bf16.mxu0 0
    %2971 = vmatpush1.bf16.msra.mxu0 %v2925
    %2972 = vmatprep.subr.bf16.mxu0 0
    %2973 = vmatpush1.bf16.msra.mxu0 %v2926
    %2974 = vmatprep.subr.bf16.mxu0 0
    %2975 = vmatpush1.bf16.msra.mxu0 %v2927
    %2976 = vmatprep.subr.bf16.mxu0 0
    %2977 = vmatpush1.bf16.msra.mxu0 %v2928
    %2978 = vmatprep.mubr.bf16.mxu0 %v2910
    %2979 = vmatmul.mubr.bf16.gmra.mrb[0].mxu0 %v2909
    %v2980 = vpop.f32.mrb[0].mxu0
    %v2981 = vadd.f32 %v2945, %v2980
    %v2982 = vpop.f32.mrb[0].mxu0
    %v2983 = vpop.f32.mrb[0].mxu0
    %v2984 = vpop.f32.mrb[0].mxu0
    %2985 = vdwg.mxu0
    %2986 = vmatprep.subr.bf16.mxu0 0
    %2987 = vmatpush1.bf16.msra.mxu0 %v2929
    %2988 = vmatprep.subr.bf16.mxu0 0
    %2989 = vmatpush1.bf16.msra.mxu0 %v2930
    %2990 = vmatprep.subr.bf16.mxu0 0
    %2991 = vmatpush1.bf16.msra.mxu0 %v2931
    %2992 = vmatprep.subr.bf16.mxu0 0
    %2993 = vmatpush1.bf16.msra.mxu0 %v2932
    %2994 = vmatprep.subr.bf16.mxu0 0
    %2995 = vmatpush1.bf16.msra.mxu0 %v2933
    %2996 = vmatprep.subr.bf16.mxu0 0
    %2997 = vmatpush1.bf16.msra.mxu0 %v2934
    %2998 = vmatprep.subr.bf16.mxu0 0
    %2999 = vmatpush1.bf16.msra.mxu0 %v2935
    %3000 = vmatprep.subr.bf16.mxu0 0
    %3001 = vmatpush1.bf16.msra.mxu0 %v2936
    %3002 = vmatprep.subr.bf16.mxu0 0
    %3003 = vmatpush1.bf16.msra.mxu0 %v2937
    %3004 = vmatprep.subr.bf16.mxu0 0
    %3005 = vmatpush1.bf16.msra.mxu0 %v2938
    %3006 = vmatprep.subr.bf16.mxu0 0
    %3007 = vmatpush1.bf16.msra.mxu0 %v2939
    %3008 = vmatprep.subr.bf16.mxu0 0
    %3009 = vmatpush1.bf16.msra.mxu0 %v2940
    %3010 = vmatprep.subr.bf16.mxu0 0
    %3011 = vmatpush1.bf16.msra.mxu0 %v2941
    %3012 = vmatprep.subr.bf16.mxu0 0
    %3013 = vmatpush1.bf16.msra.mxu0 %v2942
    %3014 = vmatprep.subr.bf16.mxu0 0
    %3015 = vmatpush1.bf16.msra.mxu0 %v2943
    %3016 = vmatprep.subr.bf16.mxu0 0
    %3017 = vmatpush1.bf16.msra.mxu0 %v2944
    %3018 = vmatprep.mubr.bf16.mxu0 %v2912
    %3019 = vmatmul.mubr.bf16.gmra.mrb[0].mxu0 %v2911
    %v3020 = vpop.f32.mrb[0].mxu0
    %v3021 = vadd.f32 %v2981, %v3020
    %v3022 = vpop.f32.mrb[0].mxu0
    %v3023 = vpop.f32.mrb[0].mxu0
    %v3024 = vpop.f32.mrb[0].mxu0
    %3025 = vdwg.mxu0
    %v3026 = vmax.f32 %v3021, 0.0
    %v3027 = vld [vmem:[%s15] sm:$0xff]
    %v3028 = vld [vmem:[%s15 + $0x8] sm:$0xff]
    %v3029 = vld [vmem:[%s15 + $0x10] sm:$0xff]
    %v3030 = vld [vmem:[%s15 + $0x18] sm:$0xff]
    %v3031 = vld [vmem:[%s15 + $0x20] sm:$0xff]
    %v3032 = vld [vmem:[%s15 + $0x28] sm:$0xff]
    %v3033 = vld [vmem:[%s15 + $0x30] sm:$0xff]
    %v3034 = vld [vmem:[%s15 + $0x38] sm:$0xff]
    %v3035 = vld [vmem:[%s16] sm:$0x1]
    %v3037 = vsel %vm1215, %v3026, 0
    %3039 = vmatprep.subr.mxu0 0.0
    %3040 = vmatpush1.msra.mxu0 %v3027
    %3041 = vmatprep.subr.mxu0 0.0
    %3042 = vmatpush1.msra.mxu0 %v3028
    %3043 = vmatprep.subr.mxu0 0.0
    %3044 = vmatpush1.msra.mxu0 %v3029
    %3045 = vmatprep.subr.mxu0 0.0
    %3046 = vmatpush1.msra.mxu0 %v3030
    %3047 = vmatprep.subr.mxu0 0.0
    %3048 = vmatpush1.msra.mxu0 %v3031
    %3049 = vmatprep.subr.mxu0 0.0
    %3050 = vmatpush1.msra.mxu0 %v3032
    %3051 = vmatprep.subr.mxu0 0.0
    %3052 = vmatpush1.msra.mxu0 %v3033
    %3053 = vmatprep.subr.mxu0 0.0
    %3054 = vmatpush1.msra.mxu0 %v3034
    %3055 = vmatprep.subr.mxu0 0.0
    %3056 = vmatpush1.msra.mxu0 0.0
    %3057 = vmatprep.subr.mxu0 0.0
    %3058 = vmatpush1.msra.mxu0 0.0
    %3059 = vmatprep.subr.mxu0 0.0
    %3060 = vmatpush1.msra.mxu0 0.0
    %3061 = vmatprep.subr.mxu0 0.0
    %3062 = vmatpush1.msra.mxu0 0.0
    %3063 = vmatprep.subr.mxu0 0.0
    %3064 = vmatpush1.msra.mxu0 0.0
    %3065 = vmatprep.subr.mxu0 0.0
    %3066 = vmatpush1.msra.mxu0 0.0
    %3067 = vmatprep.subr.mxu0 0.0
    %3068 = vmatpush1.msra.mxu0 0.0
    %3069 = vmatprep.subr.mxu0 0.0
    %3070 = vmatpush1.msra.mxu0 0.0
    %3071 = vmatprep.subr.mxu0 0.0
    %3072 = vmatpush1.msra.mxu0 0.0
    %3073 = vmatprep.subr.mxu0 0.0
    %3074 = vmatpush1.msra.mxu0 0.0
    %3075 = vmatprep.subr.mxu0 0.0
    %3076 = vmatpush1.msra.mxu0 0.0
    %3077 = vmatprep.subr.mxu0 0.0
    %3078 = vmatpush1.msra.mxu0 0.0
    %3079 = vmatprep.subr.mxu0 0.0
    %3080 = vmatpush1.msra.mxu0 0.0
    %3081 = vmatprep.subr.mxu0 0.0
    %3082 = vmatpush1.msra.mxu0 0.0
    %3083 = vmatprep.subr.mxu0 0.0
    %3084 = vmatpush1.msra.mxu0 0.0
    %3085 = vmatprep.subr.mxu0 0.0
    %3086 = vmatpush1.msra.mxu0 0.0
    %3087 = vmatprep.subr.mxu0 0.0
    %3088 = vmatpush1.msra.mxu0 0.0
    %3089 = vmatprep.subr.mxu0 0.0
    %3090 = vmatpush1.msra.mxu0 0.0
    %3091 = vmatprep.subr.mxu0 0.0
    %3092 = vmatpush1.msra.mxu0 0.0
    %3093 = vmatprep.subr.mxu0 0.0
    %3094 = vmatpush1.msra.mxu0 0.0
    %3095 = vmatprep.subr.mxu0 0.0
    %3096 = vmatpush1.msra.mxu0 0.0
    %3097 = vmatprep.subr.mxu0 0.0
    %3098 = vmatpush1.msra.mxu0 0.0
    %3099 = vmatprep.subr.mxu0 0.0
    %3100 = vmatpush1.msra.mxu0 0.0
    %3101 = vmatprep.subr.mxu0 0.0
    %3102 = vmatpush1.msra.mxu0 0.0
    %3103 = vmatprep.mubr.f32.mxu0 0.0
    %3104 = vmatmul.mubr.f32.gmra.mrb[0].mxu0 %v3037
    %v3105 = vpop.f32.mrb[0].mxu0
    %v3106 = vadd.f32 %v3035, %v3105
    %v3107 = vpop.f32.mrb[0].mxu0
    %3108 = vdwg.mxu0
    %vm3109 = vcmask 57344
    %v3110 = vsel %vm3109, %v3106, -inf
    %3111 = vmax.xlane.f32.xlu0 %v3110
    %v3112 = vpop.xlane.xlu0 %3111
    %v3113 = vsub.f32 %v3106, %v3112
    %v3114 = vmul.f32 %v3113, 1.442695
    %v3115 = vpow.pop %v3114
    %v3116 = vsel %vm3109, %v3115, 0.0
    %3117 = vadd.xlane.f32.xlu0 %v3116
    %v3118 = vpop.xlane.xlu0 %3117
    %v3119 = vrcp.pop %v3118
    %v3120 = vmul.f32 %v3115, %v3119
    %3121 = vst.msk [vmem:[#allocation8] sm:$0x1] %vm3109, %v3120
    // Predicated region
    $region196: #{lstm_model3_forward.1} parent=1 // pred_check
      _
    $region197: #{lstm_model3_forward.1} parent=1 // pred_check_branch
      %3123 = sbr.rel (0) target = $region199
    $region198: #{lstm_model3_forward.1} parent=1 // pred_region
      %s3125 = ssub.s32 16, 16
      %3126 = vsyncadd [#allocation9], %s3125
      %s3128 = sshll.u32 [#allocation8], 4
      %s3129 = int_to_ptr.vmem [resolvable:$true] %s3128
      %3131 = dma.vmem_to_hbm [thread:$0]  %s3129, 16, %s17, [#allocation9]
    $region199: #{lstm_model3_forward.1} parent=1 // pred_fallthru
      _
    // Predicated region
    $region200: #{lstm_model3_forward.1} parent=1 // pred_check
      _
    $region201: #{lstm_model3_forward.1} parent=1 // pred_check_branch
      %3133 = sbr.rel (0) target = $region203
    $region202: #{lstm_model3_forward.1} parent=1 // pred_region
      %3134 = dma.done [#allocation9], 16
    $region203: #{lstm_model3_forward.1} parent=1 // pred_fallthru
      _
    %3135 = vsyncpa [#allocation9], 1
  %3136 = vsyncmov [#allocation6]
  %s3137 = vpop.sfrf %3136
  %p3138 = scmp.eq.s32.totalorder %s3137, 0
  %p3139 = pneg %p3138
  %3141 = shalt.err (%p3139)
  %s3142 = scalar_lea.sflag [#allocation6], 1
  %3143 = vsyncmov %s3142
  %s3144 = vpop.sfrf %3143
  %p3145 = scmp.eq.s32.totalorder %s3144, 0
  %p3146 = pneg %p3145
  %3148 = shalt.err (%p3146)
  %s3149 = scalar_lea.sflag [#allocation6], 2
  %3150 = vsyncmov %s3149
  %s3151 = vpop.sfrf %3150
  %p3152 = scmp.eq.s32.totalorder %s3151, 0
  %p3153 = pneg %p3152
  %3155 = shalt.err (%p3153)
  %s3156 = scalar_lea.sflag [#allocation6], 3
  %3157 = vsyncmov %s3156
  %s3158 = vpop.sfrf %3157
  %p3159 = scmp.eq.s32.totalorder %s3158, 0
  %p3160 = pneg %p3159
  %3162 = shalt.err (%p3160)

</llo_original>
